<compile_context>
chip_gen: v6e
topology: v6e:2x2x1
jax: 0.10.0
libtpu: 0.0.40
codegen_flags: <defaults>
</compile_context>

<pallas_src>
import jax
import jax.numpy as jnp
from jax.experimental import pallas as pl
from jax.experimental.pallas import tpu as pltpu

NEG_INF = -1e30   # Python float -> jaxpr literal inside kernels (f32-safe additive mask)
BN_EPS = 1e-5


# ----------------------------------------------------------------------------
# In-kernel helpers
# ----------------------------------------------------------------------------
def _prelu(x, slope_row):
    # torch.nn.PReLU with a single parameter, pre-broadcast to a (1, H) row at pack time.
    return jnp.where(x >= 0.0, x, slope_row * x)


def _masked_batchnorm(x, valid_col, inv_n, gamma, beta):
    # BatchNorm(track_running_stats=False): batch statistics (biased var) over VALID rows.
    mean = jnp.sum(x * valid_col, axis=0, keepdims=True) * inv_n
    d = x - mean
    var = jnp.sum(d * d * valid_col, axis=0, keepdims=True) * inv_n
    return d * jax.lax.rsqrt(var + BN_EPS) * gamma + beta


def _col_to_row(col, eye, fill):
    # Exact (1, N) row copy of an (N, 1) column: eye-select + sublane max (no MXU roundoff).
    return jnp.max(jnp.where(eye > 0.0, col, fill), axis=0, keepdims=True)


def _neighbor_max(feats, mask_ds, weight_ds=None):
    """out[d, h] = max_s ( (weight_ds[d, s] if given else 1) * feats[s, h] + mask_ds[d, s]).

    Streamed per-source running max: the accumulator and every per-step temporary stay at
    (Ndst, H) -- a few vregs -- so there are no (Ns, Nd, H) 3-D intermediates, no lane<->sublane
    relayouts and no vreg-file spills.
    """
    ns = feats.shape[0]
    nd = mask_ds.shape[0]
    h = feats.shape[1]
    acc = jnp.full((nd, h), NEG_INF, jnp.float32)
    for s in range(ns):                               # static unroll; Nmax <= a few dozen
        f_row = feats[s:s + 1, :]                     # (1, H)
        m_col = mask_ds[:, s:s + 1]                   # (Nd, 1)
        if weight_ds is None:
            contrib = f_row + m_col
        else:
            contrib = weight_ds[:, s:s + 1] * f_row + m_col
        acc = jnp.maximum(acc, contrib)
    return acc


# ----------------------------------------------------------------------------
# Kernel 1: one GNN branch (runs twice via grid=(2,), "parallel" -> 2 TCs on v7x)
# ----------------------------------------------------------------------------
def polymer_branch_kernel(x_ref, adj_ref, valid_ref, mats_ref, vecs_ref, poolw_ref, emb_ref):
    """GATConv(max) -> BN -> PReLU -> SAGEConv(max) -> BN -> PReLU -> SAGPooling -> node max."""
    n = x_ref.shape[0]
    fin = x_ref.shape[1]
    hch = mats_ref.shape[1]

    x = x_ref[...]                                    # (N, fin)  zero rows for padding
    adj = adj_ref[...]                                # (N, N)    adj[d, s] = 1 iff edge s -> d
    valid = valid_ref[...]                            # (N, 1)    1.0 for real nodes

    gat_w = mats_ref[0:fin, :]                        # (fin, H)
    sage_w = mats_ref[fin:fin + 2 * hch, :]           # (2H, H) = [sage_wl ; sage_wr]
    a2 = vecs_ref[0:2, :]                             # (2, H)  = [gat_asrc ; gat_adst]
    gat_b = vecs_ref[2:3, :]
    bn1_g, bn1_b, pr1 = vecs_ref[3:4, :], vecs_ref[4:5, :], vecs_ref[5:6, :]
    sage_bl = vecs_ref[6:7, :]
    bn2_g, bn2_b, pr2 = vecs_ref[7:8, :], vecs_ref[8:9, :], vecs_ref[9:10, :]
    pool_b = vecs_ref[10:11, 0:1]                     # (1, 1)
    poolw = poolw_ref[...]                            # (2H, 1) = [pool_wrel ; pool_wroot]

    ri = jax.lax.broadcasted_iota(jnp.int32, (n, n), 0)
    ci = jax.lax.broadcasted_iota(jnp.int32, (n, n), 1)
    eye = (ri == ci).astype(jnp.float32)

    n_valid = jnp.sum(valid, axis=0, keepdims=True)   # (1, 1) exact small integer
    inv_n = 1.0 / n_valid

    # ---- GATConv(fin -> H, heads=1, aggr='max', add_self_loops=True) ----
    h = jnp.dot(x, gat_w, preferred_element_type=jnp.float32)                   # (N, H)
    proj = jax.lax.dot_general(h, a2, (((1,), (1,)), ((), ())),
                               preferred_element_type=jnp.float32)              # (N, 2)
    asrc_col, adst_col = proj[:, 0:1], proj[:, 1:2]
    asrc_row = _col_to_row(asrc_col, eye, NEG_INF)                              # (1, N)

    adj_sl = jnp.maximum(adj, eye)                    # GAT adds self-loops internally
    mask_sl = jnp.where(adj_sl > 0.0, 0.0, NEG_INF)
    e = adst_col + asrc_row                           # e[d, s] = a_dst.h_d + a_src.h_s
    e = jnp.where(e > 0.0, e, 0.2 * e)                # leaky_relu(0.2)
    e_m = e + mask_sl
    e_max = jnp.max(e_m, axis=1, keepdims=True)       # per-destination max over sources
    p = jnp.exp(e_m - e_max) * adj_sl
    alpha = p / jnp.sum(p, axis=1, keepdims=True)     # softmax over incoming edges (lanes)

    x1 = _neighbor_max(h, mask_sl, alpha) + gat_b                               # aggr='max'
    x1 = _prelu(_masked_batchnorm(x1, valid, inv_n, bn1_g, bn1_b), pr1)

    # ---- SAGEConv(H -> H, aggr='max'): lin_l(max_j x_j) + lin_r(x_i), fused GEMM ----
    mask_nb = jnp.where(adj > 0.0, 0.0, NEG_INF)
    mx = _neighbor_max(x1, mask_nb)
    deg = jnp.sum(adj, axis=1, keepdims=True)         # (N, 1) in-degree
    agg = jnp.where(deg > 0.0, mx, 0.0)               # PyG: empty neighborhood -> 0
    x2 = (jnp.dot(jnp.concatenate([agg, x1], axis=1), sage_w,
                  preferred_element_type=jnp.float32) + sage_bl)
    x2 = _prelu(_masked_batchnorm(x2, valid, inv_n, bn2_g, bn2_b), pr2)

    # ---- SAGPooling: score = GraphConv(H->1, aggr='add'); top-k (ratio 0.5); tanh gate ----
    agg2 = jnp.dot(adj, x2, preferred_element_type=jnp.float32)                 # (N, H)
    pool_in = jnp.concatenate([agg2, x2], axis=1)                               # (N, 2H)
    score_col = (jnp.dot(pool_in, poolw, preferred_element_type=jnp.float32) + pool_b)
    score_row = _col_to_row(score_col, eye, NEG_INF)  # exact copy -> bit-exact tie compares
    valid_row = _col_to_row(valid, eye, 0.0)

    # node i kept iff fewer than k VALID nodes beat it (ties broken by lower index)
    greater = jnp.where(score_row > score_col, 1.0, 0.0) * valid_row
    ties = jnp.where(jnp.logical_and(score_row == score_col, ci < ri), 1.0, 0.0) * valid_row
    rank = jnp.sum(greater + ties, axis=1, keepdims=True)                       # (N, 1)
    k_f = jnp.floor((n_valid + 1.0) * 0.5)            # ceil(0.5 * n_valid)
    selected = jnp.logical_and(rank < k_f, valid > 0.5)
    # TODO(synk): per-graph top-k for ragged multi-graph batches (nonzero `batch` vector)
    #             is not expressible here; a single graph per branch batch is assumed.

    pooled = jnp.where(selected, x2 * jnp.tanh(score_col), NEG_INF)
    emb_ref[...] = jnp.max(pooled, axis=0, keepdims=True)                       # (1, H)


# ----------------------------------------------------------------------------
# Kernel 2: prediction head on the two branch embeddings
# ----------------------------------------------------------------------------
def polymer_head_kernel(emb_ref, add_ref, fc1_w_ref, fc2_w1_ref, small_ref, hvecs_ref,
                        iv_ref, tg_ref):
    a_emb = emb_ref[0]                                                   # (1, H)
    g_emb = emb_ref[1]                                                   # (1, H)
    pool_agg = jnp.concatenate([a_emb, g_emb, add_ref[...]], axis=1)     # (1, 2H + na)

    x = (jnp.dot(pool_agg, fc1_w_ref[...], preferred_element_type=jnp.float32)
         + hvecs_ref[0:1, :])
    x = _prelu(x, hvecs_ref[1:2, :])                                     # leaky1 (PReLU)

    h2 = (jnp.dot(x, fc2_w1_ref[...], preferred_element_type=jnp.float32)
          + hvecs_ref[2:3, :])
    h2 = _prelu(h2, hvecs_ref[3:4, :])

    # fc2_w2 (on h2), fc3_w (on x), mf_w (on x) packed as one (2, H) @ (H, 3) matmul
    xh = jnp.concatenate([x, h2], axis=0)                                # (2, H)
    out3 = (jnp.dot(xh, small_ref[...], preferred_element_type=jnp.float32)
            + hvecs_ref[4:5, 0:3])                                       # (2, 3) + biases

    iv_ref[...] = jnp.exp(out3[1:2, 0:1])                                # exp(fc2(x))
    tg_ref[...] = jnp.exp(out3[0:1, 1:2]) * jnp.tanh(out3[0:1, 2:3])     # exp(fc3(x))*tanh(mf(x))


# ----------------------------------------------------------------------------
# Parameter packing (wrapper-side)
# ----------------------------------------------------------------------------
def pack_branch_params(p, H):
    srow = lambda v: jnp.broadcast_to(jnp.reshape(v, (1, 1)), (1, H)).astype(jnp.float32)
    mats = jnp.concatenate([p['gat_w'], p['sage_wl'], p['sage_wr']], axis=0)     # (fin+2H, H)
    vecs = jnp.concatenate([p['gat_asrc'], p['gat_adst'], p['gat_b'],
                            p['bn1_g'], p['bn1_b'], srow(p['pr1']),
                            p['sage_bl'], p['bn2_g'], p['bn2_b'], srow(p['pr2']),
                            srow(p['pool_brel'])], axis=0)                        # (11, H)
    poolw = jnp.concatenate([p['pool_wrel'], p['pool_wroot']], axis=0)            # (2H, 1)
    return mats, vecs, poolw


def pack_head_params(p, H):
    srow = lambda v: jnp.broadcast_to(jnp.reshape(v, (1, 1)), (1, H)).astype(jnp.float32)
    fc1_w = jnp.concatenate([p['fc1_wa'], p['fc1_wg'], p['fc1_wadd']], axis=0)    # (2H+na, H)
    head_small = jnp.concatenate([p['fc2_w2'], p['fc3_w'], p['mf_w']], axis=1)    # (H, 3)
    bias3 = jnp.concatenate([jnp.reshape(p['fc2_b2'], (1, 1)),
                             jnp.reshape(p['fc3_b'], (1, 1)),
                             jnp.reshape(p['mf_b'], (1, 1)),
                             jnp.zeros((1, H - 3), jnp.float32)], axis=1)          # (1, H)
    head_vecs = jnp.concatenate([p['fc1_b'], srow(p['pr']), p['fc2_b1'],
                                 srow(p['fc2_pr']), bias3], axis=0)                # (5, H)
    return fc1_w, p['fc2_w1'], head_small, head_vecs


# ----------------------------------------------------------------------------
# Forward wrapper: branch pallas_call (grid=(2,)) + tiny head pallas_call
# ----------------------------------------------------------------------------
def polymer_gnn_joint_forward(Ax, A_edge_index, Gx, G_edge_index, add_features,
                              Aparams, Gparams, head_params):
    fin = Ax.shape[1]
    H = Aparams['gat_w'].shape[1]
    nA, nG = Ax.shape[0], Gx.shape[0]
    Nmax = ((max(nA, nG) + 7) // 8) * 8               # static; pad nodes to a sublane multiple

    def dense_adj(edge_index):
        # adj[d, s] = 1 iff edge s -> d, built with one_hot matmuls (no XLA scatter).
        src, dst = edge_index[0], edge_index[1]
        oh_src = jax.nn.one_hot(src, Nmax, dtype=jnp.float32)        # (E, Nmax)
        oh_dst = jax.nn.one_hot(dst, Nmax, dtype=jnp.float32)        # (E, Nmax)
        raw = jnp.dot(oh_dst.T, oh_src)
        # TODO(synk): parallel (duplicate) edges are merged here; PyG counts them per-edge.
        return jnp.where(raw > 0.5, 1.0, 0.0).astype(jnp.float32)

    pad_x = lambda x: jnp.pad(x, ((0, Nmax - x.shape[0]), (0, 0))).astype(jnp.float32)
    valid_col = lambda m: (jnp.arange(Nmax) < m).astype(jnp.float32).reshape(Nmax, 1)

    x_st = jnp.stack([pad_x(Ax), pad_x(Gx)])                          # (2, Nmax, fin)
    adj_st = jnp.stack([dense_adj(A_edge_index), dense_adj(G_edge_index)])  # (2, Nmax, Nmax)
    valid_st = jnp.stack([valid_col(nA), valid_col(nG)])              # (2, Nmax, 1)

    a_mats, a_vecs, a_poolw = pack_branch_params(Aparams, H)
    g_mats, g_vecs, g_poolw = pack_branch_params(Gparams, H)
    br_mats = jnp.stack([a_mats, g_mats])                             # (2, fin+2H, H)
    br_vecs = jnp.stack([a_vecs, g_vecs])                             # (2, 11, H)
    br_poolw = jnp.stack([a_poolw, g_poolw])                          # (2, 2H, 1)

    blk = lambda shape: pl.BlockSpec(shape, lambda b: (b, 0, 0))

    # Branch call: grid=(2,) over {A, G}; "parallel" -> sharded across both TCs on v7x.
    # TODO(synk): on single-TC chips (v5e/v6e), lane-packing the two branches into one
    #             64-lane problem is the better split; not implemented here.
    emb = pl.pallas_call(
        polymer_branch_kernel,
        out_shape=jax.ShapeDtypeStruct((2, 1, H), jnp.float32),
        grid=(2,),
        in_specs=[blk((None, Nmax, fin)),
                  blk((None, Nmax, Nmax)),
                  blk((None, Nmax, 1)),
                  blk((None, fin + 2 * H, H)),
                  blk((None, 11, H)),
                  blk((None, 2 * H, 1))],
        out_specs=blk((None, 1, H)),
        compiler_params=pltpu.CompilerParams(dimension_semantics=("parallel",)),
    )(x_st, adj_st, valid_st, br_mats, br_vecs, br_poolw)

    fc1_w, fc2_w1, head_small, head_vecs = pack_head_params(head_params, H)
    vmem = pl.BlockSpec(memory_space=pltpu.MemorySpace.VMEM)
    iv, tg = pl.pallas_call(
        polymer_head_kernel,
        out_shape=(jax.ShapeDtypeStruct((1, 1), jnp.float32),
                   jax.ShapeDtypeStruct((1, 1), jnp.float32)),
        in_specs=[vmem] * 6,
        out_specs=(vmem, vmem),
    )(emb, jnp.reshape(add_features, (1, -1)).astype(jnp.float32),
      fc1_w, fc2_w1, head_small, head_vecs)

    # TODO(synk): for many-polymer throughput, add a batch grid axis over stacked graphs
    #             instead of calling this wrapper once per polymer.
    return {'IV': iv.reshape(1), 'Tg': tg.reshape(1)}


# ----------------------------------------------------------------------------
# Deterministic parameter initialization (synthetic; matches module __init__ shapes)
# ----------------------------------------------------------------------------
def init_branch_params(key, fin, H):
    ks = jax.random.split(key, 9)
    nrm = lambda k, s, sc: (sc * jax.random.normal(k, s)).astype(jnp.float32)
    return {
        'gat_w': nrm(ks[0], (fin, H), 0.3),
        'gat_asrc': nrm(ks[1], (1, H), 0.3),
        'gat_adst': nrm(ks[2], (1, H), 0.3),
        'gat_b': nrm(ks[3], (1, H), 0.1),
        'bn1_g': jnp.ones((1, H), jnp.float32),
        'bn1_b': jnp.zeros((1, H), jnp.float32),
        'pr1': jnp.full((1, 1), 0.25, jnp.float32),
        'sage_wl': nrm(ks[4], (H, H), 0.2),
        'sage_bl': nrm(ks[5], (1, H), 0.1),
        'sage_wr': nrm(ks[6], (H, H), 0.2),
        'bn2_g': jnp.ones((1, H), jnp.float32),
        'bn2_b': jnp.zeros((1, H), jnp.float32),
        'pr2': jnp.full((1, 1), 0.25, jnp.float32),
        'pool_wrel': nrm(ks[7], (H, 1), 0.3),
        'pool_brel': jnp.zeros((1, 1), jnp.float32),
        'pool_wroot': nrm(ks[8], (H, 1), 0.3),
    }


def init_head_params(key, H, na):
    ks = jax.random.split(key, 12)
    nrm = lambda k, s, sc: (sc * jax.random.normal(k, s)).astype(jnp.float32)
    return {
        'fc1_wa': nrm(ks[0], (H, H), 0.2),
        'fc1_wg': nrm(ks[1], (H, H), 0.2),
        'fc1_wadd': nrm(ks[2], (na, H), 0.2),
        'fc1_b': nrm(ks[3], (1, H), 0.1),
        'pr': jnp.full((1, 1), 0.25, jnp.float32),
        'fc2_w1': nrm(ks[4], (H, H), 0.2),
        'fc2_b1': nrm(ks[5], (1, H), 0.1),
        'fc2_pr': jnp.full((1, 1), 0.25, jnp.float32),
        'fc2_w2': nrm(ks[6], (H, 1), 0.2),
        'fc2_b2': nrm(ks[7], (1, 1), 0.1),
        'fc3_w': nrm(ks[8], (H, 1), 0.2),
        'fc3_b': nrm(ks[9], (1, 1), 0.1),
        'mf_w': nrm(ks[10], (H, 1), 0.2),
        'mf_b': nrm(ks[11], (1, 1), 0.1),
    }


if __name__ == "__main__":
    key = jax.random.PRNGKey(0)
    FIN, H, NUM_ADD = 8, 32, 8       # input_feat, hidden_channels, num_additional
    N_A, N_G = 16, 24                # nodes in the acid / glycol graphs

    k_xa, k_xg, k_add, k_pa, k_pg, k_ph = jax.random.split(key, 6)
    Ax = jax.random.normal(k_xa, (N_A, FIN), jnp.float32)
    Gx = jax.random.normal(k_xg, (N_G, FIN), jnp.float32)
    add_features = jax.random.normal(k_add, (NUM_ADD,), jnp.float32)

    def ring_edges(n):
        i = jnp.arange(n)
        src = jnp.concatenate([i, (i + 1) % n, i])
        dst = jnp.concatenate([(i + 1) % n, i, (i + 3) % n])
        return jnp.stack([src, dst], axis=0).astype(jnp.int32)

    A_edge_index = ring_edges(N_A)   # (2, 3*N_A)
    G_edge_index = ring_edges(N_G)   # (2, 3*N_G)

    Aparams = init_branch_params(k_pa, FIN, H)
    Gparams = init_branch_params(k_pg, FIN, H)
    head_params = init_head_params(k_ph, H, NUM_ADD)

    fwd = jax.jit(polymer_gnn_joint_forward)
    out = fwd(Ax, A_edge_index, Gx, G_edge_index, add_features,
              Aparams, Gparams, head_params)
    jax.block_until_ready(out)
    assert out['IV'].shape == (1,) and out['Tg'].shape == (1,)
    assert bool(jnp.isfinite(out['IV']).all()) and bool(jnp.isfinite(out['Tg']).all())
    print("KERNEL_OK")
</pallas_src>

<mosaic_0001>
module attributes {stable_mosaic.version = 11 : i64} {
  func.func @polymer_head_kernel(%arg0: memref<2x1x32xf32, #tpu.memory_space<vmem>>, %arg1: memref<1x8xf32, #tpu.memory_space<vmem>>, %arg2: memref<72x32xf32, #tpu.memory_space<vmem>>, %arg3: memref<32x32xf32, #tpu.memory_space<vmem>>, %arg4: memref<32x3xf32, #tpu.memory_space<vmem>>, %arg5: memref<5x32xf32, #tpu.memory_space<vmem>>, %arg6: memref<1x1xf32, #tpu.memory_space<vmem>>, %arg7: memref<1x1xf32, #tpu.memory_space<vmem>>) attributes {dimension_semantics = [], scalar_prefetch = 0 : i64, scratch_operands = 0 : i64, tpu.core_type = #tpu.core_type<tc>} {
    %c0 = arith.constant 0 : index
    %c0_0 = arith.constant 0 : index
    %c0_1 = arith.constant 0 : index
    %0 = vector.load %arg0[%c0, %c0_0, %c0_1] : memref<2x1x32xf32, #tpu.memory_space<vmem>>, vector<1x1x32xf32>
    %1 = vector.shape_cast %0 : vector<1x1x32xf32> to vector<1x32xf32>
    %c1 = arith.constant 1 : index
    %c0_2 = arith.constant 0 : index
    %c0_3 = arith.constant 0 : index
    %2 = vector.load %arg0[%c1, %c0_2, %c0_3] : memref<2x1x32xf32, #tpu.memory_space<vmem>>, vector<1x1x32xf32>
    %3 = vector.shape_cast %2 : vector<1x1x32xf32> to vector<1x32xf32>
    %c0_4 = arith.constant 0 : index
    %c0_5 = arith.constant 0 : index
    %4 = vector.load %arg1[%c0_4, %c0_5] : memref<1x8xf32, #tpu.memory_space<vmem>>, vector<1x8xf32>
    %5 = tpu.concatenate %1, %3, %4 in 1 : vector<1x32xf32>, vector<1x32xf32>, vector<1x8xf32> -> vector<1x72xf32>
    %c0_6 = arith.constant 0 : index
    %c0_7 = arith.constant 0 : index
    %6 = vector.load %arg2[%c0_6, %c0_7] : memref<72x32xf32, #tpu.memory_space<vmem>>, vector<72x32xf32>
    %cst = arith.constant dense<0.000000e+00> : vector<1x32xf32>
    %7 = tpu.matmul %5, %6, %cst {dimension_numbers = #tpu.dot_dimension_numbers<[1], [0], [0], [1], [0, 0, 1, 1], [], []>} : vector<1x72xf32>, vector<72x32xf32>, vector<1x32xf32> -> vector<1x32xf32>
    %c0_8 = arith.constant 0 : index
    %c0_9 = arith.constant 0 : index
    %8 = vector.load %arg5[%c0_8, %c0_9] : memref<5x32xf32, #tpu.memory_space<vmem>>, vector<1x32xf32>
    %9 = arith.addf %7, %8 : vector<1x32xf32>
    %c1_10 = arith.constant 1 : index
    %c0_11 = arith.constant 0 : index
    %10 = vector.load %arg5[%c1_10, %c0_11] : memref<5x32xf32, #tpu.memory_space<vmem>>, vector<1x32xf32>
    %cst_12 = arith.constant 0.000000e+00 : f32
    %11 = vector.broadcast %cst_12 : f32 to vector<1x32xf32>
    %12 = arith.cmpf oge, %9, %11 : vector<1x32xf32>
    %13 = arith.mulf %10, %9 : vector<1x32xf32>
    %14 = arith.select %12, %9, %13 : vector<1x32xi1>, vector<1x32xf32>
    %c0_13 = arith.constant 0 : index
    %c0_14 = arith.constant 0 : index
    %15 = vector.load %arg3[%c0_13, %c0_14] : memref<32x32xf32, #tpu.memory_space<vmem>>, vector<32x32xf32>
    %cst_15 = arith.constant dense<0.000000e+00> : vector<1x32xf32>
    %16 = tpu.matmul %14, %15, %cst_15 {dimension_numbers = #tpu.dot_dimension_numbers<[1], [0], [0], [1], [0, 0, 1, 1], [], []>} : vector<1x32xf32>, vector<32x32xf32>, vector<1x32xf32> -> vector<1x32xf32>
    %c2 = arith.constant 2 : index
    %c0_16 = arith.constant 0 : index
    %17 = vector.load %arg5[%c2, %c0_16] : memref<5x32xf32, #tpu.memory_space<vmem>>, vector<1x32xf32>
    %18 = arith.addf %16, %17 : vector<1x32xf32>
    %c3 = arith.constant 3 : index
    %c0_17 = arith.constant 0 : index
    %19 = vector.load %arg5[%c3, %c0_17] : memref<5x32xf32, #tpu.memory_space<vmem>>, vector<1x32xf32>
    %cst_18 = arith.constant 0.000000e+00 : f32
    %20 = vector.broadcast %cst_18 : f32 to vector<1x32xf32>
    %21 = arith.cmpf oge, %18, %20 : vector<1x32xf32>
    %22 = arith.mulf %19, %18 : vector<1x32xf32>
    %23 = arith.select %21, %18, %22 : vector<1x32xi1>, vector<1x32xf32>
    %24 = tpu.concatenate %14, %23 in 0 : vector<1x32xf32>, vector<1x32xf32> -> vector<2x32xf32>
    %c0_19 = arith.constant 0 : index
    %c0_20 = arith.constant 0 : index
    %25 = vector.load %arg4[%c0_19, %c0_20] : memref<32x3xf32, #tpu.memory_space<vmem>>, vector<32x3xf32>
    %cst_21 = arith.constant dense<0.000000e+00> : vector<2x3xf32>
    %26 = tpu.matmul %24, %25, %cst_21 {dimension_numbers = #tpu.dot_dimension_numbers<[1], [0], [0], [1], [0, 0, 1, 1], [], []>} : vector<2x32xf32>, vector<32x3xf32>, vector<2x3xf32> -> vector<2x3xf32>
    %c4 = arith.constant 4 : index
    %c0_22 = arith.constant 0 : index
    %27 = vector.load %arg5[%c4, %c0_22] : memref<5x32xf32, #tpu.memory_space<vmem>>, vector<1x3xf32>
    %28 = vector.broadcast %27 : vector<1x3xf32> to vector<2x3xf32>
    %29 = arith.addf %26, %28 : vector<2x3xf32>
    %30 = vector.extract_strided_slice %29 {offsets = [1, 0], sizes = [1, 1], strides = [1, 1]} : vector<2x3xf32> to vector<1x1xf32>
    %31 = math.exp %30 : vector<1x1xf32>
    %c0_23 = arith.constant 0 : index
    %c0_24 = arith.constant 0 : index
    %32 = vector.load %arg6[%c0_23, %c0_24] : memref<1x1xf32, #tpu.memory_space<vmem>>, vector<1x1xf32>
    tpu.vector_store %arg6[%c0_23, %c0_24], %31 {strides = array<i32>} : memref<1x1xf32, #tpu.memory_space<vmem>>, vector<1x1xf32>,
    %33 = vector.extract_strided_slice %29 {offsets = [0, 1], sizes = [1, 1], strides = [1, 1]} : vector<2x3xf32> to vector<1x1xf32>
    %34 = math.exp %33 : vector<1x1xf32>
    %35 = vector.extract_strided_slice %29 {offsets = [0, 2], sizes = [1, 1], strides = [1, 1]} : vector<2x3xf32> to vector<1x1xf32>
    %36 = math.tanh %35 : vector<1x1xf32>
    %37 = arith.mulf %34, %36 : vector<1x1xf32>
    %c0_25 = arith.constant 0 : index
    %c0_26 = arith.constant 0 : index
    %38 = vector.load %arg7[%c0_25, %c0_26] : memref<1x1xf32, #tpu.memory_space<vmem>>, vector<1x1xf32>
    tpu.vector_store %arg7[%c0_25, %c0_26], %37 {strides = array<i32>} : memref<1x1xf32, #tpu.memory_space<vmem>>, vector<1x1xf32>,
    return
  }
}

module attributes {stable_mosaic.version = 11 : i64} {
  func.func @polymer_branch_kernel(%arg0: i32, %arg1: memref<1x24x8xf32, #tpu.memory_space<vmem>>, %arg2: memref<1x24x24xf32, #tpu.memory_space<vmem>>, %arg3: memref<1x24x1xf32, #tpu.memory_space<vmem>>, %arg4: memref<1x72x32xf32, #tpu.memory_space<vmem>>, %arg5: memref<1x11x32xf32, #tpu.memory_space<vmem>>, %arg6: memref<1x64x1xf32, #tpu.memory_space<vmem>>, %arg7: memref<1x1x32xf32, #tpu.memory_space<vmem>>) attributes {dimension_semantics = [#tpu.dimension_semantics<parallel>], iteration_bounds = array<i64: 2>, scalar_prefetch = 0 : i64, scratch_operands = 0 : i64, tpu.core_type = #tpu.core_type<tc>, window_params = [{transform_indices = @transform_0, window_bounds = array<i64: 1, 24, 8>}, {transform_indices = @transform_1, window_bounds = array<i64: 1, 24, 24>}, {transform_indices = @transform_2, window_bounds = array<i64: 1, 24, 1>}, {transform_indices = @transform_3, window_bounds = array<i64: 1, 72, 32>}, {transform_indices = @transform_4, window_bounds = array<i64: 1, 11, 32>}, {transform_indices = @transform_5, window_bounds = array<i64: 1, 64, 1>}, {transform_indices = @transform_6, window_bounds = array<i64: 1, 1, 32>}]} {
    %c0 = arith.constant 0 : index
    %c0_0 = arith.constant 0 : index
    %c0_1 = arith.constant 0 : index
    %0 = vector.load %arg1[%c0, %c0_0, %c0_1] : memref<1x24x8xf32, #tpu.memory_space<vmem>>, vector<1x24x8xf32>
    %1 = vector.shape_cast %0 : vector<1x24x8xf32> to vector<24x8xf32>
    %c0_2 = arith.constant 0 : index
    %c0_3 = arith.constant 0 : index
    %c0_4 = arith.constant 0 : index
    %2 = vector.load %arg2[%c0_2, %c0_3, %c0_4] : memref<1x24x24xf32, #tpu.memory_space<vmem>>, vector<1x24x24xf32>
    %3 = vector.shape_cast %2 : vector<1x24x24xf32> to vector<24x24xf32>
    %c0_5 = arith.constant 0 : index
    %c0_6 = arith.constant 0 : index
    %c0_7 = arith.constant 0 : index
    %4 = vector.load %arg3[%c0_5, %c0_6, %c0_7] : memref<1x24x1xf32, #tpu.memory_space<vmem>>, vector<1x24x1xf32>
    %5 = vector.shape_cast %4 : vector<1x24x1xf32> to vector<24x1xf32>
    %c0_8 = arith.constant 0 : index
    %c0_9 = arith.constant 0 : index
    %c0_10 = arith.constant 0 : index
    %6 = vector.load %arg4[%c0_8, %c0_9, %c0_10] : memref<1x72x32xf32, #tpu.memory_space<vmem>>, vector<1x8x32xf32>
    %7 = vector.shape_cast %6 : vector<1x8x32xf32> to vector<8x32xf32>
    %c0_11 = arith.constant 0 : index
    %c8 = arith.constant 8 : index
    %c0_12 = arith.constant 0 : index
    %8 = vector.load %arg4[%c0_11, %c8, %c0_12] : memref<1x72x32xf32, #tpu.memory_space<vmem>>, vector<1x64x32xf32>
    %9 = vector.shape_cast %8 : vector<1x64x32xf32> to vector<64x32xf32>
    %c0_13 = arith.constant 0 : index
    %c0_14 = arith.constant 0 : index
    %c0_15 = arith.constant 0 : index
    %10 = vector.load %arg5[%c0_13, %c0_14, %c0_15] : memref<1x11x32xf32, #tpu.memory_space<vmem>>, vector<1x2x32xf32>
    %11 = vector.shape_cast %10 : vector<1x2x32xf32> to vector<2x32xf32>
    %c0_16 = arith.constant 0 : index
    %c2 = arith.constant 2 : index
    %c0_17 = arith.constant 0 : index
    %12 = vector.load %arg5[%c0_16, %c2, %c0_17] : memref<1x11x32xf32, #tpu.memory_space<vmem>>, vector<1x1x32xf32>
    %13 = vector.shape_cast %12 : vector<1x1x32xf32> to vector<1x32xf32>
    %c0_18 = arith.constant 0 : index
    %c3 = arith.constant 3 : index
    %c0_19 = arith.constant 0 : index
    %14 = vector.load %arg5[%c0_18, %c3, %c0_19] : memref<1x11x32xf32, #tpu.memory_space<vmem>>, vector<1x1x32xf32>
    %15 = vector.shape_cast %14 : vector<1x1x32xf32> to vector<1x32xf32>
    %c0_20 = arith.constant 0 : index
    %c4 = arith.constant 4 : index
    %c0_21 = arith.constant 0 : index
    %16 = vector.load %arg5[%c0_20, %c4, %c0_21] : memref<1x11x32xf32, #tpu.memory_space<vmem>>, vector<1x1x32xf32>
    %17 = vector.shape_cast %16 : vector<1x1x32xf32> to vector<1x32xf32>
    %c0_22 = arith.constant 0 : index
    %c5 = arith.constant 5 : index
    %c0_23 = arith.constant 0 : index
    %18 = vector.load %arg5[%c0_22, %c5, %c0_23] : memref<1x11x32xf32, #tpu.memory_space<vmem>>, vector<1x1x32xf32>
    %19 = vector.shape_cast %18 : vector<1x1x32xf32> to vector<1x32xf32>
    %c0_24 = arith.constant 0 : index
    %c6 = arith.constant 6 : index
    %c0_25 = arith.constant 0 : index
    %20 = vector.load %arg5[%c0_24, %c6, %c0_25] : memref<1x11x32xf32, #tpu.memory_space<vmem>>, vector<1x1x32xf32>
    %21 = vector.shape_cast %20 : vector<1x1x32xf32> to vector<1x32xf32>
    %c0_26 = arith.constant 0 : index
    %c7 = arith.constant 7 : index
    %c0_27 = arith.constant 0 : index
    %22 = vector.load %arg5[%c0_26, %c7, %c0_27] : memref<1x11x32xf32, #tpu.memory_space<vmem>>, vector<1x1x32xf32>
    %23 = vector.shape_cast %22 : vector<1x1x32xf32> to vector<1x32xf32>
    %c0_28 = arith.constant 0 : index
    %c8_29 = arith.constant 8 : index
    %c0_30 = arith.constant 0 : index
    %24 = vector.load %arg5[%c0_28, %c8_29, %c0_30] : memref<1x11x32xf32, #tpu.memory_space<vmem>>, vector<1x1x32xf32>
    %25 = vector.shape_cast %24 : vector<1x1x32xf32> to vector<1x32xf32>
    %c0_31 = arith.constant 0 : index
    %c9 = arith.constant 9 : index
    %c0_32 = arith.constant 0 : index
    %26 = vector.load %arg5[%c0_31, %c9, %c0_32] : memref<1x11x32xf32, #tpu.memory_space<vmem>>, vector<1x1x32xf32>
    %27 = vector.shape_cast %26 : vector<1x1x32xf32> to vector<1x32xf32>
    %c0_33 = arith.constant 0 : index
    %c10 = arith.constant 10 : index
    %c0_34 = arith.constant 0 : index
    %28 = vector.load %arg5[%c0_33, %c10, %c0_34] : memref<1x11x32xf32, #tpu.memory_space<vmem>>, vector<1x1x1xf32>
    %29 = vector.shape_cast %28 : vector<1x1x1xf32> to vector<1x1xf32>
    %c0_35 = arith.constant 0 : index
    %c0_36 = arith.constant 0 : index
    %c0_37 = arith.constant 0 : index
    %30 = vector.load %arg6[%c0_35, %c0_36, %c0_37] : memref<1x64x1xf32, #tpu.memory_space<vmem>>, vector<1x64x1xf32>
    %31 = vector.shape_cast %30 : vector<1x64x1xf32> to vector<64x1xf32>
    %32 = tpu.iota {dimensions = array<i32: 0>} : vector<24x24xi32>
    %33 = tpu.iota {dimensions = array<i32: 1>} : vector<24x24xi32>
    %34 = arith.cmpi eq, %32, %33 : vector<24x24xi32>
    %35 = arith.extui %34 : vector<24x24xi1> to vector<24x24xi32>
    %36 = arith.sitofp %35 : vector<24x24xi32> to vector<24x24xf32>
    %cst = arith.constant dense<0.000000e+00> : vector<1xf32>
    %37 = vector.multi_reduction <add>, %5, %cst [0] : vector<24x1xf32> to vector<1xf32>
    %38 = vector.shape_cast %37 : vector<1xf32> to vector<1x1xf32>
    %cst_38 = arith.constant 1.000000e+00 : f32
    %39 = vector.broadcast %cst_38 : f32 to vector<1x1xf32>
    %40 = arith.divf %39, %38 : vector<1x1xf32>
    %cst_39 = arith.constant dense<0.000000e+00> : vector<24x32xf32>
    %41 = tpu.matmul %1, %7, %cst_39 {dimension_numbers = #tpu.dot_dimension_numbers<[1], [0], [0], [1], [0, 0, 1, 1], [], []>} : vector<24x8xf32>, vector<8x32xf32>, vector<24x32xf32> -> vector<24x32xf32>
    %cst_40 = arith.constant dense<0.000000e+00> : vector<24x2xf32>
    %42 = tpu.matmul %41, %11, %cst_40 {dimension_numbers = #tpu.dot_dimension_numbers<[1], [1], [0], [0], [0, 0, 1, 0], [], []>} : vector<24x32xf32>, vector<2x32xf32>, vector<24x2xf32> -> vector<24x2xf32>
    %43 = vector.extract_strided_slice %42 {offsets = [0, 0], sizes = [24, 1], strides = [1, 1]} : vector<24x2xf32> to vector<24x1xf32>
    %44 = vector.extract_strided_slice %42 {offsets = [0, 1], sizes = [24, 1], strides = [1, 1]} : vector<24x2xf32> to vector<24x1xf32>
    %cst_41 = arith.constant 0.000000e+00 : f32
    %45 = vector.broadcast %cst_41 : f32 to vector<24x24xf32>
    %46 = arith.cmpf ogt, %36, %45 : vector<24x24xf32>
    %cst_42 = arith.constant -1.000000e+30 : f32
    %47 = vector.shape_cast %43 : vector<24x1xf32> to vector<24x1xf32>
    %48 = vector.broadcast %47 : vector<24x1xf32> to vector<24x24xf32>
    %49 = vector.broadcast %cst_42 : f32 to vector<24x24xf32>
    %50 = arith.select %46, %48, %49 : vector<24x24xi1>, vector<24x24xf32>
    %cst_43 = arith.constant dense<0xFF800000> : vector<24xf32>
    %51 = vector.multi_reduction <maximumf>, %50, %cst_43 [0] : vector<24x24xf32> to vector<24xf32>
    %52 = vector.shape_cast %51 : vector<24xf32> to vector<1x24xf32>
    %53 = arith.maximumf %3, %36 : vector<24x24xf32>
    %cst_44 = arith.constant 0.000000e+00 : f32
    %54 = vector.broadcast %cst_44 : f32 to vector<24x24xf32>
    %55 = arith.cmpf ogt, %53, %54 : vector<24x24xf32>
    %cst_45 = arith.constant 0.000000e+00 : f32
    %cst_46 = arith.constant -1.000000e+30 : f32
    %56 = vector.broadcast %cst_45 : f32 to vector<24x24xf32>
    %57 = vector.broadcast %cst_46 : f32 to vector<24x24xf32>
    %58 = arith.select %55, %56, %57 : vector<24x24xi1>, vector<24x24xf32>
    %59 = vector.broadcast %44 : vector<24x1xf32> to vector<24x24xf32>
    %60 = vector.broadcast %52 : vector<1x24xf32> to vector<24x24xf32>
    %61 = arith.addf %59, %60 : vector<24x24xf32>
    %cst_47 = arith.constant 0.000000e+00 : f32
    %62 = vector.broadcast %cst_47 : f32 to vector<24x24xf32>
    %63 = arith.cmpf ogt, %61, %62 : vector<24x24xf32>
    %cst_48 = arith.constant 2.000000e-01 : f32
    %64 = vector.broadcast %cst_48 : f32 to vector<24x24xf32>
    %65 = arith.mulf %64, %61 : vector<24x24xf32>
    %66 = arith.select %63, %61, %65 : vector<24x24xi1>, vector<24x24xf32>
    %67 = arith.addf %66, %58 : vector<24x24xf32>
    %cst_49 = arith.constant dense<0xFF800000> : vector<24xf32>
    %68 = vector.multi_reduction <maximumf>, %67, %cst_49 [1] : vector<24x24xf32> to vector<24xf32>
    %69 = vector.shape_cast %68 : vector<24xf32> to vector<24x1xf32>
    %70 = vector.broadcast %69 : vector<24x1xf32> to vector<24x24xf32>
    %71 = arith.subf %67, %70 : vector<24x24xf32>
    %72 = math.exp %71 : vector<24x24xf32>
    %73 = arith.mulf %72, %53 : vector<24x24xf32>
    %cst_50 = arith.constant dense<0.000000e+00> : vector<24xf32>
    %74 = vector.multi_reduction <add>, %73, %cst_50 [1] : vector<24x24xf32> to vector<24xf32>
    %75 = vector.shape_cast %74 : vector<24xf32> to vector<24x1xf32>
    %76 = vector.broadcast %75 : vector<24x1xf32> to vector<24x24xf32>
    %77 = arith.divf %73, %76 : vector<24x24xf32>
    %cst_51 = arith.constant -1.000000e+30 : f32
    %78 = vector.broadcast %cst_51 : f32 to vector<24x32xf32>
    %79 = vector.extract_strided_slice %41 {offsets = [0, 0], sizes = [1, 32], strides = [1, 1]} : vector<24x32xf32> to vector<1x32xf32>
    %80 = vector.extract_strided_slice %58 {offsets = [0, 0], sizes = [24, 1], strides = [1, 1]} : vector<24x24xf32> to vector<24x1xf32>
    %81 = vector.extract_strided_slice %77 {offsets = [0, 0], sizes = [24, 1], strides = [1, 1]} : vector<24x24xf32> to vector<24x1xf32>
    %82 = vector.broadcast %81 : vector<24x1xf32> to vector<24x32xf32>
    %83 = vector.broadcast %79 : vector<1x32xf32> to vector<24x32xf32>
    %84 = arith.mulf %82, %83 : vector<24x32xf32>
    %85 = vector.broadcast %80 : vector<24x1xf32> to vector<24x32xf32>
    %86 = arith.addf %84, %85 : vector<24x32xf32>
    %87 = arith.maximumf %78, %86 : vector<24x32xf32>
    %88 = vector.extract_strided_slice %41 {offsets = [1, 0], sizes = [1, 32], strides = [1, 1]} : vector<24x32xf32> to vector<1x32xf32>
    %89 = vector.extract_strided_slice %58 {offsets = [0, 1], sizes = [24, 1], strides = [1, 1]} : vector<24x24xf32> to vector<24x1xf32>
    %90 = vector.extract_strided_slice %77 {offsets = [0, 1], sizes = [24, 1], strides = [1, 1]} : vector<24x24xf32> to vector<24x1xf32>
    %91 = vector.broadcast %90 : vector<24x1xf32> to vector<24x32xf32>
    %92 = vector.broadcast %88 : vector<1x32xf32> to vector<24x32xf32>
    %93 = arith.mulf %91, %92 : vector<24x32xf32>
    %94 = vector.broadcast %89 : vector<24x1xf32> to vector<24x32xf32>
    %95 = arith.addf %93, %94 : vector<24x32xf32>
    %96 = arith.maximumf %87, %95 : vector<24x32xf32>
    %97 = vector.extract_strided_slice %41 {offsets = [2, 0], sizes = [1, 32], strides = [1, 1]} : vector<24x32xf32> to vector<1x32xf32>
    %98 = vector.extract_strided_slice %58 {offsets = [0, 2], sizes = [24, 1], strides = [1, 1]} : vector<24x24xf32> to vector<24x1xf32>
    %99 = vector.extract_strided_slice %77 {offsets = [0, 2], sizes = [24, 1], strides = [1, 1]} : vector<24x24xf32> to vector<24x1xf32>
    %100 = vector.broadcast %99 : vector<24x1xf32> to vector<24x32xf32>
    %101 = vector.broadcast %97 : vector<1x32xf32> to vector<24x32xf32>
    %102 = arith.mulf %100, %101 : vector<24x32xf32>
    %103 = vector.broadcast %98 : vector<24x1xf32> to vector<24x32xf32>
    %104 = arith.addf %102, %103 : vector<24x32xf32>
    %105 = arith.maximumf %96, %104 : vector<24x32xf32>
    %106 = vector.extract_strided_slice %41 {offsets = [3, 0], sizes = [1, 32], strides = [1, 1]} : vector<24x32xf32> to vector<1x32xf32>
    %107 = vector.extract_strided_slice %58 {offsets = [0, 3], sizes = [24, 1], strides = [1, 1]} : vector<24x24xf32> to vector<24x1xf32>
    %108 = vector.extract_strided_slice %77 {offsets = [0, 3], sizes = [24, 1], strides = [1, 1]} : vector<24x24xf32> to vector<24x1xf32>
    %109 = vector.broadcast %108 : vector<24x1xf32> to vector<24x32xf32>
    %110 = vector.broadcast %106 : vector<1x32xf32> to vector<24x32xf32>
    %111 = arith.mulf %109, %110 : vector<24x32xf32>
    %112 = vector.broadcast %107 : vector<24x1xf32> to vector<24x32xf32>
    %113 = arith.addf %111, %112 : vector<24x32xf32>
    %114 = arith.maximumf %105, %113 : vector<24x32xf32>
    %115 = vector.extract_strided_slice %41 {offsets = [4, 0], sizes = [1, 32], strides = [1, 1]} : vector<24x32xf32> to vector<1x32xf32>
    %116 = vector.extract_strided_slice %58 {offsets = [0, 4], sizes = [24, 1], strides = [1, 1]} : vector<24x24xf32> to vector<24x1xf32>
    %117 = vector.extract_strided_slice %77 {offsets = [0, 4], sizes = [24, 1], strides = [1, 1]} : vector<24x24xf32> to vector<24x1xf32>
    %118 = vector.broadcast %117 : vector<24x1xf32> to vector<24x32xf32>
    %119 = vector.broadcast %115 : vector<1x32xf32> to vector<24x32xf32>
    %120 = arith.mulf %118, %119 : vector<24x32xf32>
    %121 = vector.broadcast %116 : vector<24x1xf32> to vector<24x32xf32>
    %122 = arith.addf %120, %121 : vector<24x32xf32>
    %123 = arith.maximumf %114, %122 : vector<24x32xf32>
    %124 = vector.extract_strided_slice %41 {offsets = [5, 0], sizes = [1, 32], strides = [1, 1]} : vector<24x32xf32> to vector<1x32xf32>
    %125 = vector.extract_strided_slice %58 {offsets = [0, 5], sizes = [24, 1], strides = [1, 1]} : vector<24x24xf32> to vector<24x1xf32>
    %126 = vector.extract_strided_slice %77 {offsets = [0, 5], sizes = [24, 1], strides = [1, 1]} : vector<24x24xf32> to vector<24x1xf32>
    %127 = vector.broadcast %126 : vector<24x1xf32> to vector<24x32xf32>
    %128 = vector.broadcast %124 : vector<1x32xf32> to vector<24x32xf32>
    %129 = arith.mulf %127, %128 : vector<24x32xf32>
    %130 = vector.broadcast %125 : vector<24x1xf32> to vector<24x32xf32>
    %131 = arith.addf %129, %130 : vector<24x32xf32>
    %132 = arith.maximumf %123, %131 : vector<24x32xf32>
    %133 = vector.extract_strided_slice %41 {offsets = [6, 0], sizes = [1, 32], strides = [1, 1]} : vector<24x32xf32> to vector<1x32xf32>
    %134 = vector.extract_strided_slice %58 {offsets = [0, 6], sizes = [24, 1], strides = [1, 1]} : vector<24x24xf32> to vector<24x1xf32>
    %135 = vector.extract_strided_slice %77 {offsets = [0, 6], sizes = [24, 1], strides = [1, 1]} : vector<24x24xf32> to vector<24x1xf32>
    %136 = vector.broadcast %135 : vector<24x1xf32> to vector<24x32xf32>
    %137 = vector.broadcast %133 : vector<1x32xf32> to vector<24x32xf32>
    %138 = arith.mulf %136, %137 : vector<24x32xf32>
    %139 = vector.broadcast %134 : vector<24x1xf32> to vector<24x32xf32>
    %140 = arith.addf %138, %139 : vector<24x32xf32>
    %141 = arith.maximumf %132, %140 : vector<24x32xf32>
    %142 = vector.extract_strided_slice %41 {offsets = [7, 0], sizes = [1, 32], strides = [1, 1]} : vector<24x32xf32> to vector<1x32xf32>
    %143 = vector.extract_strided_slice %58 {offsets = [0, 7], sizes = [24, 1], strides = [1, 1]} : vector<24x24xf32> to vector<24x1xf32>
    %144 = vector.extract_strided_slice %77 {offsets = [0, 7], sizes = [24, 1], strides = [1, 1]} : vector<24x24xf32> to vector<24x1xf32>
    %145 = vector.broadcast %144 : vector<24x1xf32> to vector<24x32xf32>
    %146 = vector.broadcast %142 : vector<1x32xf32> to vector<24x32xf32>
    %147 = arith.mulf %145, %146 : vector<24x32xf32>
    %148 = vector.broadcast %143 : vector<24x1xf32> to vector<24x32xf32>
    %149 = arith.addf %147, %148 : vector<24x32xf32>
    %150 = arith.maximumf %141, %149 : vector<24x32xf32>
    %151 = vector.extract_strided_slice %41 {offsets = [8, 0], sizes = [1, 32], strides = [1, 1]} : vector<24x32xf32> to vector<1x32xf32>
    %152 = vector.extract_strided_slice %58 {offsets = [0, 8], sizes = [24, 1], strides = [1, 1]} : vector<24x24xf32> to vector<24x1xf32>
    %153 = vector.extract_strided_slice %77 {offsets = [0, 8], sizes = [24, 1], strides = [1, 1]} : vector<24x24xf32> to vector<24x1xf32>
    %154 = vector.broadcast %153 : vector<24x1xf32> to vector<24x32xf32>
    %155 = vector.broadcast %151 : vector<1x32xf32> to vector<24x32xf32>
    %156 = arith.mulf %154, %155 : vector<24x32xf32>
    %157 = vector.broadcast %152 : vector<24x1xf32> to vector<24x32xf32>
    %158 = arith.addf %156, %157 : vector<24x32xf32>
    %159 = arith.maximumf %150, %158 : vector<24x32xf32>
    %160 = vector.extract_strided_slice %41 {offsets = [9, 0], sizes = [1, 32], strides = [1, 1]} : vector<24x32xf32> to vector<1x32xf32>
    %161 = vector.extract_strided_slice %58 {offsets = [0, 9], sizes = [24, 1], strides = [1, 1]} : vector<24x24xf32> to vector<24x1xf32>
    %162 = vector.extract_strided_slice %77 {offsets = [0, 9], sizes = [24, 1], strides = [1, 1]} : vector<24x24xf32> to vector<24x1xf32>
    %163 = vector.broadcast %162 : vector<24x1xf32> to vector<24x32xf32>
    %164 = vector.broadcast %160 : vector<1x32xf32> to vector<24x32xf32>
    %165 = arith.mulf %163, %164 : vector<24x32xf32>
    %166 = vector.broadcast %161 : vector<24x1xf32> to vector<24x32xf32>
    %167 = arith.addf %165, %166 : vector<24x32xf32>
    %168 = arith.maximumf %159, %167 : vector<24x32xf32>
    %169 = vector.extract_strided_slice %41 {offsets = [10, 0], sizes = [1, 32], strides = [1, 1]} : vector<24x32xf32> to vector<1x32xf32>
    %170 = vector.extract_strided_slice %58 {offsets = [0, 10], sizes = [24, 1], strides = [1, 1]} : vector<24x24xf32> to vector<24x1xf32>
    %171 = vector.extract_strided_slice %77 {offsets = [0, 10], sizes = [24, 1], strides = [1, 1]} : vector<24x24xf32> to vector<24x1xf32>
    %172 = vector.broadcast %171 : vector<24x1xf32> to vector<24x32xf32>
    %173 = vector.broadcast %169 : vector<1x32xf32> to vector<24x32xf32>
    %174 = arith.mulf %172, %173 : vector<24x32xf32>
    %175 = vector.broadcast %170 : vector<24x1xf32> to vector<24x32xf32>
    %176 = arith.addf %174, %175 : vector<24x32xf32>
    %177 = arith.maximumf %168, %176 : vector<24x32xf32>
    %178 = vector.extract_strided_slice %41 {offsets = [11, 0], sizes = [1, 32], strides = [1, 1]} : vector<24x32xf32> to vector<1x32xf32>
    %179 = vector.extract_strided_slice %58 {offsets = [0, 11], sizes = [24, 1], strides = [1, 1]} : vector<24x24xf32> to vector<24x1xf32>
    %180 = vector.extract_strided_slice %77 {offsets = [0, 11], sizes = [24, 1], strides = [1, 1]} : vector<24x24xf32> to vector<24x1xf32>
    %181 = vector.broadcast %180 : vector<24x1xf32> to vector<24x32xf32>
    %182 = vector.broadcast %178 : vector<1x32xf32> to vector<24x32xf32>
    %183 = arith.mulf %181, %182 : vector<24x32xf32>
    %184 = vector.broadcast %179 : vector<24x1xf32> to vector<24x32xf32>
    %185 = arith.addf %183, %184 : vector<24x32xf32>
    %186 = arith.maximumf %177, %185 : vector<24x32xf32>
    %187 = vector.extract_strided_slice %41 {offsets = [12, 0], sizes = [1, 32], strides = [1, 1]} : vector<24x32xf32> to vector<1x32xf32>
    %188 = vector.extract_strided_slice %58 {offsets = [0, 12], sizes = [24, 1], strides = [1, 1]} : vector<24x24xf32> to vector<24x1xf32>
    %189 = vector.extract_strided_slice %77 {offsets = [0, 12], sizes = [24, 1], strides = [1, 1]} : vector<24x24xf32> to vector<24x1xf32>
    %190 = vector.broadcast %189 : vector<24x1xf32> to vector<24x32xf32>
    %191 = vector.broadcast %187 : vector<1x32xf32> to vector<24x32xf32>
    %192 = arith.mulf %190, %191 : vector<24x32xf32>
    %193 = vector.broadcast %188 : vector<24x1xf32> to vector<24x32xf32>
    %194 = arith.addf %192, %193 : vector<24x32xf32>
    %195 = arith.maximumf %186, %194 : vector<24x32xf32>
    %196 = vector.extract_strided_slice %41 {offsets = [13, 0], sizes = [1, 32], strides = [1, 1]} : vector<24x32xf32> to vector<1x32xf32>
    %197 = vector.extract_strided_slice %58 {offsets = [0, 13], sizes = [24, 1], strides = [1, 1]} : vector<24x24xf32> to vector<24x1xf32>
    %198 = vector.extract_strided_slice %77 {offsets = [0, 13], sizes = [24, 1], strides = [1, 1]} : vector<24x24xf32> to vector<24x1xf32>
    %199 = vector.broadcast %198 : vector<24x1xf32> to vector<24x32xf32>
    %200 = vector.broadcast %196 : vector<1x32xf32> to vector<24x32xf32>
    %201 = arith.mulf %199, %200 : vector<24x32xf32>
    %202 = vector.broadcast %197 : vector<24x1xf32> to vector<24x32xf32>
    %203 = arith.addf %201, %202 : vector<24x32xf32>
    %204 = arith.maximumf %195, %203 : vector<24x32xf32>
    %205 = vector.extract_strided_slice %41 {offsets = [14, 0], sizes = [1, 32], strides = [1, 1]} : vector<24x32xf32> to vector<1x32xf32>
    %206 = vector.extract_strided_slice %58 {offsets = [0, 14], sizes = [24, 1], strides = [1, 1]} : vector<24x24xf32> to vector<24x1xf32>
    %207 = vector.extract_strided_slice %77 {offsets = [0, 14], sizes = [24, 1], strides = [1, 1]} : vector<24x24xf32> to vector<24x1xf32>
    %208 = vector.broadcast %207 : vector<24x1xf32> to vector<24x32xf32>
    %209 = vector.broadcast %205 : vector<1x32xf32> to vector<24x32xf32>
    %210 = arith.mulf %208, %209 : vector<24x32xf32>
    %211 = vector.broadcast %206 : vector<24x1xf32> to vector<24x32xf32>
    %212 = arith.addf %210, %211 : vector<24x32xf32>
    %213 = arith.maximumf %204, %212 : vector<24x32xf32>
    %214 = vector.extract_strided_slice %41 {offsets = [15, 0], sizes = [1, 32], strides = [1, 1]} : vector<24x32xf32> to vector<1x32xf32>
    %215 = vector.extract_strided_slice %58 {offsets = [0, 15], sizes = [24, 1], strides = [1, 1]} : vector<24x24xf32> to vector<24x1xf32>
    %216 = vector.extract_strided_slice %77 {offsets = [0, 15], sizes = [24, 1], strides = [1, 1]} : vector<24x24xf32> to vector<24x1xf32>
    %217 = vector.broadcast %216 : vector<24x1xf32> to vector<24x32xf32>
    %218 = vector.broadcast %214 : vector<1x32xf32> to vector<24x32xf32>
    %219 = arith.mulf %217, %218 : vector<24x32xf32>
    %220 = vector.broadcast %215 : vector<24x1xf32> to vector<24x32xf32>
    %221 = arith.addf %219, %220 : vector<24x32xf32>
    %222 = arith.maximumf %213, %221 : vector<24x32xf32>
    %223 = vector.extract_strided_slice %41 {offsets = [16, 0], sizes = [1, 32], strides = [1, 1]} : vector<24x32xf32> to vector<1x32xf32>
    %224 = vector.extract_strided_slice %58 {offsets = [0, 16], sizes = [24, 1], strides = [1, 1]} : vector<24x24xf32> to vector<24x1xf32>
    %225 = vector.extract_strided_slice %77 {offsets = [0, 16], sizes = [24, 1], strides = [1, 1]} : vector<24x24xf32> to vector<24x1xf32>
    %226 = vector.broadcast %225 : vector<24x1xf32> to vector<24x32xf32>
    %227 = vector.broadcast %223 : vector<1x32xf32> to vector<24x32xf32>
    %228 = arith.mulf %226, %227 : vector<24x32xf32>
    %229 = vector.broadcast %224 : vector<24x1xf32> to vector<24x32xf32>
    %230 = arith.addf %228, %229 : vector<24x32xf32>
    %231 = arith.maximumf %222, %230 : vector<24x32xf32>
    %232 = vector.extract_strided_slice %41 {offsets = [17, 0], sizes = [1, 32], strides = [1, 1]} : vector<24x32xf32> to vector<1x32xf32>
    %233 = vector.extract_strided_slice %58 {offsets = [0, 17], sizes = [24, 1], strides = [1, 1]} : vector<24x24xf32> to vector<24x1xf32>
    %234 = vector.extract_strided_slice %77 {offsets = [0, 17], sizes = [24, 1], strides = [1, 1]} : vector<24x24xf32> to vector<24x1xf32>
    %235 = vector.broadcast %234 : vector<24x1xf32> to vector<24x32xf32>
    %236 = vector.broadcast %232 : vector<1x32xf32> to vector<24x32xf32>
    %237 = arith.mulf %235, %236 : vector<24x32xf32>
    %238 = vector.broadcast %233 : vector<24x1xf32> to vector<24x32xf32>
    %239 = arith.addf %237, %238 : vector<24x32xf32>
    %240 = arith.maximumf %231, %239 : vector<24x32xf32>
    %241 = vector.extract_strided_slice %41 {offsets = [18, 0], sizes = [1, 32], strides = [1, 1]} : vector<24x32xf32> to vector<1x32xf32>
    %242 = vector.extract_strided_slice %58 {offsets = [0, 18], sizes = [24, 1], strides = [1, 1]} : vector<24x24xf32> to vector<24x1xf32>
    %243 = vector.extract_strided_slice %77 {offsets = [0, 18], sizes = [24, 1], strides = [1, 1]} : vector<24x24xf32> to vector<24x1xf32>
    %244 = vector.broadcast %243 : vector<24x1xf32> to vector<24x32xf32>
    %245 = vector.broadcast %241 : vector<1x32xf32> to vector<24x32xf32>
    %246 = arith.mulf %244, %245 : vector<24x32xf32>
    %247 = vector.broadcast %242 : vector<24x1xf32> to vector<24x32xf32>
    %248 = arith.addf %246, %247 : vector<24x32xf32>
    %249 = arith.maximumf %240, %248 : vector<24x32xf32>
    %250 = vector.extract_strided_slice %41 {offsets = [19, 0], sizes = [1, 32], strides = [1, 1]} : vector<24x32xf32> to vector<1x32xf32>
    %251 = vector.extract_strided_slice %58 {offsets = [0, 19], sizes = [24, 1], strides = [1, 1]} : vector<24x24xf32> to vector<24x1xf32>
    %252 = vector.extract_strided_slice %77 {offsets = [0, 19], sizes = [24, 1], strides = [1, 1]} : vector<24x24xf32> to vector<24x1xf32>
    %253 = vector.broadcast %252 : vector<24x1xf32> to vector<24x32xf32>
    %254 = vector.broadcast %250 : vector<1x32xf32> to vector<24x32xf32>
    %255 = arith.mulf %253, %254 : vector<24x32xf32>
    %256 = vector.broadcast %251 : vector<24x1xf32> to vector<24x32xf32>
    %257 = arith.addf %255, %256 : vector<24x32xf32>
    %258 = arith.maximumf %249, %257 : vector<24x32xf32>
    %259 = vector.extract_strided_slice %41 {offsets = [20, 0], sizes = [1, 32], strides = [1, 1]} : vector<24x32xf32> to vector<1x32xf32>
    %260 = vector.extract_strided_slice %58 {offsets = [0, 20], sizes = [24, 1], strides = [1, 1]} : vector<24x24xf32> to vector<24x1xf32>
    %261 = vector.extract_strided_slice %77 {offsets = [0, 20], sizes = [24, 1], strides = [1, 1]} : vector<24x24xf32> to vector<24x1xf32>
    %262 = vector.broadcast %261 : vector<24x1xf32> to vector<24x32xf32>
    %263 = vector.broadcast %259 : vector<1x32xf32> to vector<24x32xf32>
    %264 = arith.mulf %262, %263 : vector<24x32xf32>
    %265 = vector.broadcast %260 : vector<24x1xf32> to vector<24x32xf32>
    %266 = arith.addf %264, %265 : vector<24x32xf32>
    %267 = arith.maximumf %258, %266 : vector<24x32xf32>
    %268 = vector.extract_strided_slice %41 {offsets = [21, 0], sizes = [1, 32], strides = [1, 1]} : vector<24x32xf32> to vector<1x32xf32>
    %269 = vector.extract_strided_slice %58 {offsets = [0, 21], sizes = [24, 1], strides = [1, 1]} : vector<24x24xf32> to vector<24x1xf32>
    %270 = vector.extract_strided_slice %77 {offsets = [0, 21], sizes = [24, 1], strides = [1, 1]} : vector<24x24xf32> to vector<24x1xf32>
    %271 = vector.broadcast %270 : vector<24x1xf32> to vector<24x32xf32>
    %272 = vector.broadcast %268 : vector<1x32xf32> to vector<24x32xf32>
    %273 = arith.mulf %271, %272 : vector<24x32xf32>
    %274 = vector.broadcast %269 : vector<24x1xf32> to vector<24x32xf32>
    %275 = arith.addf %273, %274 : vector<24x32xf32>
    %276 = arith.maximumf %267, %275 : vector<24x32xf32>
    %277 = vector.extract_strided_slice %41 {offsets = [22, 0], sizes = [1, 32], strides = [1, 1]} : vector<24x32xf32> to vector<1x32xf32>
    %278 = vector.extract_strided_slice %58 {offsets = [0, 22], sizes = [24, 1], strides = [1, 1]} : vector<24x24xf32> to vector<24x1xf32>
    %279 = vector.extract_strided_slice %77 {offsets = [0, 22], sizes = [24, 1], strides = [1, 1]} : vector<24x24xf32> to vector<24x1xf32>
    %280 = vector.broadcast %279 : vector<24x1xf32> to vector<24x32xf32>
    %281 = vector.broadcast %277 : vector<1x32xf32> to vector<24x32xf32>
    %282 = arith.mulf %280, %281 : vector<24x32xf32>
    %283 = vector.broadcast %278 : vector<24x1xf32> to vector<24x32xf32>
    %284 = arith.addf %282, %283 : vector<24x32xf32>
    %285 = arith.maximumf %276, %284 : vector<24x32xf32>
    %286 = vector.extract_strided_slice %41 {offsets = [23, 0], sizes = [1, 32], strides = [1, 1]} : vector<24x32xf32> to vector<1x32xf32>
    %287 = vector.extract_strided_slice %58 {offsets = [0, 23], sizes = [24, 1], strides = [1, 1]} : vector<24x24xf32> to vector<24x1xf32>
    %288 = vector.extract_strided_slice %77 {offsets = [0, 23], sizes = [24, 1], strides = [1, 1]} : vector<24x24xf32> to vector<24x1xf32>
    %289 = vector.broadcast %288 : vector<24x1xf32> to vector<24x32xf32>
    %290 = vector.broadcast %286 : vector<1x32xf32> to vector<24x32xf32>
    %291 = arith.mulf %289, %290 : vector<24x32xf32>
    %292 = vector.broadcast %287 : vector<24x1xf32> to vector<24x32xf32>
    %293 = arith.addf %291, %292 : vector<24x32xf32>
    %294 = arith.maximumf %285, %293 : vector<24x32xf32>
    %295 = vector.broadcast %13 : vector<1x32xf32> to vector<24x32xf32>
    %296 = arith.addf %294, %295 : vector<24x32xf32>
    %297 = vector.broadcast %5 : vector<24x1xf32> to vector<24x32xf32>
    %298 = arith.mulf %296, %297 : vector<24x32xf32>
    %cst_52 = arith.constant dense<0.000000e+00> : vector<32xf32>
    %299 = vector.multi_reduction <add>, %298, %cst_52 [0] : vector<24x32xf32> to vector<32xf32>
    %300 = vector.shape_cast %299 : vector<32xf32> to vector<1x32xf32>
    %301 = vector.broadcast %40 : vector<1x1xf32> to vector<1x32xf32>
    %302 = arith.mulf %300, %301 : vector<1x32xf32>
    %303 = vector.broadcast %302 : vector<1x32xf32> to vector<24x32xf32>
    %304 = arith.subf %296, %303 : vector<24x32xf32>
    %305 = arith.mulf %304, %304 : vector<24x32xf32>
    %306 = vector.broadcast %5 : vector<24x1xf32> to vector<24x32xf32>
    %307 = arith.mulf %305, %306 : vector<24x32xf32>
    %cst_53 = arith.constant dense<0.000000e+00> : vector<32xf32>
    %308 = vector.multi_reduction <add>, %307, %cst_53 [0] : vector<24x32xf32> to vector<32xf32>
    %309 = vector.shape_cast %308 : vector<32xf32> to vector<1x32xf32>
    %310 = vector.broadcast %40 : vector<1x1xf32> to vector<1x32xf32>
    %311 = arith.mulf %309, %310 : vector<1x32xf32>
    %cst_54 = arith.constant 9.99999974E-6 : f32
    %312 = vector.broadcast %cst_54 : f32 to vector<1x32xf32>
    %313 = arith.addf %311, %312 : vector<1x32xf32>
    %314 = math.rsqrt %313 : vector<1x32xf32>
    %315 = vector.broadcast %314 : vector<1x32xf32> to vector<24x32xf32>
    %316 = arith.mulf %304, %315 : vector<24x32xf32>
    %317 = vector.broadcast %15 : vector<1x32xf32> to vector<24x32xf32>
    %318 = arith.mulf %316, %317 : vector<24x32xf32>
    %319 = vector.broadcast %17 : vector<1x32xf32> to vector<24x32xf32>
    %320 = arith.addf %318, %319 : vector<24x32xf32>
    %cst_55 = arith.constant 0.000000e+00 : f32
    %321 = vector.broadcast %cst_55 : f32 to vector<24x32xf32>
    %322 = arith.cmpf oge, %320, %321 : vector<24x32xf32>
    %323 = vector.broadcast %19 : vector<1x32xf32> to vector<24x32xf32>
    %324 = arith.mulf %323, %320 : vector<24x32xf32>
    %325 = arith.select %322, %320, %324 : vector<24x32xi1>, vector<24x32xf32>
    %cst_56 = arith.constant 0.000000e+00 : f32
    %326 = vector.broadcast %cst_56 : f32 to vector<24x24xf32>
    %327 = arith.cmpf ogt, %3, %326 : vector<24x24xf32>
    %cst_57 = arith.constant 0.000000e+00 : f32
    %cst_58 = arith.constant -1.000000e+30 : f32
    %328 = vector.broadcast %cst_57 : f32 to vector<24x24xf32>
    %329 = vector.broadcast %cst_58 : f32 to vector<24x24xf32>
    %330 = arith.select %327, %328, %329 : vector<24x24xi1>, vector<24x24xf32>
    %cst_59 = arith.constant -1.000000e+30 : f32
    %331 = vector.broadcast %cst_59 : f32 to vector<24x32xf32>
    %332 = vector.extract_strided_slice %325 {offsets = [0, 0], sizes = [1, 32], strides = [1, 1]} : vector<24x32xf32> to vector<1x32xf32>
    %333 = vector.extract_strided_slice %330 {offsets = [0, 0], sizes = [24, 1], strides = [1, 1]} : vector<24x24xf32> to vector<24x1xf32>
    %334 = vector.broadcast %332 : vector<1x32xf32> to vector<24x32xf32>
    %335 = vector.broadcast %333 : vector<24x1xf32> to vector<24x32xf32>
    %336 = arith.addf %334, %335 : vector<24x32xf32>
    %337 = arith.maximumf %331, %336 : vector<24x32xf32>
    %338 = vector.extract_strided_slice %325 {offsets = [1, 0], sizes = [1, 32], strides = [1, 1]} : vector<24x32xf32> to vector<1x32xf32>
    %339 = vector.extract_strided_slice %330 {offsets = [0, 1], sizes = [24, 1], strides = [1, 1]} : vector<24x24xf32> to vector<24x1xf32>
    %340 = vector.broadcast %338 : vector<1x32xf32> to vector<24x32xf32>
    %341 = vector.broadcast %339 : vector<24x1xf32> to vector<24x32xf32>
    %342 = arith.addf %340, %341 : vector<24x32xf32>
    %343 = arith.maximumf %337, %342 : vector<24x32xf32>
    %344 = vector.extract_strided_slice %325 {offsets = [2, 0], sizes = [1, 32], strides = [1, 1]} : vector<24x32xf32> to vector<1x32xf32>
    %345 = vector.extract_strided_slice %330 {offsets = [0, 2], sizes = [24, 1], strides = [1, 1]} : vector<24x24xf32> to vector<24x1xf32>
    %346 = vector.broadcast %344 : vector<1x32xf32> to vector<24x32xf32>
    %347 = vector.broadcast %345 : vector<24x1xf32> to vector<24x32xf32>
    %348 = arith.addf %346, %347 : vector<24x32xf32>
    %349 = arith.maximumf %343, %348 : vector<24x32xf32>
    %350 = vector.extract_strided_slice %325 {offsets = [3, 0], sizes = [1, 32], strides = [1, 1]} : vector<24x32xf32> to vector<1x32xf32>
    %351 = vector.extract_strided_slice %330 {offsets = [0, 3], sizes = [24, 1], strides = [1, 1]} : vector<24x24xf32> to vector<24x1xf32>
    %352 = vector.broadcast %350 : vector<1x32xf32> to vector<24x32xf32>
    %353 = vector.broadcast %351 : vector<24x1xf32> to vector<24x32xf32>
    %354 = arith.addf %352, %353 : vector<24x32xf32>
    %355 = arith.maximumf %349, %354 : vector<24x32xf32>
    %356 = vector.extract_strided_slice %325 {offsets = [4, 0], sizes = [1, 32], strides = [1, 1]} : vector<24x32xf32> to vector<1x32xf32>
    %357 = vector.extract_strided_slice %330 {offsets = [0, 4], sizes = [24, 1], strides = [1, 1]} : vector<24x24xf32> to vector<24x1xf32>
    %358 = vector.broadcast %356 : vector<1x32xf32> to vector<24x32xf32>
    %359 = vector.broadcast %357 : vector<24x1xf32> to vector<24x32xf32>
    %360 = arith.addf %358, %359 : vector<24x32xf32>
    %361 = arith.maximumf %355, %360 : vector<24x32xf32>
    %362 = vector.extract_strided_slice %325 {offsets = [5, 0], sizes = [1, 32], strides = [1, 1]} : vector<24x32xf32> to vector<1x32xf32>
    %363 = vector.extract_strided_slice %330 {offsets = [0, 5], sizes = [24, 1], strides = [1, 1]} : vector<24x24xf32> to vector<24x1xf32>
    %364 = vector.broadcast %362 : vector<1x32xf32> to vector<24x32xf32>
    %365 = vector.broadcast %363 : vector<24x1xf32> to vector<24x32xf32>
    %366 = arith.addf %364, %365 : vector<24x32xf32>
    %367 = arith.maximumf %361, %366 : vector<24x32xf32>
    %368 = vector.extract_strided_slice %325 {offsets = [6, 0], sizes = [1, 32], strides = [1, 1]} : vector<24x32xf32> to vector<1x32xf32>
    %369 = vector.extract_strided_slice %330 {offsets = [0, 6], sizes = [24, 1], strides = [1, 1]} : vector<24x24xf32> to vector<24x1xf32>
    %370 = vector.broadcast %368 : vector<1x32xf32> to vector<24x32xf32>
    %371 = vector.broadcast %369 : vector<24x1xf32> to vector<24x32xf32>
    %372 = arith.addf %370, %371 : vector<24x32xf32>
    %373 = arith.maximumf %367, %372 : vector<24x32xf32>
    %374 = vector.extract_strided_slice %325 {offsets = [7, 0], sizes = [1, 32], strides = [1, 1]} : vector<24x32xf32> to vector<1x32xf32>
    %375 = vector.extract_strided_slice %330 {offsets = [0, 7], sizes = [24, 1], strides = [1, 1]} : vector<24x24xf32> to vector<24x1xf32>
    %376 = vector.broadcast %374 : vector<1x32xf32> to vector<24x32xf32>
    %377 = vector.broadcast %375 : vector<24x1xf32> to vector<24x32xf32>
    %378 = arith.addf %376, %377 : vector<24x32xf32>
    %379 = arith.maximumf %373, %378 : vector<24x32xf32>
    %380 = vector.extract_strided_slice %325 {offsets = [8, 0], sizes = [1, 32], strides = [1, 1]} : vector<24x32xf32> to vector<1x32xf32>
    %381 = vector.extract_strided_slice %330 {offsets = [0, 8], sizes = [24, 1], strides = [1, 1]} : vector<24x24xf32> to vector<24x1xf32>
    %382 = vector.broadcast %380 : vector<1x32xf32> to vector<24x32xf32>
    %383 = vector.broadcast %381 : vector<24x1xf32> to vector<24x32xf32>
    %384 = arith.addf %382, %383 : vector<24x32xf32>
    %385 = arith.maximumf %379, %384 : vector<24x32xf32>
    %386 = vector.extract_strided_slice %325 {offsets = [9, 0], sizes = [1, 32], strides = [1, 1]} : vector<24x32xf32> to vector<1x32xf32>
    %387 = vector.extract_strided_slice %330 {offsets = [0, 9], sizes = [24, 1], strides = [1, 1]} : vector<24x24xf32> to vector<24x1xf32>
    %388 = vector.broadcast %386 : vector<1x32xf32> to vector<24x32xf32>
    %389 = vector.broadcast %387 : vector<24x1xf32> to vector<24x32xf32>
    %390 = arith.addf %388, %389 : vector<24x32xf32>
    %391 = arith.maximumf %385, %390 : vector<24x32xf32>
    %392 = vector.extract_strided_slice %325 {offsets = [10, 0], sizes = [1, 32], strides = [1, 1]} : vector<24x32xf32> to vector<1x32xf32>
    %393 = vector.extract_strided_slice %330 {offsets = [0, 10], sizes = [24, 1], strides = [1, 1]} : vector<24x24xf32> to vector<24x1xf32>
    %394 = vector.broadcast %392 : vector<1x32xf32> to vector<24x32xf32>
    %395 = vector.broadcast %393 : vector<24x1xf32> to vector<24x32xf32>
    %396 = arith.addf %394, %395 : vector<24x32xf32>
    %397 = arith.maximumf %391, %396 : vector<24x32xf32>
    %398 = vector.extract_strided_slice %325 {offsets = [11, 0], sizes = [1, 32], strides = [1, 1]} : vector<24x32xf32> to vector<1x32xf32>
    %399 = vector.extract_strided_slice %330 {offsets = [0, 11], sizes = [24, 1], strides = [1, 1]} : vector<24x24xf32> to vector<24x1xf32>
    %400 = vector.broadcast %398 : vector<1x32xf32> to vector<24x32xf32>
    %401 = vector.broadcast %399 : vector<24x1xf32> to vector<24x32xf32>
    %402 = arith.addf %400, %401 : vector<24x32xf32>
    %403 = arith.maximumf %397, %402 : vector<24x32xf32>
    %404 = vector.extract_strided_slice %325 {offsets = [12, 0], sizes = [1, 32], strides = [1, 1]} : vector<24x32xf32> to vector<1x32xf32>
    %405 = vector.extract_strided_slice %330 {offsets = [0, 12], sizes = [24, 1], strides = [1, 1]} : vector<24x24xf32> to vector<24x1xf32>
    %406 = vector.broadcast %404 : vector<1x32xf32> to vector<24x32xf32>
    %407 = vector.broadcast %405 : vector<24x1xf32> to vector<24x32xf32>
    %408 = arith.addf %406, %407 : vector<24x32xf32>
    %409 = arith.maximumf %403, %408 : vector<24x32xf32>
    %410 = vector.extract_strided_slice %325 {offsets = [13, 0], sizes = [1, 32], strides = [1, 1]} : vector<24x32xf32> to vector<1x32xf32>
    %411 = vector.extract_strided_slice %330 {offsets = [0, 13], sizes = [24, 1], strides = [1, 1]} : vector<24x24xf32> to vector<24x1xf32>
    %412 = vector.broadcast %410 : vector<1x32xf32> to vector<24x32xf32>
    %413 = vector.broadcast %411 : vector<24x1xf32> to vector<24x32xf32>
    %414 = arith.addf %412, %413 : vector<24x32xf32>
    %415 = arith.maximumf %409, %414 : vector<24x32xf32>
    %416 = vector.extract_strided_slice %325 {offsets = [14, 0], sizes = [1, 32], strides = [1, 1]} : vector<24x32xf32> to vector<1x32xf32>
    %417 = vector.extract_strided_slice %330 {offsets = [0, 14], sizes = [24, 1], strides = [1, 1]} : vector<24x24xf32> to vector<24x1xf32>
    %418 = vector.broadcast %416 : vector<1x32xf32> to vector<24x32xf32>
    %419 = vector.broadcast %417 : vector<24x1xf32> to vector<24x32xf32>
    %420 = arith.addf %418, %419 : vector<24x32xf32>
    %421 = arith.maximumf %415, %420 : vector<24x32xf32>
    %422 = vector.extract_strided_slice %325 {offsets = [15, 0], sizes = [1, 32], strides = [1, 1]} : vector<24x32xf32> to vector<1x32xf32>
    %423 = vector.extract_strided_slice %330 {offsets = [0, 15], sizes = [24, 1], strides = [1, 1]} : vector<24x24xf32> to vector<24x1xf32>
    %424 = vector.broadcast %422 : vector<1x32xf32> to vector<24x32xf32>
    %425 = vector.broadcast %423 : vector<24x1xf32> to vector<24x32xf32>
    %426 = arith.addf %424, %425 : vector<24x32xf32>
    %427 = arith.maximumf %421, %426 : vector<24x32xf32>
    %428 = vector.extract_strided_slice %325 {offsets = [16, 0], sizes = [1, 32], strides = [1, 1]} : vector<24x32xf32> to vector<1x32xf32>
    %429 = vector.extract_strided_slice %330 {offsets = [0, 16], sizes = [24, 1], strides = [1, 1]} : vector<24x24xf32> to vector<24x1xf32>
    %430 = vector.broadcast %428 : vector<1x32xf32> to vector<24x32xf32>
    %431 = vector.broadcast %429 : vector<24x1xf32> to vector<24x32xf32>
    %432 = arith.addf %430, %431 : vector<24x32xf32>
    %433 = arith.maximumf %427, %432 : vector<24x32xf32>
    %434 = vector.extract_strided_slice %325 {offsets = [17, 0], sizes = [1, 32], strides = [1, 1]} : vector<24x32xf32> to vector<1x32xf32>
    %435 = vector.extract_strided_slice %330 {offsets = [0, 17], sizes = [24, 1], strides = [1, 1]} : vector<24x24xf32> to vector<24x1xf32>
    %436 = vector.broadcast %434 : vector<1x32xf32> to vector<24x32xf32>
    %437 = vector.broadcast %435 : vector<24x1xf32> to vector<24x32xf32>
    %438 = arith.addf %436, %437 : vector<24x32xf32>
    %439 = arith.maximumf %433, %438 : vector<24x32xf32>
    %440 = vector.extract_strided_slice %325 {offsets = [18, 0], sizes = [1, 32], strides = [1, 1]} : vector<24x32xf32> to vector<1x32xf32>
    %441 = vector.extract_strided_slice %330 {offsets = [0, 18], sizes = [24, 1], strides = [1, 1]} : vector<24x24xf32> to vector<24x1xf32>
    %442 = vector.broadcast %440 : vector<1x32xf32> to vector<24x32xf32>
    %443 = vector.broadcast %441 : vector<24x1xf32> to vector<24x32xf32>
    %444 = arith.addf %442, %443 : vector<24x32xf32>
    %445 = arith.maximumf %439, %444 : vector<24x32xf32>
    %446 = vector.extract_strided_slice %325 {offsets = [19, 0], sizes = [1, 32], strides = [1, 1]} : vector<24x32xf32> to vector<1x32xf32>
    %447 = vector.extract_strided_slice %330 {offsets = [0, 19], sizes = [24, 1], strides = [1, 1]} : vector<24x24xf32> to vector<24x1xf32>
    %448 = vector.broadcast %446 : vector<1x32xf32> to vector<24x32xf32>
    %449 = vector.broadcast %447 : vector<24x1xf32> to vector<24x32xf32>
    %450 = arith.addf %448, %449 : vector<24x32xf32>
    %451 = arith.maximumf %445, %450 : vector<24x32xf32>
    %452 = vector.extract_strided_slice %325 {offsets = [20, 0], sizes = [1, 32], strides = [1, 1]} : vector<24x32xf32> to vector<1x32xf32>
    %453 = vector.extract_strided_slice %330 {offsets = [0, 20], sizes = [24, 1], strides = [1, 1]} : vector<24x24xf32> to vector<24x1xf32>
    %454 = vector.broadcast %452 : vector<1x32xf32> to vector<24x32xf32>
    %455 = vector.broadcast %453 : vector<24x1xf32> to vector<24x32xf32>
    %456 = arith.addf %454, %455 : vector<24x32xf32>
    %457 = arith.maximumf %451, %456 : vector<24x32xf32>
    %458 = vector.extract_strided_slice %325 {offsets = [21, 0], sizes = [1, 32], strides = [1, 1]} : vector<24x32xf32> to vector<1x32xf32>
    %459 = vector.extract_strided_slice %330 {offsets = [0, 21], sizes = [24, 1], strides = [1, 1]} : vector<24x24xf32> to vector<24x1xf32>
    %460 = vector.broadcast %458 : vector<1x32xf32> to vector<24x32xf32>
    %461 = vector.broadcast %459 : vector<24x1xf32> to vector<24x32xf32>
    %462 = arith.addf %460, %461 : vector<24x32xf32>
    %463 = arith.maximumf %457, %462 : vector<24x32xf32>
    %464 = vector.extract_strided_slice %325 {offsets = [22, 0], sizes = [1, 32], strides = [1, 1]} : vector<24x32xf32> to vector<1x32xf32>
    %465 = vector.extract_strided_slice %330 {offsets = [0, 22], sizes = [24, 1], strides = [1, 1]} : vector<24x24xf32> to vector<24x1xf32>
    %466 = vector.broadcast %464 : vector<1x32xf32> to vector<24x32xf32>
    %467 = vector.broadcast %465 : vector<24x1xf32> to vector<24x32xf32>
    %468 = arith.addf %466, %467 : vector<24x32xf32>
    %469 = arith.maximumf %463, %468 : vector<24x32xf32>
    %470 = vector.extract_strided_slice %325 {offsets = [23, 0], sizes = [1, 32], strides = [1, 1]} : vector<24x32xf32> to vector<1x32xf32>
    %471 = vector.extract_strided_slice %330 {offsets = [0, 23], sizes = [24, 1], strides = [1, 1]} : vector<24x24xf32> to vector<24x1xf32>
    %472 = vector.broadcast %470 : vector<1x32xf32> to vector<24x32xf32>
    %473 = vector.broadcast %471 : vector<24x1xf32> to vector<24x32xf32>
    %474 = arith.addf %472, %473 : vector<24x32xf32>
    %475 = arith.maximumf %469, %474 : vector<24x32xf32>
    %cst_60 = arith.constant dense<0.000000e+00> : vector<24xf32>
    %476 = vector.multi_reduction <add>, %3, %cst_60 [1] : vector<24x24xf32> to vector<24xf32>
    %477 = vector.shape_cast %476 : vector<24xf32> to vector<24x1xf32>
    %cst_61 = arith.constant 0.000000e+00 : f32
    %478 = vector.broadcast %cst_61 : f32 to vector<24x1xf32>
    %479 = arith.cmpf ogt, %477, %478 : vector<24x1xf32>
    %cst_62 = arith.constant 0.000000e+00 : f32
    %480 = vector.shape_cast %479 : vector<24x1xi1> to vector<24x1xi1>
    %481 = vector.broadcast %480 : vector<24x1xi1> to vector<24x32xi1>
    %482 = vector.broadcast %cst_62 : f32 to vector<24x32xf32>
    %483 = arith.select %481, %475, %482 : vector<24x32xi1>, vector<24x32xf32>
    %484 = tpu.concatenate %483, %325 in 1 : vector<24x32xf32>, vector<24x32xf32> -> vector<24x64xf32>
    %cst_63 = arith.constant dense<0.000000e+00> : vector<24x32xf32>
    %485 = tpu.matmul %484, %9, %cst_63 {dimension_numbers = #tpu.dot_dimension_numbers<[1], [0], [0], [1], [0, 0, 1, 1], [], []>} : vector<24x64xf32>, vector<64x32xf32>, vector<24x32xf32> -> vector<24x32xf32>
    %486 = vector.broadcast %21 : vector<1x32xf32> to vector<24x32xf32>
    %487 = arith.addf %485, %486 : vector<24x32xf32>
    %488 = vector.broadcast %5 : vector<24x1xf32> to vector<24x32xf32>
    %489 = arith.mulf %487, %488 : vector<24x32xf32>
    %cst_64 = arith.constant dense<0.000000e+00> : vector<32xf32>
    %490 = vector.multi_reduction <add>, %489, %cst_64 [0] : vector<24x32xf32> to vector<32xf32>
    %491 = vector.shape_cast %490 : vector<32xf32> to vector<1x32xf32>
    %492 = vector.broadcast %40 : vector<1x1xf32> to vector<1x32xf32>
    %493 = arith.mulf %491, %492 : vector<1x32xf32>
    %494 = vector.broadcast %493 : vector<1x32xf32> to vector<24x32xf32>
    %495 = arith.subf %487, %494 : vector<24x32xf32>
    %496 = arith.mulf %495, %495 : vector<24x32xf32>
    %497 = vector.broadcast %5 : vector<24x1xf32> to vector<24x32xf32>
    %498 = arith.mulf %496, %497 : vector<24x32xf32>
    %cst_65 = arith.constant dense<0.000000e+00> : vector<32xf32>
    %499 = vector.multi_reduction <add>, %498, %cst_65 [0] : vector<24x32xf32> to vector<32xf32>
    %500 = vector.shape_cast %499 : vector<32xf32> to vector<1x32xf32>
    %501 = vector.broadcast %40 : vector<1x1xf32> to vector<1x32xf32>
    %502 = arith.mulf %500, %501 : vector<1x32xf32>
    %cst_66 = arith.constant 9.99999974E-6 : f32
    %503 = vector.broadcast %cst_66 : f32 to vector<1x32xf32>
    %504 = arith.addf %502, %503 : vector<1x32xf32>
    %505 = math.rsqrt %504 : vector<1x32xf32>
    %506 = vector.broadcast %505 : vector<1x32xf32> to vector<24x32xf32>
    %507 = arith.mulf %495, %506 : vector<24x32xf32>
    %508 = vector.broadcast %23 : vector<1x32xf32> to vector<24x32xf32>
    %509 = arith.mulf %507, %508 : vector<24x32xf32>
    %510 = vector.broadcast %25 : vector<1x32xf32> to vector<24x32xf32>
    %511 = arith.addf %509, %510 : vector<24x32xf32>
    %cst_67 = arith.constant 0.000000e+00 : f32
    %512 = vector.broadcast %cst_67 : f32 to vector<24x32xf32>
    %513 = arith.cmpf oge, %511, %512 : vector<24x32xf32>
    %514 = vector.broadcast %27 : vector<1x32xf32> to vector<24x32xf32>
    %515 = arith.mulf %514, %511 : vector<24x32xf32>
    %516 = arith.select %513, %511, %515 : vector<24x32xi1>, vector<24x32xf32>
    %cst_68 = arith.constant dense<0.000000e+00> : vector<24x32xf32>
    %517 = tpu.matmul %3, %516, %cst_68 {dimension_numbers = #tpu.dot_dimension_numbers<[1], [0], [0], [1], [0, 0, 1, 1], [], []>} : vector<24x24xf32>, vector<24x32xf32>, vector<24x32xf32> -> vector<24x32xf32>
    %518 = tpu.concatenate %517, %516 in 1 : vector<24x32xf32>, vector<24x32xf32> -> vector<24x64xf32>
    %cst_69 = arith.constant dense<0.000000e+00> : vector<24x1xf32>
    %519 = tpu.matmul %518, %31, %cst_69 {dimension_numbers = #tpu.dot_dimension_numbers<[1], [0], [0], [1], [0, 0, 1, 1], [], []>} : vector<24x64xf32>, vector<64x1xf32>, vector<24x1xf32> -> vector<24x1xf32>
    %520 = vector.broadcast %29 : vector<1x1xf32> to vector<24x1xf32>
    %521 = arith.addf %519, %520 : vector<24x1xf32>
    %cst_70 = arith.constant 0.000000e+00 : f32
    %522 = vector.broadcast %cst_70 : f32 to vector<24x24xf32>
    %523 = arith.cmpf ogt, %36, %522 : vector<24x24xf32>
    %cst_71 = arith.constant -1.000000e+30 : f32
    %524 = vector.shape_cast %521 : vector<24x1xf32> to vector<24x1xf32>
    %525 = vector.broadcast %524 : vector<24x1xf32> to vector<24x24xf32>
    %526 = vector.broadcast %cst_71 : f32 to vector<24x24xf32>
    %527 = arith.select %523, %525, %526 : vector<24x24xi1>, vector<24x24xf32>
    %cst_72 = arith.constant dense<0xFF800000> : vector<24xf32>
    %528 = vector.multi_reduction <maximumf>, %527, %cst_72 [0] : vector<24x24xf32> to vector<24xf32>
    %529 = vector.shape_cast %528 : vector<24xf32> to vector<1x24xf32>
    %cst_73 = arith.constant 0.000000e+00 : f32
    %530 = vector.broadcast %cst_73 : f32 to vector<24x24xf32>
    %531 = arith.cmpf ogt, %36, %530 : vector<24x24xf32>
    %cst_74 = arith.constant 0.000000e+00 : f32
    %532 = vector.shape_cast %5 : vector<24x1xf32> to vector<24x1xf32>
    %533 = vector.broadcast %532 : vector<24x1xf32> to vector<24x24xf32>
    %534 = vector.broadcast %cst_74 : f32 to vector<24x24xf32>
    %535 = arith.select %531, %533, %534 : vector<24x24xi1>, vector<24x24xf32>
    %cst_75 = arith.constant dense<0xFF800000> : vector<24xf32>
    %536 = vector.multi_reduction <maximumf>, %535, %cst_75 [0] : vector<24x24xf32> to vector<24xf32>
    %537 = vector.shape_cast %536 : vector<24xf32> to vector<1x24xf32>
    %538 = vector.broadcast %529 : vector<1x24xf32> to vector<24x24xf32>
    %539 = vector.broadcast %521 : vector<24x1xf32> to vector<24x24xf32>
    %540 = arith.cmpf ogt, %538, %539 : vector<24x24xf32>
    %cst_76 = arith.constant 1.000000e+00 : f32
    %cst_77 = arith.constant 0.000000e+00 : f32
    %541 = vector.broadcast %cst_76 : f32 to vector<24x24xf32>
    %542 = vector.broadcast %cst_77 : f32 to vector<24x24xf32>
    %543 = arith.select %540, %541, %542 : vector<24x24xi1>, vector<24x24xf32>
    %544 = vector.broadcast %537 : vector<1x24xf32> to vector<24x24xf32>
    %545 = arith.mulf %543, %544 : vector<24x24xf32>
    %546 = vector.broadcast %529 : vector<1x24xf32> to vector<24x24xf32>
    %547 = vector.broadcast %521 : vector<24x1xf32> to vector<24x24xf32>
    %548 = arith.cmpf oeq, %546, %547 : vector<24x24xf32>
    %549 = arith.cmpi slt, %33, %32 : vector<24x24xi32>
    %550 = arith.andi %548, %549 : vector<24x24xi1>
    %cst_78 = arith.constant 1.000000e+00 : f32
    %cst_79 = arith.constant 0.000000e+00 : f32
    %551 = vector.broadcast %cst_78 : f32 to vector<24x24xf32>
    %552 = vector.broadcast %cst_79 : f32 to vector<24x24xf32>
    %553 = arith.select %550, %551, %552 : vector<24x24xi1>, vector<24x24xf32>
    %554 = vector.broadcast %537 : vector<1x24xf32> to vector<24x24xf32>
    %555 = arith.mulf %553, %554 : vector<24x24xf32>
    %556 = arith.addf %545, %555 : vector<24x24xf32>
    %cst_80 = arith.constant dense<0.000000e+00> : vector<24xf32>
    %557 = vector.multi_reduction <add>, %556, %cst_80 [1] : vector<24x24xf32> to vector<24xf32>
    %558 = vector.shape_cast %557 : vector<24xf32> to vector<24x1xf32>
    %cst_81 = arith.constant 1.000000e+00 : f32
    %559 = vector.broadcast %cst_81 : f32 to vector<1x1xf32>
    %560 = arith.addf %38, %559 : vector<1x1xf32>
    %cst_82 = arith.constant 5.000000e-01 : f32
    %561 = vector.broadcast %cst_82 : f32 to vector<1x1xf32>
    %562 = arith.mulf %560, %561 : vector<1x1xf32>
    %563 = math.floor %562 : vector<1x1xf32>
    %564 = vector.broadcast %563 : vector<1x1xf32> to vector<24x1xf32>
    %565 = arith.cmpf olt, %558, %564 : vector<24x1xf32>
    %cst_83 = arith.constant 5.000000e-01 : f32
    %566 = vector.broadcast %cst_83 : f32 to vector<24x1xf32>
    %567 = arith.cmpf ogt, %5, %566 : vector<24x1xf32>
    %568 = arith.andi %565, %567 : vector<24x1xi1>
    %569 = math.tanh %521 : vector<24x1xf32>
    %570 = vector.broadcast %569 : vector<24x1xf32> to vector<24x32xf32>
    %571 = arith.mulf %516, %570 : vector<24x32xf32>
    %cst_84 = arith.constant -1.000000e+30 : f32
    %572 = vector.shape_cast %568 : vector<24x1xi1> to vector<24x1xi1>
    %573 = vector.broadcast %572 : vector<24x1xi1> to vector<24x32xi1>
    %574 = vector.broadcast %cst_84 : f32 to vector<24x32xf32>
    %575 = arith.select %573, %571, %574 : vector<24x32xi1>, vector<24x32xf32>
    %cst_85 = arith.constant dense<0xFF800000> : vector<32xf32>
    %576 = vector.multi_reduction <maximumf>, %575, %cst_85 [0] : vector<24x32xf32> to vector<32xf32>
    %577 = vector.shape_cast %576 : vector<32xf32> to vector<1x32xf32>
    %c0_86 = arith.constant 0 : index
    %c0_87 = arith.constant 0 : index
    %c0_88 = arith.constant 0 : index
    %578 = vector.load %arg7[%c0_86, %c0_87, %c0_88] : memref<1x1x32xf32, #tpu.memory_space<vmem>>, vector<1x1x32xf32>
    %579 = vector.shape_cast %578 : vector<1x1x32xf32> to vector<1x32xf32>
    %580 = vector.shape_cast %577 : vector<1x32xf32> to vector<1x1x32xf32>
    tpu.vector_store %arg7[%c0_86, %c0_87, %c0_88], %580 {strides = array<i32>} : memref<1x1x32xf32, #tpu.memory_space<vmem>>, vector<1x1x32xf32>,
    return
  }
  func.func @transform_0(%arg0: i32) -> (i32, i32, i32) {
    %c0_i32 = arith.constant 0 : i32
    %c0_i32_0 = arith.constant 0 : i32
    %c0_i32_1 = arith.constant 0 : i32
    return %arg0, %c0_i32, %c0_i32_0 : i32, i32, i32
  }
  func.func @transform_1(%arg0: i32) -> (i32, i32, i32) {
    %c0_i32 = arith.constant 0 : i32
    %c0_i32_0 = arith.constant 0 : i32
    %c0_i32_1 = arith.constant 0 : i32
    return %arg0, %c0_i32, %c0_i32_0 : i32, i32, i32
  }
  func.func @transform_2(%arg0: i32) -> (i32, i32, i32) {
    %c0_i32 = arith.constant 0 : i32
    %c0_i32_0 = arith.constant 0 : i32
    %c0_i32_1 = arith.constant 0 : i32
    return %arg0, %c0_i32, %c0_i32_0 : i32, i32, i32
  }
  func.func @transform_3(%arg0: i32) -> (i32, i32, i32) {
    %c0_i32 = arith.constant 0 : i32
    %c0_i32_0 = arith.constant 0 : i32
    %c0_i32_1 = arith.constant 0 : i32
    return %arg0, %c0_i32, %c0_i32_0 : i32, i32, i32
  }
  func.func @transform_4(%arg0: i32) -> (i32, i32, i32) {
    %c0_i32 = arith.constant 0 : i32
    %c0_i32_0 = arith.constant 0 : i32
    %c0_i32_1 = arith.constant 0 : i32
    return %arg0, %c0_i32, %c0_i32_0 : i32, i32, i32
  }
  func.func @transform_5(%arg0: i32) -> (i32, i32, i32) {
    %c0_i32 = arith.constant 0 : i32
    %c0_i32_0 = arith.constant 0 : i32
    %c0_i32_1 = arith.constant 0 : i32
    return %arg0, %c0_i32, %c0_i32_0 : i32, i32, i32
  }
  func.func @transform_6(%arg0: i32) -> (i32, i32, i32) {
    %c0_i32 = arith.constant 0 : i32
    %c0_i32_0 = arith.constant 0 : i32
    %c0_i32_1 = arith.constant 0 : i32
    return %arg0, %c0_i32, %c0_i32_0 : i32, i32, i32
  }
}

</mosaic_0001>

<llo_original>
// kernel: polymer_gnn_joint_forward.3
$region0: #{polymer_gnn_joint_forward.3}
  #allocation0 [shape = 'u32[]', space=smem, size = 0x4, offset = 0x4, fixed_abs, tag = 'smem constant byte address 0x4 - core index']
  #allocation1 [shape = 'u32[144,128]{1,0:T(1,128)}', space=vmem, size = 0x12000, scoped, tag = 'internal scratch']
  %s0 = inlined_call_operand.vmem [shape: f32[2,1,32], index: 0, kind: input, shape index: {}]
  %s1 = inlined_call_operand.vmem [shape: f32[1,8], index: 1, kind: input, shape index: {}]
  %s2 = inlined_call_operand.vmem [shape: f32[72,32], index: 2, kind: input, shape index: {}]
  %s3 = inlined_call_operand.vmem [shape: f32[32,32], index: 3, kind: input, shape index: {}]
  %s4 = inlined_call_operand.vmem [shape: f32[32,3], index: 4, kind: input, shape index: {}]
  %s5 = inlined_call_operand.vmem [shape: f32[5,32], index: 5, kind: input, shape index: {}]
  %s6 = inlined_call_operand.hbm [shape: f32[1,1], index: 6, kind: output, shape index: {0}]
  %s7 = inlined_call_operand.hbm [shape: f32[1,1], index: 7, kind: output, shape index: {1}]
  %8 = xla_tuple %s6, %s7
  %s9 = sld [smem:[#allocation0]]
  $region42: #{polymer_gnn_joint_forward.3} parent=0
    _
  %s11 = ssub.s32 1, %s9
  %s12 = scalar_select 0, %s11, %s9
  $region1: #{polymer_gnn_joint_forward.3} parent=0
    #allocation2 [shape = 'u8[512]{0}', space=vmem, size = 0x400, scoped, tag = 'output window, operand 0, single buffered']
    #allocation3 [shape = 's32[1]{0}', space=sflag, size = 0x4, scoped, tag = 'scoped memory for polymer_gnn_joint_forward.3']
    #allocation4 [shape = 'u8[512]{0}', space=vmem, size = 0x400, scoped, tag = 'output window, operand 1, single buffered']
    #allocation5 [shape = 's32[1]{0}', space=sflag, size = 0x4, scoped, tag = 'scoped memory for polymer_gnn_joint_forward.3']
    %13 = vsyncpa [#allocation3], 0
    %14 = vsyncpa [#allocation5], 0
    // Predicated region
    $region2: #{polymer_gnn_joint_forward.3} parent=1 // pred_check
      _
    $region3: #{polymer_gnn_joint_forward.3} parent=1 // pred_check_branch
      %16 = sbr.rel (0) target = $region5
    $region4: #{polymer_gnn_joint_forward.3} parent=1 // pred_region
      _
    $region5: #{polymer_gnn_joint_forward.3} parent=1 // pred_fallthru
      _
    // Predicated region
    $region6: #{polymer_gnn_joint_forward.3} parent=1 // pred_check
      _
    $region7: #{polymer_gnn_joint_forward.3} parent=1 // pred_check_branch
      %18 = sbr.rel (0) target = $region9
    $region8: #{polymer_gnn_joint_forward.3} parent=1 // pred_region
      _
    $region9: #{polymer_gnn_joint_forward.3} parent=1 // pred_fallthru
      _
    // Predicated region
    $region10: #{polymer_gnn_joint_forward.3} parent=1 // pred_check
      _
    $region11: #{polymer_gnn_joint_forward.3} parent=1 // pred_check_branch
      %20 = sbr.rel (0) target = $region13
    $region12: #{polymer_gnn_joint_forward.3} parent=1 // pred_region
      _
    $region13: #{polymer_gnn_joint_forward.3} parent=1 // pred_fallthru
      _
    // Predicated region
    $region14: #{polymer_gnn_joint_forward.3} parent=1 // pred_check
      _
    $region15: #{polymer_gnn_joint_forward.3} parent=1 // pred_check_branch
      %22 = sbr.rel (0) target = $region17
    $region16: #{polymer_gnn_joint_forward.3} parent=1 // pred_region
      _
    $region17: #{polymer_gnn_joint_forward.3} parent=1 // pred_fallthru
      _
    // Predicated region
    $region18: #{polymer_gnn_joint_forward.3} parent=1 // pred_check
      _
    $region19: #{polymer_gnn_joint_forward.3} parent=1 // pred_check_branch
      %24 = sbr.rel (0) target = $region21
    $region20: #{polymer_gnn_joint_forward.3} parent=1 // pred_region
      _
    $region21: #{polymer_gnn_joint_forward.3} parent=1 // pred_fallthru
      _
    // Predicated region
    $region22: #{polymer_gnn_joint_forward.3} parent=1 // pred_check
      _
    $region23: #{polymer_gnn_joint_forward.3} parent=1 // pred_check_branch
      %26 = sbr.rel (0) target = $region25
    $region24: #{polymer_gnn_joint_forward.3} parent=1 // pred_region
      _
    $region25: #{polymer_gnn_joint_forward.3} parent=1 // pred_fallthru
      _
    %v27 = vld [vmem:[%s0] sm:$0x1]
    %s28 = scalar_lea.vmem %s0, 1
    %v29 = vld [vmem:[%s28] sm:$0x1]
    %v30 = vld [vmem:[%s1] sm:$0x1]
    %v32 = vlaneseq
    %v33 = vshrl.u32 %v32, 7
    %v34 = vsub.s32 0, %v33
    %v35 = vrot.slane %v29, %v34
    %36 = vrot.lane.b32.xlu0 %v35, 32
    %v37 = vpop.permute.xlu0 %36
    %v40 = vlaneseq
    %v41 = vshrl.u32 %v40, 7
    %v42 = vsub.s32 0, %v41
    %v43 = vrot.slane %v30, %v42
    %44 = vrot.lane.b32.xlu0 %v43, 64
    %v45 = vpop.permute.xlu0 %44
    %vm47 = vcmask 261120
    %v48 = vsel %vm47, %v27, %v37
    %vm49 = vcmask 523264
    %v50 = vsel %vm49, %v48, %v45
    %v51 = vld [vmem:[%s2] sm:$0xff]
    %v52 = vld [vmem:[%s2 + $0x8] sm:$0xff]
    %v53 = vld [vmem:[%s2 + $0x10] sm:$0xff]
    %v54 = vld [vmem:[%s2 + $0x18] sm:$0xff]
    %v55 = vld [vmem:[%s2 + $0x20] sm:$0xff]
    %v56 = vld [vmem:[%s2 + $0x28] sm:$0xff]
    %v57 = vld [vmem:[%s2 + $0x30] sm:$0xff]
    %v58 = vld [vmem:[%s2 + $0x38] sm:$0xff]
    %v59 = vld [vmem:[%s2 + $0x40] sm:$0xff]
    %v60 = vld [vmem:[%s5] sm:$0x1]
    %vm61 = vcmask 588800
    %v63 = vsel %vm61, %v50, 0
    %65 = vmatprep.subr.mxu0 0.0
    %66 = vmatpush1.msra.mxu0 0.0
    %67 = vmatprep.subr.mxu0 0.0
    %68 = vmatpush1.msra.mxu0 0.0
    %69 = vmatprep.subr.mxu0 0.0
    %70 = vmatpush1.msra.mxu0 0.0
    %71 = vmatprep.subr.mxu0 0.0
    %72 = vmatpush1.msra.mxu0 0.0
    %73 = vmatprep.subr.mxu0 0.0
    %74 = vmatpush1.msra.mxu0 0.0
    %75 = vmatprep.subr.mxu0 0.0
    %76 = vmatpush1.msra.mxu0 0.0
    %77 = vmatprep.subr.mxu0 0.0
    %78 = vmatpush1.msra.mxu0 0.0
    %79 = vmatprep.subr.mxu0 0.0
    %80 = vmatpush1.msra.mxu0 %v59
    %81 = vmatprep.subr.mxu0 0.0
    %82 = vmatpush1.msra.mxu0 %v58
    %83 = vmatprep.subr.mxu0 0.0
    %84 = vmatpush1.msra.mxu0 %v57
    %85 = vmatprep.subr.mxu0 0.0
    %86 = vmatpush1.msra.mxu0 %v56
    %87 = vmatprep.subr.mxu0 0.0
    %88 = vmatpush1.msra.mxu0 %v55
    %89 = vmatprep.subr.mxu0 0.0
    %90 = vmatpush1.msra.mxu0 %v54
    %91 = vmatprep.subr.mxu0 0.0
    %92 = vmatpush1.msra.mxu0 %v53
    %93 = vmatprep.subr.mxu0 0.0
    %94 = vmatpush1.msra.mxu0 %v52
    %95 = vmatprep.subr.mxu0 0.0
    %96 = vmatpush1.msra.mxu0 %v51
    %97 = vmatprep.subr.mxu0 0.0
    %98 = vmatpush2.msra.mxu0 0.0
    %99 = vmatprep.subr.mxu0 0.0
    %100 = vmatpush2.msra.mxu0 0.0
    %101 = vmatprep.subr.mxu0 0.0
    %102 = vmatpush2.msra.mxu0 0.0
    %103 = vmatprep.subr.mxu0 0.0
    %104 = vmatpush2.msra.mxu0 0.0
    %105 = vmatprep.subr.mxu0 0.0
    %106 = vmatpush2.msra.mxu0 0.0
    %107 = vmatprep.subr.mxu0 0.0
    %108 = vmatpush2.msra.mxu0 0.0
    %109 = vmatprep.subr.mxu0 0.0
    %110 = vmatpush2.msra.mxu0 0.0
    %111 = vmatprep.subr.mxu0 0.0
    %112 = vmatpush2.msra.mxu0 0.0
    %113 = vmatprep.subr.mxu0 0.0
    %114 = vmatpush2.msra.mxu0 0.0
    %115 = vmatprep.subr.mxu0 0.0
    %116 = vmatpush2.msra.mxu0 0.0
    %117 = vmatprep.subr.mxu0 0.0
    %118 = vmatpush2.msra.mxu0 0.0
    %119 = vmatprep.subr.mxu0 0.0
    %120 = vmatpush2.msra.mxu0 0.0
    %121 = vmatprep.subr.mxu0 0.0
    %122 = vmatpush2.msra.mxu0 0.0
    %123 = vmatprep.subr.mxu0 0.0
    %124 = vmatpush2.msra.mxu0 0.0
    %125 = vmatprep.subr.mxu0 0.0
    %126 = vmatpush2.msra.mxu0 0.0
    %127 = vmatprep.subr.mxu0 0.0
    %128 = vmatpush2.msra.mxu0 0.0
    %129 = vmatprep.mubr.f32.mxu0 0.0
    %130 = vmatmul.mubr.f32.gmra.mxu0 %v63
    %v131 = vpop.f32.mrf.mxu0
    %v132 = vadd.f32 %v60, %v131
    %v133 = vpop.f32.mrf.mxu0
    %134 = vdwg.mxu0
    %v135 = vld [vmem:[%s5 + $0x1] sm:$0x1]
    %vm136 = vcmp.ge.f32.partialorder %v132, 0.0
    %v137 = vmul.f32 %v135, %v132
    %v138 = vsel %vm136, %v132, %v137
    %v139 = vld [vmem:[%s3] sm:$0xff]
    %v140 = vld [vmem:[%s3 + $0x8] sm:$0xff]
    %v141 = vld [vmem:[%s3 + $0x10] sm:$0xff]
    %v142 = vld [vmem:[%s3 + $0x18] sm:$0xff]
    %v143 = vld [vmem:[%s5 + $0x2] sm:$0x1]
    %v145 = vsel %vm47, %v138, 0
    %147 = vmatprep.subr.mxu0 0.0
    %148 = vmatpush1.msra.mxu0 0.0
    %149 = vmatprep.subr.mxu0 0.0
    %150 = vmatpush1.msra.mxu0 0.0
    %151 = vmatprep.subr.mxu0 0.0
    %152 = vmatpush1.msra.mxu0 0.0
    %153 = vmatprep.subr.mxu0 0.0
    %154 = vmatpush1.msra.mxu0 0.0
    %155 = vmatprep.subr.mxu0 0.0
    %156 = vmatpush1.msra.mxu0 0.0
    %157 = vmatprep.subr.mxu0 0.0
    %158 = vmatpush1.msra.mxu0 0.0
    %159 = vmatprep.subr.mxu0 0.0
    %160 = vmatpush1.msra.mxu0 0.0
    %161 = vmatprep.subr.mxu0 0.0
    %162 = vmatpush1.msra.mxu0 0.0
    %163 = vmatprep.subr.mxu0 0.0
    %164 = vmatpush1.msra.mxu0 0.0
    %165 = vmatprep.subr.mxu0 0.0
    %166 = vmatpush1.msra.mxu0 0.0
    %167 = vmatprep.subr.mxu0 0.0
    %168 = vmatpush1.msra.mxu0 0.0
    %169 = vmatprep.subr.mxu0 0.0
    %170 = vmatpush1.msra.mxu0 0.0
    %171 = vmatprep.subr.mxu0 0.0
    %172 = vmatpush1.msra.mxu0 %v142
    %173 = vmatprep.subr.mxu0 0.0
    %174 = vmatpush1.msra.mxu0 %v141
    %175 = vmatprep.subr.mxu0 0.0
    %176 = vmatpush1.msra.mxu0 %v140
    %177 = vmatprep.subr.mxu0 0.0
    %178 = vmatpush1.msra.mxu0 %v139
    %179 = vmatprep.subr.mxu0 0.0
    %180 = vmatpush2.msra.mxu0 0.0
    %181 = vmatprep.subr.mxu0 0.0
    %182 = vmatpush2.msra.mxu0 0.0
    %183 = vmatprep.subr.mxu0 0.0
    %184 = vmatpush2.msra.mxu0 0.0
    %185 = vmatprep.subr.mxu0 0.0
    %186 = vmatpush2.msra.mxu0 0.0
    %187 = vmatprep.subr.mxu0 0.0
    %188 = vmatpush2.msra.mxu0 0.0
    %189 = vmatprep.subr.mxu0 0.0
    %190 = vmatpush2.msra.mxu0 0.0
    %191 = vmatprep.subr.mxu0 0.0
    %192 = vmatpush2.msra.mxu0 0.0
    %193 = vmatprep.subr.mxu0 0.0
    %194 = vmatpush2.msra.mxu0 0.0
    %195 = vmatprep.subr.mxu0 0.0
    %196 = vmatpush2.msra.mxu0 0.0
    %197 = vmatprep.subr.mxu0 0.0
    %198 = vmatpush2.msra.mxu0 0.0
    %199 = vmatprep.subr.mxu0 0.0
    %200 = vmatpush2.msra.mxu0 0.0
    %201 = vmatprep.subr.mxu0 0.0
    %202 = vmatpush2.msra.mxu0 0.0
    %203 = vmatprep.subr.mxu0 0.0
    %204 = vmatpush2.msra.mxu0 0.0
    %205 = vmatprep.subr.mxu0 0.0
    %206 = vmatpush2.msra.mxu0 0.0
    %207 = vmatprep.subr.mxu0 0.0
    %208 = vmatpush2.msra.mxu0 0.0
    %209 = vmatprep.subr.mxu0 0.0
    %210 = vmatpush2.msra.mxu0 0.0
    %211 = vmatprep.mubr.f32.mxu0 0.0
    %212 = vmatmul.mubr.f32.gmra.mxu0 %v145
    %v213 = vpop.f32.mrf.mxu0
    %v214 = vadd.f32 %v143, %v213
    %v215 = vpop.f32.mrf.mxu0
    %216 = vdwg.mxu0
    %v217 = vld [vmem:[%s5 + $0x3] sm:$0x1]
    %vm218 = vcmp.ge.f32.partialorder %v214, 0.0
    %v219 = vmul.f32 %v217, %v214
    %v220 = vsel %vm218, %v214, %v219
    %v222 = vrot.slane %v220, 7
    %vm224 = vcmask 1040384
    %v225 = vsel %vm224, %v138, %v222
    %v226 = vld [vmem:[%s4] sm:$0xff]
    %v227 = vld [vmem:[%s4 + $0x8] sm:$0xff]
    %v228 = vld [vmem:[%s4 + $0x10] sm:$0xff]
    %v229 = vld [vmem:[%s4 + $0x18] sm:$0xff]
    %v230 = vld [vmem:[%s5 + $0x4] sm:$0x1]
    %v231 = vlaneseq
    %v232 = vshrl.u32 %v231, 7
    %v233 = vsub.s32 0, %v232
    %v234 = vrot.slane %v230, %v233
    %v236 = vsel %vm47, %v225, 0
    %238 = vmatprep.subr.mxu0 0.0
    %239 = vmatpush1.msra.mxu0 0.0
    %240 = vmatprep.subr.mxu0 0.0
    %241 = vmatpush1.msra.mxu0 0.0
    %242 = vmatprep.subr.mxu0 0.0
    %243 = vmatpush1.msra.mxu0 0.0
    %244 = vmatprep.subr.mxu0 0.0
    %245 = vmatpush1.msra.mxu0 0.0
    %246 = vmatprep.subr.mxu0 0.0
    %247 = vmatpush1.msra.mxu0 0.0
    %248 = vmatprep.subr.mxu0 0.0
    %249 = vmatpush1.msra.mxu0 0.0
    %250 = vmatprep.subr.mxu0 0.0
    %251 = vmatpush1.msra.mxu0 0.0
    %252 = vmatprep.subr.mxu0 0.0
    %253 = vmatpush1.msra.mxu0 0.0
    %254 = vmatprep.subr.mxu0 0.0
    %255 = vmatpush1.msra.mxu0 0.0
    %256 = vmatprep.subr.mxu0 0.0
    %257 = vmatpush1.msra.mxu0 0.0
    %258 = vmatprep.subr.mxu0 0.0
    %259 = vmatpush1.msra.mxu0 0.0
    %260 = vmatprep.subr.mxu0 0.0
    %261 = vmatpush1.msra.mxu0 0.0
    %262 = vmatprep.subr.mxu0 0.0
    %263 = vmatpush1.msra.mxu0 %v229
    %264 = vmatprep.subr.mxu0 0.0
    %265 = vmatpush1.msra.mxu0 %v228
    %266 = vmatprep.subr.mxu0 0.0
    %267 = vmatpush1.msra.mxu0 %v227
    %268 = vmatprep.subr.mxu0 0.0
    %269 = vmatpush1.msra.mxu0 %v226
    %270 = vmatprep.subr.mxu0 0.0
    %271 = vmatpush2.msra.mxu0 0.0
    %272 = vmatprep.subr.mxu0 0.0
    %273 = vmatpush2.msra.mxu0 0.0
    %274 = vmatprep.subr.mxu0 0.0
    %275 = vmatpush2.msra.mxu0 0.0
    %276 = vmatprep.subr.mxu0 0.0
    %277 = vmatpush2.msra.mxu0 0.0
    %278 = vmatprep.subr.mxu0 0.0
    %279 = vmatpush2.msra.mxu0 0.0
    %280 = vmatprep.subr.mxu0 0.0
    %281 = vmatpush2.msra.mxu0 0.0
    %282 = vmatprep.subr.mxu0 0.0
    %283 = vmatpush2.msra.mxu0 0.0
    %284 = vmatprep.subr.mxu0 0.0
    %285 = vmatpush2.msra.mxu0 0.0
    %286 = vmatprep.subr.mxu0 0.0
    %287 = vmatpush2.msra.mxu0 0.0
    %288 = vmatprep.subr.mxu0 0.0
    %289 = vmatpush2.msra.mxu0 0.0
    %290 = vmatprep.subr.mxu0 0.0
    %291 = vmatpush2.msra.mxu0 0.0
    %292 = vmatprep.subr.mxu0 0.0
    %293 = vmatpush2.msra.mxu0 0.0
    %294 = vmatprep.subr.mxu0 0.0
    %295 = vmatpush2.msra.mxu0 0.0
    %296 = vmatprep.subr.mxu0 0.0
    %297 = vmatpush2.msra.mxu0 0.0
    %298 = vmatprep.subr.mxu0 0.0
    %299 = vmatpush2.msra.mxu0 0.0
    %300 = vmatprep.subr.mxu0 0.0
    %301 = vmatpush2.msra.mxu0 0.0
    %302 = vmatprep.mubr.f32.mxu0 0.0
    %303 = vmatmul.mubr.f32.gmra.mxu0 %v236
    %v304 = vpop.f32.mrf.mxu0
    %v305 = vadd.f32 %v234, %v304
    %v306 = vpop.f32.mrf.mxu0
    %307 = vdwg.mxu0
    %v308 = vmul.f32 %v305, 1.442695
    %v309 = vpow.pop %v308
    %vm310 = vcmask 1025
    %311 = vst.msk [vmem:[#allocation2 - $0x1] sm:$0x2] %vm310, %v309
    %v312 = vtanh.pop %v305
    %314 = vrot.lane.b32.xlu0 %v312, 127
    %v315 = vpop.permute.xlu0 %314
    %v317 = vmul.f32 %v309, %v315
    %319 = vrot.lane.b32.xlu0 %v317, 127
    %v320 = vpop.permute.xlu0 %319
    %vm322 = vcmask 0
    %323 = vst.msk [vmem:[#allocation4] sm:$0x1] %vm322, %v320
    // Predicated region
    $region26: #{polymer_gnn_joint_forward.3} parent=1 // pred_check
      _
    $region27: #{polymer_gnn_joint_forward.3} parent=1 // pred_check_branch
      %325 = sbr.rel (0) target = $region29
    $region28: #{polymer_gnn_joint_forward.3} parent=1 // pred_region
      %s327 = ssub.s32 16, 16
      %328 = vsyncadd [#allocation3], %s327
      %s330 = sshll.u32 [#allocation2], 4
      %s331 = int_to_ptr.vmem [resolvable:$true] %s330
      %333 = dma.vmem_to_hbm [thread:$0]  %s331, 16, %s6, [#allocation3]
    $region29: #{polymer_gnn_joint_forward.3} parent=1 // pred_fallthru
      _
    // Predicated region
    $region30: #{polymer_gnn_joint_forward.3} parent=1 // pred_check
      _
    $region31: #{polymer_gnn_joint_forward.3} parent=1 // pred_check_branch
      %335 = sbr.rel (0) target = $region33
    $region32: #{polymer_gnn_joint_forward.3} parent=1 // pred_region
      %s337 = ssub.s32 16, 16
      %338 = vsyncadd [#allocation5], %s337
      %s340 = sshll.u32 [#allocation4], 4
      %s341 = int_to_ptr.vmem [resolvable:$true] %s340
      %343 = dma.vmem_to_hbm [thread:$0]  %s341, 16, %s7, [#allocation5]
    $region33: #{polymer_gnn_joint_forward.3} parent=1 // pred_fallthru
      _
    // Predicated region
    $region34: #{polymer_gnn_joint_forward.3} parent=1 // pred_check
      _
    $region35: #{polymer_gnn_joint_forward.3} parent=1 // pred_check_branch
      %345 = sbr.rel (0) target = $region37
    $region36: #{polymer_gnn_joint_forward.3} parent=1 // pred_region
      %346 = dma.done [#allocation3], 16
    $region37: #{polymer_gnn_joint_forward.3} parent=1 // pred_fallthru
      _
    // Predicated region
    $region38: #{polymer_gnn_joint_forward.3} parent=1 // pred_check
      _
    $region39: #{polymer_gnn_joint_forward.3} parent=1 // pred_check_branch
      %348 = sbr.rel (0) target = $region41
    $region40: #{polymer_gnn_joint_forward.3} parent=1 // pred_region
      %349 = dma.done [#allocation5], 16
    $region41: #{polymer_gnn_joint_forward.3} parent=1 // pred_fallthru
      _
    %350 = vsyncpa [#allocation3], 1
    %351 = vsyncpa [#allocation5], 1

// kernel: polymer_gnn_joint_forward.2
$region0: #{polymer_gnn_joint_forward.2}
  #allocation0 [shape = 'u32[]', space=smem, size = 0x4, offset = 0x4, fixed_abs, tag = 'smem constant byte address 0x4 - core index']
  #allocation1 [shape = 'u32[144,128]{1,0:T(1,128)}', space=vmem, size = 0x12000, scoped, tag = 'internal scratch']
  %s0 = inlined_call_operand.vmem [shape: f32[2,24,8], index: 0, kind: input, shape index: {}]
  %s1 = inlined_call_operand.vmem [shape: f32[2,24,24], index: 1, kind: input, shape index: {}]
  %s2 = inlined_call_operand.vmem [shape: f32[2,24,1], index: 2, kind: input, shape index: {}]
  %s3 = inlined_call_operand.vmem [shape: f32[2,72,32], index: 3, kind: input, shape index: {}]
  %s4 = inlined_call_operand.vmem [shape: f32[2,11,32], index: 4, kind: input, shape index: {}]
  %s5 = inlined_call_operand.vmem [shape: f32[2,64,1], index: 5, kind: input, shape index: {}]
  %s6 = inlined_call_operand.vmem [shape: f32[2,1,32], index: 6, kind: output, shape index: {}]
  %s7 = sld [smem:[#allocation0]]
  $region57: #{polymer_gnn_joint_forward.2} parent=0
    _
  %s9 = ssub.s32 1, %s7
  %s10 = scalar_select 0, %s9, %s7
  loop: start=0, step=1, limit=4
  $region2: #{polymer_gnn_joint_forward.2} parent=0 // loop_pre_header
    _
  $region3: #{polymer_gnn_joint_forward.2} parent=0 // loop_header
    %s12 = sphi 0, %s16
    %p13 = scmp.ge.s32.totalorder %s12, 4
    %s22 = sphi 0, %s24
    %s25 = sphi 0, %s22
    %s26 = sphi 0, %s25
    %s42 = sphi 0, %s26
    %s48 = sphi 0, %s50
    %s51 = sphi 0, %s48
    %s52 = sphi 0, %s51
    %s68 = sphi 0, %s52
    %s74 = sphi 0, %s76
    %s77 = sphi 0, %s74
    %s78 = sphi 0, %s77
    %s94 = sphi 0, %s78
    %s100 = sphi 0, %s102
    %s103 = sphi 0, %s100
    %s104 = sphi 0, %s103
    %s120 = sphi 0, %s104
    %s126 = sphi 0, %s128
    %s129 = sphi 0, %s126
    %s130 = sphi 0, %s129
    %s146 = sphi 0, %s130
    %s152 = sphi 0, %s154
    %s155 = sphi 0, %s152
    %s156 = sphi 0, %s155
    %s172 = sphi 0, %s156
    %s178 = sphi 0, %s180
    %s181 = sphi 0, %s178
    %s182 = sphi 0, %s181
    %s198 = sphi 0, %s182
  $region4: #{polymer_gnn_joint_forward.2} parent=0 // loop_header_branch
    %15 = sbr.rel (%p13) target = $region8
  $region5: #{polymer_gnn_joint_forward.2} parent=0 // loop_body
    %s17 = ssub.s32 %s12, 1
    %s18 = ssub.s32 %s12, 2
    %s19 = sadd.s32 %s12, 1
    %s20 = ssub.s32 %s12, %s19
    %p21 = scmp.eq.s32.totalorder %s20, 0
    %s23 = sadd.s32 %s22, 1
    %s24 = scalar_select %p21, %s22, %s23
    %p27 = pneg %p21
    %p28 = scmp.eq.s32.totalorder %s12, 1
    %p29 = por %p27, %p28
    %p30 = scmp.ne.s32.totalorder %s22, %s25
    %p31 = scmp.eq.s32.totalorder %s12, 0
    %p32 = por %p30, %p31
    %p33 = scmp.ne.s32.totalorder %s22, %s25
    %p34 = scmp.eq.s32.totalorder %s17, 1
    %p35 = por %p33, %p34
    %p36 = scmp.ne.s32.totalorder %s25, %s26
    %p37 = scmp.eq.s32.totalorder %s17, 0
    %p38 = por %p36, %p37
    %p39 = scmp.ne.s32.totalorder %s25, %s26
    %p40 = scmp.eq.s32.totalorder %s18, 1
    %p41 = por %p39, %p40
    %p43 = scmp.ne.s32.totalorder %s26, %s42
    %p44 = scmp.eq.s32.totalorder %s18, 0
    %p45 = por %p43, %p44
    %s46 = ssub.s32 %s12, %s19
    %p47 = scmp.eq.s32.totalorder %s46, 0
    %s49 = sadd.s32 %s48, 1
    %s50 = scalar_select %p47, %s48, %s49
    %p53 = pneg %p47
    %p54 = scmp.eq.s32.totalorder %s12, 1
    %p55 = por %p53, %p54
    %p56 = scmp.ne.s32.totalorder %s48, %s51
    %p57 = scmp.eq.s32.totalorder %s12, 0
    %p58 = por %p56, %p57
    %p59 = scmp.ne.s32.totalorder %s48, %s51
    %p60 = scmp.eq.s32.totalorder %s17, 1
    %p61 = por %p59, %p60
    %p62 = scmp.ne.s32.totalorder %s51, %s52
    %p63 = scmp.eq.s32.totalorder %s17, 0
    %p64 = por %p62, %p63
    %p65 = scmp.ne.s32.totalorder %s51, %s52
    %p66 = scmp.eq.s32.totalorder %s18, 1
    %p67 = por %p65, %p66
    %p69 = scmp.ne.s32.totalorder %s52, %s68
    %p70 = scmp.eq.s32.totalorder %s18, 0
    %p71 = por %p69, %p70
    %s72 = ssub.s32 %s12, %s19
    %p73 = scmp.eq.s32.totalorder %s72, 0
    %s75 = sadd.s32 %s74, 1
    %s76 = scalar_select %p73, %s74, %s75
    %p79 = pneg %p73
    %p80 = scmp.eq.s32.totalorder %s12, 1
    %p81 = por %p79, %p80
    %p82 = scmp.ne.s32.totalorder %s74, %s77
    %p83 = scmp.eq.s32.totalorder %s12, 0
    %p84 = por %p82, %p83
    %p85 = scmp.ne.s32.totalorder %s74, %s77
    %p86 = scmp.eq.s32.totalorder %s17, 1
    %p87 = por %p85, %p86
    %p88 = scmp.ne.s32.totalorder %s77, %s78
    %p89 = scmp.eq.s32.totalorder %s17, 0
    %p90 = por %p88, %p89
    %p91 = scmp.ne.s32.totalorder %s77, %s78
    %p92 = scmp.eq.s32.totalorder %s18, 1
    %p93 = por %p91, %p92
    %p95 = scmp.ne.s32.totalorder %s78, %s94
    %p96 = scmp.eq.s32.totalorder %s18, 0
    %p97 = por %p95, %p96
    %s98 = ssub.s32 %s12, %s19
    %p99 = scmp.eq.s32.totalorder %s98, 0
    %s101 = sadd.s32 %s100, 1
    %s102 = scalar_select %p99, %s100, %s101
    %p105 = pneg %p99
    %p106 = scmp.eq.s32.totalorder %s12, 1
    %p107 = por %p105, %p106
    %p108 = scmp.ne.s32.totalorder %s100, %s103
    %p109 = scmp.eq.s32.totalorder %s12, 0
    %p110 = por %p108, %p109
    %p111 = scmp.ne.s32.totalorder %s100, %s103
    %p112 = scmp.eq.s32.totalorder %s17, 1
    %p113 = por %p111, %p112
    %p114 = scmp.ne.s32.totalorder %s103, %s104
    %p115 = scmp.eq.s32.totalorder %s17, 0
    %p116 = por %p114, %p115
    %p117 = scmp.ne.s32.totalorder %s103, %s104
    %p118 = scmp.eq.s32.totalorder %s18, 1
    %p119 = por %p117, %p118
    %p121 = scmp.ne.s32.totalorder %s104, %s120
    %p122 = scmp.eq.s32.totalorder %s18, 0
    %p123 = por %p121, %p122
    %s124 = ssub.s32 %s12, %s19
    %p125 = scmp.eq.s32.totalorder %s124, 0
    %s127 = sadd.s32 %s126, 1
    %s128 = scalar_select %p125, %s126, %s127
    %p131 = pneg %p125
    %p132 = scmp.eq.s32.totalorder %s12, 1
    %p133 = por %p131, %p132
    %p134 = scmp.ne.s32.totalorder %s126, %s129
    %p135 = scmp.eq.s32.totalorder %s12, 0
    %p136 = por %p134, %p135
    %p137 = scmp.ne.s32.totalorder %s126, %s129
    %p138 = scmp.eq.s32.totalorder %s17, 1
    %p139 = por %p137, %p138
    %p140 = scmp.ne.s32.totalorder %s129, %s130
    %p141 = scmp.eq.s32.totalorder %s17, 0
    %p142 = por %p140, %p141
    %p143 = scmp.ne.s32.totalorder %s129, %s130
    %p144 = scmp.eq.s32.totalorder %s18, 1
    %p145 = por %p143, %p144
    %p147 = scmp.ne.s32.totalorder %s130, %s146
    %p148 = scmp.eq.s32.totalorder %s18, 0
    %p149 = por %p147, %p148
    %s150 = ssub.s32 %s12, %s19
    %p151 = scmp.eq.s32.totalorder %s150, 0
    %s153 = sadd.s32 %s152, 1
    %s154 = scalar_select %p151, %s152, %s153
    %p157 = pneg %p151
    %p158 = scmp.eq.s32.totalorder %s12, 1
    %p159 = por %p157, %p158
    %p160 = scmp.ne.s32.totalorder %s152, %s155
    %p161 = scmp.eq.s32.totalorder %s12, 0
    %p162 = por %p160, %p161
    %p163 = scmp.ne.s32.totalorder %s152, %s155
    %p164 = scmp.eq.s32.totalorder %s17, 1
    %p165 = por %p163, %p164
    %p166 = scmp.ne.s32.totalorder %s155, %s156
    %p167 = scmp.eq.s32.totalorder %s17, 0
    %p168 = por %p166, %p167
    %p169 = scmp.ne.s32.totalorder %s155, %s156
    %p170 = scmp.eq.s32.totalorder %s18, 1
    %p171 = por %p169, %p170
    %p173 = scmp.ne.s32.totalorder %s156, %s172
    %p174 = scmp.eq.s32.totalorder %s18, 0
    %p175 = por %p173, %p174
    %s176 = ssub.s32 %s12, %s19
    %p177 = scmp.eq.s32.totalorder %s176, 0
    %s179 = sadd.s32 %s178, 1
    %s180 = scalar_select %p177, %s178, %s179
    %p183 = pneg %p177
    %p184 = scmp.eq.s32.totalorder %s12, 1
    %p185 = por %p183, %p184
    %p186 = scmp.ne.s32.totalorder %s178, %s181
    %p187 = scmp.eq.s32.totalorder %s12, 0
    %p188 = por %p186, %p187
    %p189 = scmp.ne.s32.totalorder %s178, %s181
    %p190 = scmp.eq.s32.totalorder %s17, 1
    %p191 = por %p189, %p190
    %p192 = scmp.ne.s32.totalorder %s181, %s182
    %p193 = scmp.eq.s32.totalorder %s17, 0
    %p194 = por %p192, %p193
    %p195 = scmp.ne.s32.totalorder %s181, %s182
    %p196 = scmp.eq.s32.totalorder %s18, 1
    %p197 = por %p195, %p196
    %p199 = scmp.ne.s32.totalorder %s182, %s198
    %p200 = scmp.eq.s32.totalorder %s18, 0
    %p201 = por %p199, %p200
    %p202 = scmp.le.s32.totalorder 1, %s12
    %p203 = scmp.lt.s32.totalorder %s12, 3
    %p204 = pnand %p202, %p203
    %p205 = pneg %p204
    // Predicated region
    $region9: #{polymer_gnn_joint_forward.2} parent=5 // pred_check
      _
    $region10: #{polymer_gnn_joint_forward.2} parent=5 // pred_check_branch
      %207 = sbr.rel (%p204) target = $region12
    $region11: #{polymer_gnn_joint_forward.2} parent=5 // pred_region
      %s208 = ssub.s32 %s12, 1
    $region12: #{polymer_gnn_joint_forward.2} parent=5 // pred_fallthru
      _
    %p209 = scmp.lt.s32.totalorder %s12, 2
    // Predicated region
    $region13: #{polymer_gnn_joint_forward.2} parent=5 // pred_check
      %p210 = pneg %p209
    $region14: #{polymer_gnn_joint_forward.2} parent=5 // pred_check_branch
      %212 = sbr.rel (%p210) target = $region16
    $region15: #{polymer_gnn_joint_forward.2} parent=5 // pred_region
      // Predicated region
      $region17: #{polymer_gnn_joint_forward.2} parent=15 // pred_check
        %p213 = pneg %p32
      $region18: #{polymer_gnn_joint_forward.2} parent=15 // pred_check_branch
        %215 = sbr.rel (%p213) target = $region20
      $region19: #{polymer_gnn_joint_forward.2} parent=15 // pred_region
        %p216 = scmp.lt.s32.totalorder %s12, 1
        %s217 = scalar_select %p216, %s12, 1
        %s218 = smul.addr %s217, 3
        %s219 = smul.addr %s218, 8
        %s220 = scalar_lea.vmem %s0, %s219
      $region20: #{polymer_gnn_joint_forward.2} parent=15 // pred_fallthru
        _
      // Predicated region
      $region21: #{polymer_gnn_joint_forward.2} parent=15 // pred_check
        %p221 = pneg %p58
      $region22: #{polymer_gnn_joint_forward.2} parent=15 // pred_check_branch
        %223 = sbr.rel (%p221) target = $region24
      $region23: #{polymer_gnn_joint_forward.2} parent=15 // pred_region
        %p224 = scmp.lt.s32.totalorder %s12, 1
        %s225 = scalar_select %p224, %s12, 1
        %s226 = smul.addr %s225, 3
        %s227 = smul.addr %s226, 8
        %s228 = scalar_lea.vmem %s1, %s227
      $region24: #{polymer_gnn_joint_forward.2} parent=15 // pred_fallthru
        _
      // Predicated region
      $region25: #{polymer_gnn_joint_forward.2} parent=15 // pred_check
        %p229 = pneg %p84
      $region26: #{polymer_gnn_joint_forward.2} parent=15 // pred_check_branch
        %231 = sbr.rel (%p229) target = $region28
      $region27: #{polymer_gnn_joint_forward.2} parent=15 // pred_region
        %p232 = scmp.lt.s32.totalorder %s12, 1
        %s233 = scalar_select %p232, %s12, 1
        %s234 = smul.addr %s233, 3
        %s235 = smul.addr %s234, 8
        %s236 = scalar_lea.vmem %s2, %s235
      $region28: #{polymer_gnn_joint_forward.2} parent=15 // pred_fallthru
        _
      // Predicated region
      $region29: #{polymer_gnn_joint_forward.2} parent=15 // pred_check
        %p237 = pneg %p110
      $region30: #{polymer_gnn_joint_forward.2} parent=15 // pred_check_branch
        %239 = sbr.rel (%p237) target = $region32
      $region31: #{polymer_gnn_joint_forward.2} parent=15 // pred_region
        %p240 = scmp.lt.s32.totalorder %s12, 1
        %s241 = scalar_select %p240, %s12, 1
        %s242 = smul.addr %s241, 9
        %s243 = smul.addr %s242, 8
        %s244 = scalar_lea.vmem %s3, %s243
      $region32: #{polymer_gnn_joint_forward.2} parent=15 // pred_fallthru
        _
      // Predicated region
      $region33: #{polymer_gnn_joint_forward.2} parent=15 // pred_check
        %p245 = pneg %p136
      $region34: #{polymer_gnn_joint_forward.2} parent=15 // pred_check_branch
        %247 = sbr.rel (%p245) target = $region36
      $region35: #{polymer_gnn_joint_forward.2} parent=15 // pred_region
        %p248 = scmp.lt.s32.totalorder %s12, 1
        %s249 = scalar_select %p248, %s12, 1
        %s250 = smul.addr %s249, 2
        %s251 = smul.addr %s250, 8
        %s252 = scalar_lea.vmem %s4, %s251
      $region36: #{polymer_gnn_joint_forward.2} parent=15 // pred_fallthru
        _
      // Predicated region
      $region37: #{polymer_gnn_joint_forward.2} parent=15 // pred_check
        %p253 = pneg %p162
      $region38: #{polymer_gnn_joint_forward.2} parent=15 // pred_check_branch
        %255 = sbr.rel (%p253) target = $region40
      $region39: #{polymer_gnn_joint_forward.2} parent=15 // pred_region
        %p256 = scmp.lt.s32.totalorder %s12, 1
        %s257 = scalar_select %p256, %s12, 1
        %s258 = smul.addr %s257, 8
        %s259 = smul.addr %s258, 8
        %s260 = scalar_lea.vmem %s5, %s259
      $region40: #{polymer_gnn_joint_forward.2} parent=15 // pred_fallthru
        _
    $region16: #{polymer_gnn_joint_forward.2} parent=5 // pred_fallthru
      _
    %p261 = scmp.le.s32.totalorder 1, %s12
    %p262 = scmp.lt.s32.totalorder %s12, 3
    %p263 = pnand %p261, %p262
    %p264 = pneg %p263
    // Predicated region
    $region41: #{polymer_gnn_joint_forward.2} parent=5 // pred_check
      _
    $region42: #{polymer_gnn_joint_forward.2} parent=5 // pred_check_branch
      %266 = sbr.rel (%p263) target = $region44
    $region43: #{polymer_gnn_joint_forward.2} parent=5 // pred_region
      %s267 = ssub.s32 %s12, 1
      %p268 = scmp.lt.s32.totalorder %s17, 1
      %s269 = scalar_select %p268, %s17, 1
      %s270 = smul.addr %s269, 3
      %s271 = smul.addr %s270, 8
      %s272 = scalar_lea.vmem %s0, %s271
      %p273 = pneg %p38
      %p274 = pneg %p35
      %p275 = scmp.lt.s32.totalorder %s17, 1
      %s276 = scalar_select %p275, %s17, 1
      %s277 = smul.addr %s276, 3
      %s278 = smul.addr %s277, 8
      %s279 = scalar_lea.vmem %s1, %s278
      %p280 = pneg %p64
      %p281 = pneg %p61
      %p282 = scmp.lt.s32.totalorder %s17, 1
      %s283 = scalar_select %p282, %s17, 1
      %s284 = smul.addr %s283, 3
      %s285 = smul.addr %s284, 8
      %s286 = scalar_lea.vmem %s2, %s285
      %p287 = pneg %p90
      %p288 = pneg %p87
      %p289 = scmp.lt.s32.totalorder %s17, 1
      %s290 = scalar_select %p289, %s17, 1
      %s291 = smul.addr %s290, 9
      %s292 = smul.addr %s291, 8
      %s293 = scalar_lea.vmem %s3, %s292
      %p294 = pneg %p116
      %p295 = pneg %p113
      %p296 = scmp.lt.s32.totalorder %s17, 1
      %s297 = scalar_select %p296, %s17, 1
      %s298 = smul.addr %s297, 2
      %s299 = smul.addr %s298, 8
      %s300 = scalar_lea.vmem %s4, %s299
      %p301 = pneg %p142
      %p302 = pneg %p139
      %p303 = scmp.lt.s32.totalorder %s17, 1
      %s304 = scalar_select %p303, %s17, 1
      %s305 = smul.addr %s304, 8
      %s306 = smul.addr %s305, 8
      %s307 = scalar_lea.vmem %s5, %s306
      %p308 = pneg %p168
      %p309 = pneg %p165
      %p310 = pneg %p194
      %p311 = pneg %p191
      %p312 = scmp.lt.s32.totalorder %s17, 1
      %s313 = scalar_select %p312, %s17, 1
      %s314 = scalar_lea.vmem %s6, %s313
      %p315 = scmp.lt.s32.totalorder %s17, 1
      %s316 = scalar_select %p315, %s17, 1
      %s317 = smul.addr %s316, 3
      %s318 = smul.addr %s317, 8
      %s319 = scalar_lea.vmem %s0, %s318
      %p320 = scmp.lt.s32.totalorder %s17, 1
      %s321 = scalar_select %p320, %s17, 1
      %s322 = smul.addr %s321, 3
      %s323 = smul.addr %s322, 8
      %s324 = scalar_lea.vmem %s1, %s323
      %p325 = scmp.lt.s32.totalorder %s17, 1
      %s326 = scalar_select %p325, %s17, 1
      %s327 = smul.addr %s326, 3
      %s328 = smul.addr %s327, 8
      %s329 = scalar_lea.vmem %s2, %s328
      %p330 = scmp.lt.s32.totalorder %s17, 1
      %s331 = scalar_select %p330, %s17, 1
      %s332 = smul.addr %s331, 9
      %s333 = smul.addr %s332, 8
      %s334 = scalar_lea.vmem %s3, %s333
      %p335 = scmp.lt.s32.totalorder %s17, 1
      %s336 = scalar_select %p335, %s17, 1
      %s337 = smul.addr %s336, 2
      %s338 = smul.addr %s337, 8
      %s339 = scalar_lea.vmem %s4, %s338
      %p340 = scmp.lt.s32.totalorder %s17, 1
      %s341 = scalar_select %p340, %s17, 1
      %s342 = smul.addr %s341, 8
      %s343 = smul.addr %s342, 8
      %s344 = scalar_lea.vmem %s5, %s343
      %p345 = scmp.lt.s32.totalorder %s17, 1
      %s346 = scalar_select %p345, %s17, 1
      %s347 = scalar_lea.vmem %s6, %s346
      %v348 = vld [vmem:[%s319] sm:$0xff]
      %v349 = vld [vmem:[%s319 + $0x8] sm:$0xff]
      %v350 = vld [vmem:[%s319 + $0x10] sm:$0xff]
      %v351 = vld [vmem:[%s324] sm:$0xff]
      %v352 = vld [vmem:[%s324 + $0x8] sm:$0xff]
      %v353 = vld [vmem:[%s324 + $0x10] sm:$0xff]
      %v354 = vld [vmem:[%s329] sm:$0xff]
      %v355 = vld [vmem:[%s329 + $0x8] sm:$0xff]
      %v356 = vld [vmem:[%s329 + $0x10] sm:$0xff]
      %v357 = vld [vmem:[%s334] sm:$0xff]
      %v358 = vld [vmem:[%s334 + $0x8] sm:$0xff]
      %v359 = vld [vmem:[%s334 + $0x10] sm:$0xff]
      %v360 = vld [vmem:[%s334 + $0x18] sm:$0xff]
      %v361 = vld [vmem:[%s334 + $0x20] sm:$0xff]
      %v362 = vld [vmem:[%s334 + $0x28] sm:$0xff]
      %v363 = vld [vmem:[%s334 + $0x30] sm:$0xff]
      %v364 = vld [vmem:[%s334 + $0x38] sm:$0xff]
      %v365 = vld [vmem:[%s334 + $0x40] sm:$0xff]
      %v366 = vld [vmem:[%s339] sm:$0x3]
      %v367 = vld [vmem:[%s339 + $0x2] sm:$0x1]
      %v368 = vld [vmem:[%s339 + $0x3] sm:$0x1]
      %v369 = vld [vmem:[%s339 + $0x4] sm:$0x1]
      %v370 = vld [vmem:[%s339 + $0x5] sm:$0x1]
      %v371 = vld [vmem:[%s339 + $0x6] sm:$0x1]
      %v372 = vld [vmem:[%s339 + $0x7] sm:$0x1]
      %v373 = vld [vmem:[%s339 + $0x8] sm:$0x1]
      %v374 = vld [vmem:[%s339 + $0x9] sm:$0x1]
      %v375 = vld [vmem:[%s339 + $0xa] sm:$0x1]
      %v376 = vld [vmem:[%s344] sm:$0xff]
      %v377 = vld [vmem:[%s344 + $0x8] sm:$0xff]
      %v378 = vld [vmem:[%s344 + $0x10] sm:$0xff]
      %v379 = vld [vmem:[%s344 + $0x18] sm:$0xff]
      %v380 = vld [vmem:[%s344 + $0x20] sm:$0xff]
      %v381 = vld [vmem:[%s344 + $0x28] sm:$0xff]
      %v382 = vld [vmem:[%s344 + $0x30] sm:$0xff]
      %v383 = vld [vmem:[%s344 + $0x38] sm:$0xff]
      %v384 = vlaneseq
      %v385 = vshrl.u32 %v384, 7
      %v386 = vadd.s32 %v385, 8
      %v387 = vadd.s32 %v385, 16
      %v388 = vlaneseq
      %v389 = vand.u32 %v388, 127
      %vm390 = vcmp.eq.s32.totalorder %v385, %v389
      %vm391 = vcmp.eq.s32.totalorder %v386, %v389
      %vm392 = vcmp.eq.s32.totalorder %v387, %v389
      %v393 = vsel %vm390, 1, 0
      %v394 = vsel %vm391, 1, 0
      %v395 = vsel %vm392, 1, 0
      %v396 = vcvt.s32.f32 %v393
      %v397 = vcvt.s32.f32 %v394
      %v398 = vcvt.s32.f32 %v395
      %vm399 = vcmask 7168
      %v400 = vsel %vm399, %v354, 0.0
      %v401 = vsel %vm399, %v355, 0.0
      %v402 = vadd.f32 %v400, %v401
      %v403 = vsel %vm399, %v356, 0.0
      %v404 = vadd.f32 %v402, %v403
      %v405 = vrot.slane %v404, 4
      %v406 = vadd.f32 %v404, %v405
      %v407 = vrot.slane %v406, 2
      %v408 = vadd.f32 %v406, %v407
      %v409 = vrot.slane %v408, 1
      %v410 = vadd.f32 %v408, %v409
      %v411 = vrcp.pop %v410
      %v412 = vmul.f32 1.0, %v411
      %vm413 = vcmask 64512
      %v415 = vsel %vm413, %v348, 0
      %v418 = vsel %vm413, %v349, 0
      %v421 = vsel %vm413, %v350, 0
      %423 = vmatprep.subr.mxu0 0.0
      %424 = vmatpush1.msra.mxu0 0.0
      %425 = vmatprep.subr.mxu0 0.0
      %426 = vmatpush1.msra.mxu0 0.0
      %427 = vmatprep.subr.mxu0 0.0
      %428 = vmatpush1.msra.mxu0 0.0
      %429 = vmatprep.subr.mxu0 0.0
      %430 = vmatpush1.msra.mxu0 0.0
      %431 = vmatprep.subr.mxu0 0.0
      %432 = vmatpush1.msra.mxu0 0.0
      %433 = vmatprep.subr.mxu0 0.0
      %434 = vmatpush1.msra.mxu0 0.0
      %435 = vmatprep.subr.mxu0 0.0
      %436 = vmatpush1.msra.mxu0 0.0
      %437 = vmatprep.subr.mxu0 0.0
      %438 = vmatpush1.msra.mxu0 0.0
      %439 = vmatprep.subr.mxu0 0.0
      %440 = vmatpush1.msra.mxu0 0.0
      %441 = vmatprep.subr.mxu0 0.0
      %442 = vmatpush1.msra.mxu0 0.0
      %443 = vmatprep.subr.mxu0 0.0
      %444 = vmatpush1.msra.mxu0 0.0
      %445 = vmatprep.subr.mxu0 0.0
      %446 = vmatpush1.msra.mxu0 0.0
      %447 = vmatprep.subr.mxu0 0.0
      %448 = vmatpush1.msra.mxu0 0.0
      %449 = vmatprep.subr.mxu0 0.0
      %450 = vmatpush1.msra.mxu0 0.0
      %451 = vmatprep.subr.mxu0 0.0
      %452 = vmatpush1.msra.mxu0 0.0
      %453 = vmatprep.subr.mxu0 0.0
      %454 = vmatpush1.msra.mxu0 %v357
      %455 = vmatprep.subr.mxu0 0.0
      %456 = vmatpush2.msra.mxu0 0.0
      %457 = vmatprep.subr.mxu0 0.0
      %458 = vmatpush2.msra.mxu0 0.0
      %459 = vmatprep.subr.mxu0 0.0
      %460 = vmatpush2.msra.mxu0 0.0
      %461 = vmatprep.subr.mxu0 0.0
      %462 = vmatpush2.msra.mxu0 0.0
      %463 = vmatprep.subr.mxu0 0.0
      %464 = vmatpush2.msra.mxu0 0.0
      %465 = vmatprep.subr.mxu0 0.0
      %466 = vmatpush2.msra.mxu0 0.0
      %467 = vmatprep.subr.mxu0 0.0
      %468 = vmatpush2.msra.mxu0 0.0
      %469 = vmatprep.subr.mxu0 0.0
      %470 = vmatpush2.msra.mxu0 0.0
      %471 = vmatprep.subr.mxu0 0.0
      %472 = vmatpush2.msra.mxu0 0.0
      %473 = vmatprep.subr.mxu0 0.0
      %474 = vmatpush2.msra.mxu0 0.0
      %475 = vmatprep.subr.mxu0 0.0
      %476 = vmatpush2.msra.mxu0 0.0
      %477 = vmatprep.subr.mxu0 0.0
      %478 = vmatpush2.msra.mxu0 0.0
      %479 = vmatprep.subr.mxu0 0.0
      %480 = vmatpush2.msra.mxu0 0.0
      %481 = vmatprep.subr.mxu0 0.0
      %482 = vmatpush2.msra.mxu0 0.0
      %483 = vmatprep.subr.mxu0 0.0
      %484 = vmatpush2.msra.mxu0 0.0
      %485 = vmatprep.subr.mxu0 0.0
      %486 = vmatpush2.msra.mxu0 0.0
      %487 = vmatprep.mubr.f32.mxu0 0.0
      %488 = vmatmul.mubr.f32.gmra.mxu0 %v415
      %v489 = vpop.f32.mrf.mxu0
      %v490 = vadd.f32 0.0, %v489
      %v491 = vpop.f32.mrf.mxu0
      %492 = vmatprep.mubr.f32.mxu0 0.0
      %493 = vmatmul.mubr.f32.gmra.mxu0 %v418
      %v494 = vpop.f32.mrf.mxu0
      %v495 = vadd.f32 0.0, %v494
      %v496 = vpop.f32.mrf.mxu0
      %497 = vmatprep.mubr.f32.mxu0 0.0
      %498 = vmatmul.mubr.f32.gmra.mxu0 %v421
      %v499 = vpop.f32.mrf.mxu0
      %v500 = vadd.f32 0.0, %v499
      %v501 = vpop.f32.mrf.mxu0
      %502 = vdwg.mxu0
      %vm503 = vcmask 261120
      %v505 = vsel %vm503, %v490, 0
      %v508 = vsel %vm503, %v495, 0
      %v511 = vsel %vm503, %v500, 0
      %v514 = vsel %vm503, %v366, 0
      %516 = vmatprep.subr.mxu0 0.0
      %517 = vmatpush1.xpose.msra.mxu0 0.0
      %518 = vmatprep.subr.mxu0 0.0
      %519 = vmatpush1.xpose.msra.mxu0 0.0
      %520 = vmatprep.subr.mxu0 0.0
      %521 = vmatpush1.xpose.msra.mxu0 0.0
      %522 = vmatprep.subr.mxu0 0.0
      %523 = vmatpush1.xpose.msra.mxu0 0.0
      %524 = vmatprep.subr.mxu0 0.0
      %525 = vmatpush1.xpose.msra.mxu0 0.0
      %526 = vmatprep.subr.mxu0 0.0
      %527 = vmatpush1.xpose.msra.mxu0 0.0
      %528 = vmatprep.subr.mxu0 0.0
      %529 = vmatpush1.xpose.msra.mxu0 0.0
      %530 = vmatprep.subr.mxu0 0.0
      %531 = vmatpush1.xpose.msra.mxu0 0.0
      %532 = vmatprep.subr.mxu0 0.0
      %533 = vmatpush1.xpose.msra.mxu0 0.0
      %534 = vmatprep.subr.mxu0 0.0
      %535 = vmatpush1.xpose.msra.mxu0 0.0
      %536 = vmatprep.subr.mxu0 0.0
      %537 = vmatpush1.xpose.msra.mxu0 0.0
      %538 = vmatprep.subr.mxu0 0.0
      %539 = vmatpush1.xpose.msra.mxu0 0.0
      %540 = vmatprep.subr.mxu0 0.0
      %541 = vmatpush1.xpose.msra.mxu0 0.0
      %542 = vmatprep.subr.mxu0 0.0
      %543 = vmatpush1.xpose.msra.mxu0 0.0
      %544 = vmatprep.subr.mxu0 0.0
      %545 = vmatpush1.xpose.msra.mxu0 0.0
      %546 = vmatprep.subr.mxu0 0.0
      %547 = vmatpush1.xpose.msra.mxu0 %v514
      %548 = vmatprep.subr.mxu0 0.0
      %549 = vmatpush2.xpose.msra.mxu0 0.0
      %550 = vmatprep.subr.mxu0 0.0
      %551 = vmatpush2.xpose.msra.mxu0 0.0
      %552 = vmatprep.subr.mxu0 0.0
      %553 = vmatpush2.xpose.msra.mxu0 0.0
      %554 = vmatprep.subr.mxu0 0.0
      %555 = vmatpush2.xpose.msra.mxu0 0.0
      %556 = vmatprep.subr.mxu0 0.0
      %557 = vmatpush2.xpose.msra.mxu0 0.0
      %558 = vmatprep.subr.mxu0 0.0
      %559 = vmatpush2.xpose.msra.mxu0 0.0
      %560 = vmatprep.subr.mxu0 0.0
      %561 = vmatpush2.xpose.msra.mxu0 0.0
      %562 = vmatprep.subr.mxu0 0.0
      %563 = vmatpush2.xpose.msra.mxu0 0.0
      %564 = vmatprep.subr.mxu0 0.0
      %565 = vmatpush2.xpose.msra.mxu0 0.0
      %566 = vmatprep.subr.mxu0 0.0
      %567 = vmatpush2.xpose.msra.mxu0 0.0
      %568 = vmatprep.subr.mxu0 0.0
      %569 = vmatpush2.xpose.msra.mxu0 0.0
      %570 = vmatprep.subr.mxu0 0.0
      %571 = vmatpush2.xpose.msra.mxu0 0.0
      %572 = vmatprep.subr.mxu0 0.0
      %573 = vmatpush2.xpose.msra.mxu0 0.0
      %574 = vmatprep.subr.mxu0 0.0
      %575 = vmatpush2.xpose.msra.mxu0 0.0
      %576 = vmatprep.subr.mxu0 0.0
      %577 = vmatpush2.xpose.msra.mxu0 0.0
      %578 = vmatprep.subr.mxu0 0.0
      %579 = vmatpush2.xpose.msra.mxu0 0.0
      %580 = vmatprep.mubr.f32.mxu0 0.0
      %581 = vmatmul.mubr.f32.gmra.mxu0 %v505
      %v582 = vpop.f32.mrf.mxu0
      %v583 = vadd.f32 0.0, %v582
      %v584 = vpop.f32.mrf.mxu0
      %585 = vmatprep.mubr.f32.mxu0 0.0
      %586 = vmatmul.mubr.f32.gmra.mxu0 %v508
      %v587 = vpop.f32.mrf.mxu0
      %v588 = vadd.f32 0.0, %v587
      %v589 = vpop.f32.mrf.mxu0
      %590 = vmatprep.mubr.f32.mxu0 0.0
      %591 = vmatmul.mubr.f32.gmra.mxu0 %v511
      %v592 = vpop.f32.mrf.mxu0
      %v593 = vadd.f32 0.0, %v592
      %v594 = vpop.f32.mrf.mxu0
      %595 = vdwg.mxu0
      %vm596 = vcmp.gt.f32.partialorder %v396, 0.0
      %vm597 = vcmp.gt.f32.partialorder %v397, 0.0
      %vm598 = vcmp.gt.f32.partialorder %v398, 0.0
      %600 = vset.pattern.permute.xlu0 0
      %601 = vperm.xlu0 %600, %v583
      %v602 = vpop.permute.xlu0 %601
      %605 = vset.pattern.permute.xlu0 0
      %606 = vperm.xlu0 %605, %v588
      %v607 = vpop.permute.xlu0 %606
      %610 = vset.pattern.permute.xlu0 0
      %611 = vperm.xlu0 %610, %v593
      %v612 = vpop.permute.xlu0 %611
      %v614 = vsel %vm596, %v602, -1e+30
      %v615 = vsel %vm597, %v607, -1e+30
      %v616 = vsel %vm598, %v612, -1e+30
      %vm617 = vcmask 195584
      %v618 = vsel %vm617, %v614, -inf
      %v619 = vsel %vm617, %v615, -inf
      %v620 = vsel %vm617, %v616, -inf
      %v621 = vmax.f32 %v618, %v619
      %v622 = vmax.f32 %v621, %v620
      %v623 = vrot.slane %v622, 4
      %v624 = vmax.f32 %v622, %v623
      %v625 = vrot.slane %v624, 2
      %v626 = vmax.f32 %v624, %v625
      %v627 = vrot.slane %v626, 1
      %v628 = vmax.f32 %v626, %v627
      %v629 = vmax.f32 %v351, %v396
      %v630 = vmax.f32 %v352, %v397
      %v631 = vmax.f32 %v353, %v398
      %vm632 = vcmp.gt.f32.partialorder %v629, 0.0
      %vm633 = vcmp.gt.f32.partialorder %v630, 0.0
      %vm634 = vcmp.gt.f32.partialorder %v631, 0.0
      %v635 = vsel %vm632, 0.0, -1e+30
      %v636 = vsel %vm633, 0.0, -1e+30
      %v637 = vsel %vm634, 0.0, -1e+30
      %638 = vset.pattern.permute.xlu0 1
      %639 = vperm.xlu0 %638, %v583
      %v640 = vpop.permute.xlu0 %639
      %642 = vset.pattern.permute.xlu0 1
      %643 = vperm.xlu0 %642, %v588
      %v644 = vpop.permute.xlu0 %643
      %646 = vset.pattern.permute.xlu0 1
      %647 = vperm.xlu0 %646, %v593
      %v648 = vpop.permute.xlu0 %647
      %v650 = vadd.f32 %v640, %v628
      %v651 = vadd.f32 %v644, %v628
      %v652 = vadd.f32 %v648, %v628
      %vm653 = vcmp.gt.f32.partialorder %v650, 0.0
      %vm654 = vcmp.gt.f32.partialorder %v651, 0.0
      %vm655 = vcmp.gt.f32.partialorder %v652, 0.0
      %v656 = vmul.f32 %v650, 0.2
      %v657 = vmul.f32 %v651, 0.2
      %v658 = vmul.f32 %v652, 0.2
      %v659 = vsel %vm653, %v650, %v656
      %v660 = vsel %vm654, %v651, %v657
      %v661 = vsel %vm655, %v652, %v658
      %v662 = vadd.f32 %v659, %v635
      %v663 = vadd.f32 %v660, %v636
      %v664 = vadd.f32 %v661, %v637
      %v665 = vsel %vm617, %v662, -inf
      %666 = vmax.xlane.f32.xlu0 %v665
      %v667 = vpop.xlane.xlu0 %666
      %v668 = vsel %vm617, %v663, -inf
      %669 = vmax.xlane.f32.xlu0 %v668
      %v670 = vpop.xlane.xlu0 %669
      %v671 = vsel %vm617, %v664, -inf
      %672 = vmax.xlane.f32.xlu0 %v671
      %v673 = vpop.xlane.xlu0 %672
      %v674 = vsub.f32 %v662, %v667
      %v675 = vsub.f32 %v663, %v670
      %v676 = vsub.f32 %v664, %v673
      %v677 = vmul.f32 %v674, 1.442695
      %v678 = vpow.pop %v677
      %v679 = vmul.f32 %v675, 1.442695
      %v680 = vpow.pop %v679
      %v681 = vmul.f32 %v676, 1.442695
      %v682 = vpow.pop %v681
      %v683 = vmul.f32 %v678, %v629
      %v684 = vmul.f32 %v680, %v630
      %v685 = vmul.f32 %v682, %v631
      %v686 = vsel %vm617, %v683, 0.0
      %687 = vadd.xlane.f32.xlu0 %v686
      %v688 = vpop.xlane.xlu0 %687
      %v689 = vsel %vm617, %v684, 0.0
      %690 = vadd.xlane.f32.xlu0 %v689
      %v691 = vpop.xlane.xlu0 %690
      %v692 = vsel %vm617, %v685, 0.0
      %693 = vadd.xlane.f32.xlu0 %v692
      %v694 = vpop.xlane.xlu0 %693
      %v695 = vrcp.pop %v688
      %v696 = vmul.f32 %v683, %v695
      %v697 = vrcp.pop %v691
      %v698 = vmul.f32 %v684, %v697
      %v699 = vrcp.pop %v694
      %v700 = vmul.f32 %v685, %v699
      %702 = vset.pattern.permute.xlu0 0
      %703 = vperm.xlu0 %702, %v696
      %v704 = vpop.permute.xlu0 %703
      %707 = vset.pattern.permute.xlu0 0
      %708 = vperm.xlu0 %707, %v698
      %v709 = vpop.permute.xlu0 %708
      %712 = vset.pattern.permute.xlu0 0
      %713 = vperm.xlu0 %712, %v700
      %v714 = vpop.permute.xlu0 %713
      %v716 = vlaneseq
      %v717 = vshrl.u32 %v716, 7
      %v718 = vsub.s32 0, %v717
      %v719 = vrot.slane %v490, %v718
      %v720 = vmul.f32 %v704, %v719
      %v721 = vmul.f32 %v709, %v719
      %v722 = vmul.f32 %v714, %v719
      %724 = vset.pattern.permute.xlu0 0
      %725 = vperm.xlu0 %724, %v635
      %v726 = vpop.permute.xlu0 %725
      %729 = vset.pattern.permute.xlu0 0
      %730 = vperm.xlu0 %729, %v636
      %v731 = vpop.permute.xlu0 %730
      %734 = vset.pattern.permute.xlu0 0
      %735 = vperm.xlu0 %734, %v637
      %v736 = vpop.permute.xlu0 %735
      %v738 = vadd.f32 %v720, %v726
      %v739 = vadd.f32 %v721, %v731
      %v740 = vadd.f32 %v722, %v736
      %v741 = vmax.f32 %v738, -1e+30
      %v742 = vmax.f32 %v739, -1e+30
      %v743 = vmax.f32 %v740, -1e+30
      %744 = vset.pattern.permute.xlu0 1
      %745 = vperm.xlu0 %744, %v696
      %v746 = vpop.permute.xlu0 %745
      %748 = vset.pattern.permute.xlu0 1
      %749 = vperm.xlu0 %748, %v698
      %v750 = vpop.permute.xlu0 %749
      %752 = vset.pattern.permute.xlu0 1
      %753 = vperm.xlu0 %752, %v700
      %v754 = vpop.permute.xlu0 %753
      %v756 = vlaneseq
      %v757 = vshrl.u32 %v756, 7
      %v758 = vsub.s32 1, %v757
      %v759 = vrot.slane %v490, %v758
      %v760 = vmul.f32 %v746, %v759
      %v761 = vmul.f32 %v750, %v759
      %v762 = vmul.f32 %v754, %v759
      %763 = vset.pattern.permute.xlu0 1
      %764 = vperm.xlu0 %763, %v635
      %v765 = vpop.permute.xlu0 %764
      %767 = vset.pattern.permute.xlu0 1
      %768 = vperm.xlu0 %767, %v636
      %v769 = vpop.permute.xlu0 %768
      %771 = vset.pattern.permute.xlu0 1
      %772 = vperm.xlu0 %771, %v637
      %v773 = vpop.permute.xlu0 %772
      %v775 = vadd.f32 %v760, %v765
      %v776 = vadd.f32 %v761, %v769
      %v777 = vadd.f32 %v762, %v773
      %v778 = vmax.f32 %v741, %v775
      %v779 = vmax.f32 %v742, %v776
      %v780 = vmax.f32 %v743, %v777
      %781 = vset.pattern.permute.xlu0 2
      %782 = vperm.xlu0 %781, %v696
      %v783 = vpop.permute.xlu0 %782
      %785 = vset.pattern.permute.xlu0 2
      %786 = vperm.xlu0 %785, %v698
      %v787 = vpop.permute.xlu0 %786
      %789 = vset.pattern.permute.xlu0 2
      %790 = vperm.xlu0 %789, %v700
      %v791 = vpop.permute.xlu0 %790
      %v793 = vlaneseq
      %v794 = vshrl.u32 %v793, 7
      %v795 = vsub.s32 2, %v794
      %v796 = vrot.slane %v490, %v795
      %v797 = vmul.f32 %v783, %v796
      %v798 = vmul.f32 %v787, %v796
      %v799 = vmul.f32 %v791, %v796
      %800 = vset.pattern.permute.xlu0 2
      %801 = vperm.xlu0 %800, %v635
      %v802 = vpop.permute.xlu0 %801
      %804 = vset.pattern.permute.xlu0 2
      %805 = vperm.xlu0 %804, %v636
      %v806 = vpop.permute.xlu0 %805
      %808 = vset.pattern.permute.xlu0 2
      %809 = vperm.xlu0 %808, %v637
      %v810 = vpop.permute.xlu0 %809
      %v812 = vadd.f32 %v797, %v802
      %v813 = vadd.f32 %v798, %v806
      %v814 = vadd.f32 %v799, %v810
      %v815 = vmax.f32 %v778, %v812
      %v816 = vmax.f32 %v779, %v813
      %v817 = vmax.f32 %v780, %v814
      %818 = vset.pattern.permute.xlu0 3
      %819 = vperm.xlu0 %818, %v696
      %v820 = vpop.permute.xlu0 %819
      %822 = vset.pattern.permute.xlu0 3
      %823 = vperm.xlu0 %822, %v698
      %v824 = vpop.permute.xlu0 %823
      %826 = vset.pattern.permute.xlu0 3
      %827 = vperm.xlu0 %826, %v700
      %v828 = vpop.permute.xlu0 %827
      %v830 = vlaneseq
      %v831 = vshrl.u32 %v830, 7
      %v832 = vsub.s32 3, %v831
      %v833 = vrot.slane %v490, %v832
      %v834 = vmul.f32 %v820, %v833
      %v835 = vmul.f32 %v824, %v833
      %v836 = vmul.f32 %v828, %v833
      %837 = vset.pattern.permute.xlu0 3
      %838 = vperm.xlu0 %837, %v635
      %v839 = vpop.permute.xlu0 %838
      %841 = vset.pattern.permute.xlu0 3
      %842 = vperm.xlu0 %841, %v636
      %v843 = vpop.permute.xlu0 %842
      %845 = vset.pattern.permute.xlu0 3
      %846 = vperm.xlu0 %845, %v637
      %v847 = vpop.permute.xlu0 %846
      %v849 = vadd.f32 %v834, %v839
      %v850 = vadd.f32 %v835, %v843
      %v851 = vadd.f32 %v836, %v847
      %v852 = vmax.f32 %v815, %v849
      %v853 = vmax.f32 %v816, %v850
      %v854 = vmax.f32 %v817, %v851
      %855 = vset.pattern.permute.xlu0 4
      %856 = vperm.xlu0 %855, %v696
      %v857 = vpop.permute.xlu0 %856
      %859 = vset.pattern.permute.xlu0 4
      %860 = vperm.xlu0 %859, %v698
      %v861 = vpop.permute.xlu0 %860
      %863 = vset.pattern.permute.xlu0 4
      %864 = vperm.xlu0 %863, %v700
      %v865 = vpop.permute.xlu0 %864
      %v867 = vlaneseq
      %v868 = vshrl.u32 %v867, 7
      %v869 = vsub.s32 4, %v868
      %v870 = vrot.slane %v490, %v869
      %v871 = vmul.f32 %v857, %v870
      %v872 = vmul.f32 %v861, %v870
      %v873 = vmul.f32 %v865, %v870
      %874 = vset.pattern.permute.xlu0 4
      %875 = vperm.xlu0 %874, %v635
      %v876 = vpop.permute.xlu0 %875
      %878 = vset.pattern.permute.xlu0 4
      %879 = vperm.xlu0 %878, %v636
      %v880 = vpop.permute.xlu0 %879
      %882 = vset.pattern.permute.xlu0 4
      %883 = vperm.xlu0 %882, %v637
      %v884 = vpop.permute.xlu0 %883
      %v886 = vadd.f32 %v871, %v876
      %v887 = vadd.f32 %v872, %v880
      %v888 = vadd.f32 %v873, %v884
      %v889 = vmax.f32 %v852, %v886
      %v890 = vmax.f32 %v853, %v887
      %v891 = vmax.f32 %v854, %v888
      %892 = vset.pattern.permute.xlu0 5
      %893 = vperm.xlu0 %892, %v696
      %v894 = vpop.permute.xlu0 %893
      %896 = vset.pattern.permute.xlu0 5
      %897 = vperm.xlu0 %896, %v698
      %v898 = vpop.permute.xlu0 %897
      %900 = vset.pattern.permute.xlu0 5
      %901 = vperm.xlu0 %900, %v700
      %v902 = vpop.permute.xlu0 %901
      %v904 = vlaneseq
      %v905 = vshrl.u32 %v904, 7
      %v906 = vsub.s32 5, %v905
      %v907 = vrot.slane %v490, %v906
      %v908 = vmul.f32 %v894, %v907
      %v909 = vmul.f32 %v898, %v907
      %v910 = vmul.f32 %v902, %v907
      %911 = vset.pattern.permute.xlu0 5
      %912 = vperm.xlu0 %911, %v635
      %v913 = vpop.permute.xlu0 %912
      %915 = vset.pattern.permute.xlu0 5
      %916 = vperm.xlu0 %915, %v636
      %v917 = vpop.permute.xlu0 %916
      %919 = vset.pattern.permute.xlu0 5
      %920 = vperm.xlu0 %919, %v637
      %v921 = vpop.permute.xlu0 %920
      %v923 = vadd.f32 %v908, %v913
      %v924 = vadd.f32 %v909, %v917
      %v925 = vadd.f32 %v910, %v921
      %v926 = vmax.f32 %v889, %v923
      %v927 = vmax.f32 %v890, %v924
      %v928 = vmax.f32 %v891, %v925
      %929 = vset.pattern.permute.xlu0 6
      %930 = vperm.xlu0 %929, %v696
      %v931 = vpop.permute.xlu0 %930
      %933 = vset.pattern.permute.xlu0 6
      %934 = vperm.xlu0 %933, %v698
      %v935 = vpop.permute.xlu0 %934
      %937 = vset.pattern.permute.xlu0 6
      %938 = vperm.xlu0 %937, %v700
      %v939 = vpop.permute.xlu0 %938
      %v941 = vlaneseq
      %v942 = vshrl.u32 %v941, 7
      %v943 = vsub.s32 6, %v942
      %v944 = vrot.slane %v490, %v943
      %v945 = vmul.f32 %v931, %v944
      %v946 = vmul.f32 %v935, %v944
      %v947 = vmul.f32 %v939, %v944
      %948 = vset.pattern.permute.xlu0 6
      %949 = vperm.xlu0 %948, %v635
      %v950 = vpop.permute.xlu0 %949
      %952 = vset.pattern.permute.xlu0 6
      %953 = vperm.xlu0 %952, %v636
      %v954 = vpop.permute.xlu0 %953
      %956 = vset.pattern.permute.xlu0 6
      %957 = vperm.xlu0 %956, %v637
      %v958 = vpop.permute.xlu0 %957
      %v960 = vadd.f32 %v945, %v950
      %v961 = vadd.f32 %v946, %v954
      %v962 = vadd.f32 %v947, %v958
      %v963 = vmax.f32 %v926, %v960
      %v964 = vmax.f32 %v927, %v961
      %v965 = vmax.f32 %v928, %v962
      %966 = vset.pattern.permute.xlu0 7
      %967 = vperm.xlu0 %966, %v696
      %v968 = vpop.permute.xlu0 %967
      %970 = vset.pattern.permute.xlu0 7
      %971 = vperm.xlu0 %970, %v698
      %v972 = vpop.permute.xlu0 %971
      %974 = vset.pattern.permute.xlu0 7
      %975 = vperm.xlu0 %974, %v700
      %v976 = vpop.permute.xlu0 %975
      %v978 = vlaneseq
      %v979 = vshrl.u32 %v978, 7
      %v980 = vsub.s32 7, %v979
      %v981 = vrot.slane %v490, %v980
      %v982 = vmul.f32 %v968, %v981
      %v983 = vmul.f32 %v972, %v981
      %v984 = vmul.f32 %v976, %v981
      %985 = vset.pattern.permute.xlu0 7
      %986 = vperm.xlu0 %985, %v635
      %v987 = vpop.permute.xlu0 %986
      %989 = vset.pattern.permute.xlu0 7
      %990 = vperm.xlu0 %989, %v636
      %v991 = vpop.permute.xlu0 %990
      %993 = vset.pattern.permute.xlu0 7
      %994 = vperm.xlu0 %993, %v637
      %v995 = vpop.permute.xlu0 %994
      %v997 = vadd.f32 %v982, %v987
      %v998 = vadd.f32 %v983, %v991
      %v999 = vadd.f32 %v984, %v995
      %v1000 = vmax.f32 %v963, %v997
      %v1001 = vmax.f32 %v964, %v998
      %v1002 = vmax.f32 %v965, %v999
      %1003 = vset.pattern.permute.xlu0 8
      %1004 = vperm.xlu0 %1003, %v696
      %v1005 = vpop.permute.xlu0 %1004
      %1007 = vset.pattern.permute.xlu0 8
      %1008 = vperm.xlu0 %1007, %v698
      %v1009 = vpop.permute.xlu0 %1008
      %1011 = vset.pattern.permute.xlu0 8
      %1012 = vperm.xlu0 %1011, %v700
      %v1013 = vpop.permute.xlu0 %1012
      %v1015 = vlaneseq
      %v1016 = vshrl.u32 %v1015, 7
      %v1017 = vsub.s32 0, %v1016
      %v1018 = vrot.slane %v495, %v1017
      %v1019 = vmul.f32 %v1005, %v1018
      %v1020 = vmul.f32 %v1009, %v1018
      %v1021 = vmul.f32 %v1013, %v1018
      %1022 = vset.pattern.permute.xlu0 8
      %1023 = vperm.xlu0 %1022, %v635
      %v1024 = vpop.permute.xlu0 %1023
      %1026 = vset.pattern.permute.xlu0 8
      %1027 = vperm.xlu0 %1026, %v636
      %v1028 = vpop.permute.xlu0 %1027
      %1030 = vset.pattern.permute.xlu0 8
      %1031 = vperm.xlu0 %1030, %v637
      %v1032 = vpop.permute.xlu0 %1031
      %v1034 = vadd.f32 %v1019, %v1024
      %v1035 = vadd.f32 %v1020, %v1028
      %v1036 = vadd.f32 %v1021, %v1032
      %v1037 = vmax.f32 %v1000, %v1034
      %v1038 = vmax.f32 %v1001, %v1035
      %v1039 = vmax.f32 %v1002, %v1036
      %1040 = vset.pattern.permute.xlu0 9
      %1041 = vperm.xlu0 %1040, %v696
      %v1042 = vpop.permute.xlu0 %1041
      %1044 = vset.pattern.permute.xlu0 9
      %1045 = vperm.xlu0 %1044, %v698
      %v1046 = vpop.permute.xlu0 %1045
      %1048 = vset.pattern.permute.xlu0 9
      %1049 = vperm.xlu0 %1048, %v700
      %v1050 = vpop.permute.xlu0 %1049
      %v1052 = vlaneseq
      %v1053 = vshrl.u32 %v1052, 7
      %v1054 = vsub.s32 1, %v1053
      %v1055 = vrot.slane %v495, %v1054
      %v1056 = vmul.f32 %v1042, %v1055
      %v1057 = vmul.f32 %v1046, %v1055
      %v1058 = vmul.f32 %v1050, %v1055
      %1059 = vset.pattern.permute.xlu0 9
      %1060 = vperm.xlu0 %1059, %v635
      %v1061 = vpop.permute.xlu0 %1060
      %1063 = vset.pattern.permute.xlu0 9
      %1064 = vperm.xlu0 %1063, %v636
      %v1065 = vpop.permute.xlu0 %1064
      %1067 = vset.pattern.permute.xlu0 9
      %1068 = vperm.xlu0 %1067, %v637
      %v1069 = vpop.permute.xlu0 %1068
      %v1071 = vadd.f32 %v1056, %v1061
      %v1072 = vadd.f32 %v1057, %v1065
      %v1073 = vadd.f32 %v1058, %v1069
      %v1074 = vmax.f32 %v1037, %v1071
      %v1075 = vmax.f32 %v1038, %v1072
      %v1076 = vmax.f32 %v1039, %v1073
      %1077 = vset.pattern.permute.xlu0 10
      %1078 = vperm.xlu0 %1077, %v696
      %v1079 = vpop.permute.xlu0 %1078
      %1081 = vset.pattern.permute.xlu0 10
      %1082 = vperm.xlu0 %1081, %v698
      %v1083 = vpop.permute.xlu0 %1082
      %1085 = vset.pattern.permute.xlu0 10
      %1086 = vperm.xlu0 %1085, %v700
      %v1087 = vpop.permute.xlu0 %1086
      %v1089 = vlaneseq
      %v1090 = vshrl.u32 %v1089, 7
      %v1091 = vsub.s32 2, %v1090
      %v1092 = vrot.slane %v495, %v1091
      %v1093 = vmul.f32 %v1079, %v1092
      %v1094 = vmul.f32 %v1083, %v1092
      %v1095 = vmul.f32 %v1087, %v1092
      %1096 = vset.pattern.permute.xlu0 10
      %1097 = vperm.xlu0 %1096, %v635
      %v1098 = vpop.permute.xlu0 %1097
      %1100 = vset.pattern.permute.xlu0 10
      %1101 = vperm.xlu0 %1100, %v636
      %v1102 = vpop.permute.xlu0 %1101
      %1104 = vset.pattern.permute.xlu0 10
      %1105 = vperm.xlu0 %1104, %v637
      %v1106 = vpop.permute.xlu0 %1105
      %v1108 = vadd.f32 %v1093, %v1098
      %v1109 = vadd.f32 %v1094, %v1102
      %v1110 = vadd.f32 %v1095, %v1106
      %v1111 = vmax.f32 %v1074, %v1108
      %v1112 = vmax.f32 %v1075, %v1109
      %v1113 = vmax.f32 %v1076, %v1110
      %1114 = vset.pattern.permute.xlu0 11
      %1115 = vperm.xlu0 %1114, %v696
      %v1116 = vpop.permute.xlu0 %1115
      %1118 = vset.pattern.permute.xlu0 11
      %1119 = vperm.xlu0 %1118, %v698
      %v1120 = vpop.permute.xlu0 %1119
      %1122 = vset.pattern.permute.xlu0 11
      %1123 = vperm.xlu0 %1122, %v700
      %v1124 = vpop.permute.xlu0 %1123
      %v1126 = vlaneseq
      %v1127 = vshrl.u32 %v1126, 7
      %v1128 = vsub.s32 3, %v1127
      %v1129 = vrot.slane %v495, %v1128
      %v1130 = vmul.f32 %v1116, %v1129
      %v1131 = vmul.f32 %v1120, %v1129
      %v1132 = vmul.f32 %v1124, %v1129
      %1133 = vset.pattern.permute.xlu0 11
      %1134 = vperm.xlu0 %1133, %v635
      %v1135 = vpop.permute.xlu0 %1134
      %1137 = vset.pattern.permute.xlu0 11
      %1138 = vperm.xlu0 %1137, %v636
      %v1139 = vpop.permute.xlu0 %1138
      %1141 = vset.pattern.permute.xlu0 11
      %1142 = vperm.xlu0 %1141, %v637
      %v1143 = vpop.permute.xlu0 %1142
      %v1145 = vadd.f32 %v1130, %v1135
      %v1146 = vadd.f32 %v1131, %v1139
      %v1147 = vadd.f32 %v1132, %v1143
      %v1148 = vmax.f32 %v1111, %v1145
      %v1149 = vmax.f32 %v1112, %v1146
      %v1150 = vmax.f32 %v1113, %v1147
      %1151 = vset.pattern.permute.xlu0 12
      %1152 = vperm.xlu0 %1151, %v696
      %v1153 = vpop.permute.xlu0 %1152
      %1155 = vset.pattern.permute.xlu0 12
      %1156 = vperm.xlu0 %1155, %v698
      %v1157 = vpop.permute.xlu0 %1156
      %1159 = vset.pattern.permute.xlu0 12
      %1160 = vperm.xlu0 %1159, %v700
      %v1161 = vpop.permute.xlu0 %1160
      %v1163 = vlaneseq
      %v1164 = vshrl.u32 %v1163, 7
      %v1165 = vsub.s32 4, %v1164
      %v1166 = vrot.slane %v495, %v1165
      %v1167 = vmul.f32 %v1153, %v1166
      %v1168 = vmul.f32 %v1157, %v1166
      %v1169 = vmul.f32 %v1161, %v1166
      %1170 = vset.pattern.permute.xlu0 12
      %1171 = vperm.xlu0 %1170, %v635
      %v1172 = vpop.permute.xlu0 %1171
      %1174 = vset.pattern.permute.xlu0 12
      %1175 = vperm.xlu0 %1174, %v636
      %v1176 = vpop.permute.xlu0 %1175
      %1178 = vset.pattern.permute.xlu0 12
      %1179 = vperm.xlu0 %1178, %v637
      %v1180 = vpop.permute.xlu0 %1179
      %v1182 = vadd.f32 %v1167, %v1172
      %v1183 = vadd.f32 %v1168, %v1176
      %v1184 = vadd.f32 %v1169, %v1180
      %v1185 = vmax.f32 %v1148, %v1182
      %v1186 = vmax.f32 %v1149, %v1183
      %v1187 = vmax.f32 %v1150, %v1184
      %1188 = vset.pattern.permute.xlu0 13
      %1189 = vperm.xlu0 %1188, %v696
      %v1190 = vpop.permute.xlu0 %1189
      %1192 = vset.pattern.permute.xlu0 13
      %1193 = vperm.xlu0 %1192, %v698
      %v1194 = vpop.permute.xlu0 %1193
      %1196 = vset.pattern.permute.xlu0 13
      %1197 = vperm.xlu0 %1196, %v700
      %v1198 = vpop.permute.xlu0 %1197
      %v1200 = vlaneseq
      %v1201 = vshrl.u32 %v1200, 7
      %v1202 = vsub.s32 5, %v1201
      %v1203 = vrot.slane %v495, %v1202
      %v1204 = vmul.f32 %v1190, %v1203
      %v1205 = vmul.f32 %v1194, %v1203
      %v1206 = vmul.f32 %v1198, %v1203
      %1207 = vset.pattern.permute.xlu0 13
      %1208 = vperm.xlu0 %1207, %v635
      %v1209 = vpop.permute.xlu0 %1208
      %1211 = vset.pattern.permute.xlu0 13
      %1212 = vperm.xlu0 %1211, %v636
      %v1213 = vpop.permute.xlu0 %1212
      %1215 = vset.pattern.permute.xlu0 13
      %1216 = vperm.xlu0 %1215, %v637
      %v1217 = vpop.permute.xlu0 %1216
      %v1219 = vadd.f32 %v1204, %v1209
      %v1220 = vadd.f32 %v1205, %v1213
      %v1221 = vadd.f32 %v1206, %v1217
      %v1222 = vmax.f32 %v1185, %v1219
      %v1223 = vmax.f32 %v1186, %v1220
      %v1224 = vmax.f32 %v1187, %v1221
      %1225 = vset.pattern.permute.xlu0 14
      %1226 = vperm.xlu0 %1225, %v696
      %v1227 = vpop.permute.xlu0 %1226
      %1229 = vset.pattern.permute.xlu0 14
      %1230 = vperm.xlu0 %1229, %v698
      %v1231 = vpop.permute.xlu0 %1230
      %1233 = vset.pattern.permute.xlu0 14
      %1234 = vperm.xlu0 %1233, %v700
      %v1235 = vpop.permute.xlu0 %1234
      %v1237 = vlaneseq
      %v1238 = vshrl.u32 %v1237, 7
      %v1239 = vsub.s32 6, %v1238
      %v1240 = vrot.slane %v495, %v1239
      %v1241 = vmul.f32 %v1227, %v1240
      %v1242 = vmul.f32 %v1231, %v1240
      %v1243 = vmul.f32 %v1235, %v1240
      %1244 = vset.pattern.permute.xlu0 14
      %1245 = vperm.xlu0 %1244, %v635
      %v1246 = vpop.permute.xlu0 %1245
      %1248 = vset.pattern.permute.xlu0 14
      %1249 = vperm.xlu0 %1248, %v636
      %v1250 = vpop.permute.xlu0 %1249
      %1252 = vset.pattern.permute.xlu0 14
      %1253 = vperm.xlu0 %1252, %v637
      %v1254 = vpop.permute.xlu0 %1253
      %v1256 = vadd.f32 %v1241, %v1246
      %v1257 = vadd.f32 %v1242, %v1250
      %v1258 = vadd.f32 %v1243, %v1254
      %v1259 = vmax.f32 %v1222, %v1256
      %v1260 = vmax.f32 %v1223, %v1257
      %v1261 = vmax.f32 %v1224, %v1258
      %1262 = vset.pattern.permute.xlu0 15
      %1263 = vperm.xlu0 %1262, %v696
      %v1264 = vpop.permute.xlu0 %1263
      %1266 = vset.pattern.permute.xlu0 15
      %1267 = vperm.xlu0 %1266, %v698
      %v1268 = vpop.permute.xlu0 %1267
      %1270 = vset.pattern.permute.xlu0 15
      %1271 = vperm.xlu0 %1270, %v700
      %v1272 = vpop.permute.xlu0 %1271
      %v1274 = vlaneseq
      %v1275 = vshrl.u32 %v1274, 7
      %v1276 = vsub.s32 7, %v1275
      %v1277 = vrot.slane %v495, %v1276
      %v1278 = vmul.f32 %v1264, %v1277
      %v1279 = vmul.f32 %v1268, %v1277
      %v1280 = vmul.f32 %v1272, %v1277
      %1281 = vset.pattern.permute.xlu0 15
      %1282 = vperm.xlu0 %1281, %v635
      %v1283 = vpop.permute.xlu0 %1282
      %1285 = vset.pattern.permute.xlu0 15
      %1286 = vperm.xlu0 %1285, %v636
      %v1287 = vpop.permute.xlu0 %1286
      %1289 = vset.pattern.permute.xlu0 15
      %1290 = vperm.xlu0 %1289, %v637
      %v1291 = vpop.permute.xlu0 %1290
      %v1293 = vadd.f32 %v1278, %v1283
      %v1294 = vadd.f32 %v1279, %v1287
      %v1295 = vadd.f32 %v1280, %v1291
      %v1296 = vmax.f32 %v1259, %v1293
      %v1297 = vmax.f32 %v1260, %v1294
      %v1298 = vmax.f32 %v1261, %v1295
      %1299 = vset.pattern.permute.xlu0 16
      %1300 = vperm.xlu0 %1299, %v696
      %v1301 = vpop.permute.xlu0 %1300
      %1303 = vset.pattern.permute.xlu0 16
      %1304 = vperm.xlu0 %1303, %v698
      %v1305 = vpop.permute.xlu0 %1304
      %1307 = vset.pattern.permute.xlu0 16
      %1308 = vperm.xlu0 %1307, %v700
      %v1309 = vpop.permute.xlu0 %1308
      %v1311 = vlaneseq
      %v1312 = vshrl.u32 %v1311, 7
      %v1313 = vsub.s32 0, %v1312
      %v1314 = vrot.slane %v500, %v1313
      %v1315 = vmul.f32 %v1301, %v1314
      %v1316 = vmul.f32 %v1305, %v1314
      %v1317 = vmul.f32 %v1309, %v1314
      %1318 = vset.pattern.permute.xlu0 16
      %1319 = vperm.xlu0 %1318, %v635
      %v1320 = vpop.permute.xlu0 %1319
      %1322 = vset.pattern.permute.xlu0 16
      %1323 = vperm.xlu0 %1322, %v636
      %v1324 = vpop.permute.xlu0 %1323
      %1326 = vset.pattern.permute.xlu0 16
      %1327 = vperm.xlu0 %1326, %v637
      %v1328 = vpop.permute.xlu0 %1327
      %v1330 = vadd.f32 %v1315, %v1320
      %v1331 = vadd.f32 %v1316, %v1324
      %v1332 = vadd.f32 %v1317, %v1328
      %v1333 = vmax.f32 %v1296, %v1330
      %v1334 = vmax.f32 %v1297, %v1331
      %v1335 = vmax.f32 %v1298, %v1332
      %1336 = vset.pattern.permute.xlu0 17
      %1337 = vperm.xlu0 %1336, %v696
      %v1338 = vpop.permute.xlu0 %1337
      %1340 = vset.pattern.permute.xlu0 17
      %1341 = vperm.xlu0 %1340, %v698
      %v1342 = vpop.permute.xlu0 %1341
      %1344 = vset.pattern.permute.xlu0 17
      %1345 = vperm.xlu0 %1344, %v700
      %v1346 = vpop.permute.xlu0 %1345
      %v1348 = vlaneseq
      %v1349 = vshrl.u32 %v1348, 7
      %v1350 = vsub.s32 1, %v1349
      %v1351 = vrot.slane %v500, %v1350
      %v1352 = vmul.f32 %v1338, %v1351
      %v1353 = vmul.f32 %v1342, %v1351
      %v1354 = vmul.f32 %v1346, %v1351
      %1355 = vset.pattern.permute.xlu0 17
      %1356 = vperm.xlu0 %1355, %v635
      %v1357 = vpop.permute.xlu0 %1356
      %1359 = vset.pattern.permute.xlu0 17
      %1360 = vperm.xlu0 %1359, %v636
      %v1361 = vpop.permute.xlu0 %1360
      %1363 = vset.pattern.permute.xlu0 17
      %1364 = vperm.xlu0 %1363, %v637
      %v1365 = vpop.permute.xlu0 %1364
      %v1367 = vadd.f32 %v1352, %v1357
      %v1368 = vadd.f32 %v1353, %v1361
      %v1369 = vadd.f32 %v1354, %v1365
      %v1370 = vmax.f32 %v1333, %v1367
      %v1371 = vmax.f32 %v1334, %v1368
      %v1372 = vmax.f32 %v1335, %v1369
      %1373 = vset.pattern.permute.xlu0 18
      %1374 = vperm.xlu0 %1373, %v696
      %v1375 = vpop.permute.xlu0 %1374
      %1377 = vset.pattern.permute.xlu0 18
      %1378 = vperm.xlu0 %1377, %v698
      %v1379 = vpop.permute.xlu0 %1378
      %1381 = vset.pattern.permute.xlu0 18
      %1382 = vperm.xlu0 %1381, %v700
      %v1383 = vpop.permute.xlu0 %1382
      %v1385 = vlaneseq
      %v1386 = vshrl.u32 %v1385, 7
      %v1387 = vsub.s32 2, %v1386
      %v1388 = vrot.slane %v500, %v1387
      %v1389 = vmul.f32 %v1375, %v1388
      %v1390 = vmul.f32 %v1379, %v1388
      %v1391 = vmul.f32 %v1383, %v1388
      %1392 = vset.pattern.permute.xlu0 18
      %1393 = vperm.xlu0 %1392, %v635
      %v1394 = vpop.permute.xlu0 %1393
      %1396 = vset.pattern.permute.xlu0 18
      %1397 = vperm.xlu0 %1396, %v636
      %v1398 = vpop.permute.xlu0 %1397
      %1400 = vset.pattern.permute.xlu0 18
      %1401 = vperm.xlu0 %1400, %v637
      %v1402 = vpop.permute.xlu0 %1401
      %v1404 = vadd.f32 %v1389, %v1394
      %v1405 = vadd.f32 %v1390, %v1398
      %v1406 = vadd.f32 %v1391, %v1402
      %v1407 = vmax.f32 %v1370, %v1404
      %v1408 = vmax.f32 %v1371, %v1405
      %v1409 = vmax.f32 %v1372, %v1406
      %1410 = vset.pattern.permute.xlu0 19
      %1411 = vperm.xlu0 %1410, %v696
      %v1412 = vpop.permute.xlu0 %1411
      %1414 = vset.pattern.permute.xlu0 19
      %1415 = vperm.xlu0 %1414, %v698
      %v1416 = vpop.permute.xlu0 %1415
      %1418 = vset.pattern.permute.xlu0 19
      %1419 = vperm.xlu0 %1418, %v700
      %v1420 = vpop.permute.xlu0 %1419
      %v1422 = vlaneseq
      %v1423 = vshrl.u32 %v1422, 7
      %v1424 = vsub.s32 3, %v1423
      %v1425 = vrot.slane %v500, %v1424
      %v1426 = vmul.f32 %v1412, %v1425
      %v1427 = vmul.f32 %v1416, %v1425
      %v1428 = vmul.f32 %v1420, %v1425
      %1429 = vset.pattern.permute.xlu0 19
      %1430 = vperm.xlu0 %1429, %v635
      %v1431 = vpop.permute.xlu0 %1430
      %1433 = vset.pattern.permute.xlu0 19
      %1434 = vperm.xlu0 %1433, %v636
      %v1435 = vpop.permute.xlu0 %1434
      %1437 = vset.pattern.permute.xlu0 19
      %1438 = vperm.xlu0 %1437, %v637
      %v1439 = vpop.permute.xlu0 %1438
      %v1441 = vadd.f32 %v1426, %v1431
      %v1442 = vadd.f32 %v1427, %v1435
      %v1443 = vadd.f32 %v1428, %v1439
      %v1444 = vmax.f32 %v1407, %v1441
      %v1445 = vmax.f32 %v1408, %v1442
      %v1446 = vmax.f32 %v1409, %v1443
      %1447 = vset.pattern.permute.xlu0 20
      %1448 = vperm.xlu0 %1447, %v696
      %v1449 = vpop.permute.xlu0 %1448
      %1451 = vset.pattern.permute.xlu0 20
      %1452 = vperm.xlu0 %1451, %v698
      %v1453 = vpop.permute.xlu0 %1452
      %1455 = vset.pattern.permute.xlu0 20
      %1456 = vperm.xlu0 %1455, %v700
      %v1457 = vpop.permute.xlu0 %1456
      %v1459 = vlaneseq
      %v1460 = vshrl.u32 %v1459, 7
      %v1461 = vsub.s32 4, %v1460
      %v1462 = vrot.slane %v500, %v1461
      %v1463 = vmul.f32 %v1449, %v1462
      %v1464 = vmul.f32 %v1453, %v1462
      %v1465 = vmul.f32 %v1457, %v1462
      %1466 = vset.pattern.permute.xlu0 20
      %1467 = vperm.xlu0 %1466, %v635
      %v1468 = vpop.permute.xlu0 %1467
      %1470 = vset.pattern.permute.xlu0 20
      %1471 = vperm.xlu0 %1470, %v636
      %v1472 = vpop.permute.xlu0 %1471
      %1474 = vset.pattern.permute.xlu0 20
      %1475 = vperm.xlu0 %1474, %v637
      %v1476 = vpop.permute.xlu0 %1475
      %v1478 = vadd.f32 %v1463, %v1468
      %v1479 = vadd.f32 %v1464, %v1472
      %v1480 = vadd.f32 %v1465, %v1476
      %v1481 = vmax.f32 %v1444, %v1478
      %v1482 = vmax.f32 %v1445, %v1479
      %v1483 = vmax.f32 %v1446, %v1480
      %1484 = vset.pattern.permute.xlu0 21
      %1485 = vperm.xlu0 %1484, %v696
      %v1486 = vpop.permute.xlu0 %1485
      %1488 = vset.pattern.permute.xlu0 21
      %1489 = vperm.xlu0 %1488, %v698
      %v1490 = vpop.permute.xlu0 %1489
      %1492 = vset.pattern.permute.xlu0 21
      %1493 = vperm.xlu0 %1492, %v700
      %v1494 = vpop.permute.xlu0 %1493
      %v1496 = vlaneseq
      %v1497 = vshrl.u32 %v1496, 7
      %v1498 = vsub.s32 5, %v1497
      %v1499 = vrot.slane %v500, %v1498
      %v1500 = vmul.f32 %v1486, %v1499
      %v1501 = vmul.f32 %v1490, %v1499
      %v1502 = vmul.f32 %v1494, %v1499
      %1503 = vset.pattern.permute.xlu0 21
      %1504 = vperm.xlu0 %1503, %v635
      %v1505 = vpop.permute.xlu0 %1504
      %1507 = vset.pattern.permute.xlu0 21
      %1508 = vperm.xlu0 %1507, %v636
      %v1509 = vpop.permute.xlu0 %1508
      %1511 = vset.pattern.permute.xlu0 21
      %1512 = vperm.xlu0 %1511, %v637
      %v1513 = vpop.permute.xlu0 %1512
      %v1515 = vadd.f32 %v1500, %v1505
      %v1516 = vadd.f32 %v1501, %v1509
      %v1517 = vadd.f32 %v1502, %v1513
      %v1518 = vmax.f32 %v1481, %v1515
      %v1519 = vmax.f32 %v1482, %v1516
      %v1520 = vmax.f32 %v1483, %v1517
      %1521 = vset.pattern.permute.xlu0 22
      %1522 = vperm.xlu0 %1521, %v696
      %v1523 = vpop.permute.xlu0 %1522
      %1525 = vset.pattern.permute.xlu0 22
      %1526 = vperm.xlu0 %1525, %v698
      %v1527 = vpop.permute.xlu0 %1526
      %1529 = vset.pattern.permute.xlu0 22
      %1530 = vperm.xlu0 %1529, %v700
      %v1531 = vpop.permute.xlu0 %1530
      %v1533 = vlaneseq
      %v1534 = vshrl.u32 %v1533, 7
      %v1535 = vsub.s32 6, %v1534
      %v1536 = vrot.slane %v500, %v1535
      %v1537 = vmul.f32 %v1523, %v1536
      %v1538 = vmul.f32 %v1527, %v1536
      %v1539 = vmul.f32 %v1531, %v1536
      %1540 = vset.pattern.permute.xlu0 22
      %1541 = vperm.xlu0 %1540, %v635
      %v1542 = vpop.permute.xlu0 %1541
      %1544 = vset.pattern.permute.xlu0 22
      %1545 = vperm.xlu0 %1544, %v636
      %v1546 = vpop.permute.xlu0 %1545
      %1548 = vset.pattern.permute.xlu0 22
      %1549 = vperm.xlu0 %1548, %v637
      %v1550 = vpop.permute.xlu0 %1549
      %v1552 = vadd.f32 %v1537, %v1542
      %v1553 = vadd.f32 %v1538, %v1546
      %v1554 = vadd.f32 %v1539, %v1550
      %v1555 = vmax.f32 %v1518, %v1552
      %v1556 = vmax.f32 %v1519, %v1553
      %v1557 = vmax.f32 %v1520, %v1554
      %1558 = vset.pattern.permute.xlu0 23
      %1559 = vperm.xlu0 %1558, %v696
      %v1560 = vpop.permute.xlu0 %1559
      %1562 = vset.pattern.permute.xlu0 23
      %1563 = vperm.xlu0 %1562, %v698
      %v1564 = vpop.permute.xlu0 %1563
      %1566 = vset.pattern.permute.xlu0 23
      %1567 = vperm.xlu0 %1566, %v700
      %v1568 = vpop.permute.xlu0 %1567
      %v1570 = vlaneseq
      %v1571 = vshrl.u32 %v1570, 7
      %v1572 = vsub.s32 7, %v1571
      %v1573 = vrot.slane %v500, %v1572
      %v1574 = vmul.f32 %v1560, %v1573
      %v1575 = vmul.f32 %v1564, %v1573
      %v1576 = vmul.f32 %v1568, %v1573
      %1577 = vset.pattern.permute.xlu0 23
      %1578 = vperm.xlu0 %1577, %v635
      %v1579 = vpop.permute.xlu0 %1578
      %1581 = vset.pattern.permute.xlu0 23
      %1582 = vperm.xlu0 %1581, %v636
      %v1583 = vpop.permute.xlu0 %1582
      %1585 = vset.pattern.permute.xlu0 23
      %1586 = vperm.xlu0 %1585, %v637
      %v1587 = vpop.permute.xlu0 %1586
      %v1589 = vadd.f32 %v1574, %v1579
      %v1590 = vadd.f32 %v1575, %v1583
      %v1591 = vadd.f32 %v1576, %v1587
      %v1592 = vmax.f32 %v1555, %v1589
      %v1593 = vmax.f32 %v1556, %v1590
      %v1594 = vmax.f32 %v1557, %v1591
      %v1595 = vlaneseq
      %v1596 = vshrl.u32 %v1595, 7
      %v1597 = vsub.s32 0, %v1596
      %v1598 = vrot.slane %v367, %v1597
      %v1599 = vadd.f32 %v1592, %v1598
      %v1600 = vadd.f32 %v1593, %v1598
      %v1601 = vadd.f32 %v1594, %v1598
      %1603 = vset.pattern.permute.xlu0 0
      %1604 = vperm.xlu0 %1603, %v354
      %v1605 = vpop.permute.xlu0 %1604
      %1608 = vset.pattern.permute.xlu0 0
      %1609 = vperm.xlu0 %1608, %v355
      %v1610 = vpop.permute.xlu0 %1609
      %1613 = vset.pattern.permute.xlu0 0
      %1614 = vperm.xlu0 %1613, %v356
      %v1615 = vpop.permute.xlu0 %1614
      %v1617 = vmul.f32 %v1599, %v1605
      %v1618 = vmul.f32 %v1600, %v1610
      %v1619 = vmul.f32 %v1601, %v1615
      %v1620 = vsel %vm503, %v1617, 0.0
      %v1621 = vsel %vm503, %v1618, 0.0
      %v1622 = vadd.f32 %v1620, %v1621
      %v1623 = vsel %vm503, %v1619, 0.0
      %v1624 = vadd.f32 %v1622, %v1623
      %v1625 = vrot.slane %v1624, 4
      %v1626 = vadd.f32 %v1624, %v1625
      %v1627 = vrot.slane %v1626, 2
      %v1628 = vadd.f32 %v1626, %v1627
      %v1629 = vrot.slane %v1628, 1
      %v1630 = vadd.f32 %v1628, %v1629
      %1632 = vset.pattern.permute.xlu0 0
      %1633 = vperm.xlu0 %1632, %v412
      %v1634 = vpop.permute.xlu0 %1633
      %v1636 = vmul.f32 %v1630, %v1634
      %v1637 = vsub.f32 %v1599, %v1636
      %v1638 = vsub.f32 %v1600, %v1636
      %v1639 = vsub.f32 %v1601, %v1636
      %v1640 = vmul.f32 %v1637, %v1637
      %v1641 = vmul.f32 %v1638, %v1638
      %v1642 = vmul.f32 %v1639, %v1639
      %v1643 = vmul.f32 %v1640, %v1605
      %v1644 = vmul.f32 %v1641, %v1610
      %v1645 = vmul.f32 %v1642, %v1615
      %v1646 = vsel %vm503, %v1643, 0.0
      %v1647 = vsel %vm503, %v1644, 0.0
      %v1648 = vadd.f32 %v1646, %v1647
      %v1649 = vsel %vm503, %v1645, 0.0
      %v1650 = vadd.f32 %v1648, %v1649
      %v1651 = vrot.slane %v1650, 4
      %v1652 = vadd.f32 %v1650, %v1651
      %v1653 = vrot.slane %v1652, 2
      %v1654 = vadd.f32 %v1652, %v1653
      %v1655 = vrot.slane %v1654, 1
      %v1656 = vadd.f32 %v1654, %v1655
      %v1657 = vmul.f32 %v1656, %v1634
      %v1658 = vadd.f32 %v1657, 1e-05
      %v1659 = vrsqrt.pop %v1658
      %v1660 = vmul.f32 %v1637, %v1659
      %v1661 = vmul.f32 %v1638, %v1659
      %v1662 = vmul.f32 %v1639, %v1659
      %v1663 = vlaneseq
      %v1664 = vshrl.u32 %v1663, 7
      %v1665 = vsub.s32 0, %v1664
      %v1666 = vrot.slane %v368, %v1665
      %v1667 = vmul.f32 %v1660, %v1666
      %v1668 = vmul.f32 %v1661, %v1666
      %v1669 = vmul.f32 %v1662, %v1666
      %v1670 = vlaneseq
      %v1671 = vshrl.u32 %v1670, 7
      %v1672 = vsub.s32 0, %v1671
      %v1673 = vrot.slane %v369, %v1672
      %v1674 = vadd.f32 %v1667, %v1673
      %v1675 = vadd.f32 %v1668, %v1673
      %v1676 = vadd.f32 %v1669, %v1673
      %vm1677 = vcmp.ge.f32.partialorder %v1674, 0.0
      %vm1678 = vcmp.ge.f32.partialorder %v1675, 0.0
      %vm1679 = vcmp.ge.f32.partialorder %v1676, 0.0
      %v1680 = vlaneseq
      %v1681 = vshrl.u32 %v1680, 7
      %v1682 = vsub.s32 0, %v1681
      %v1683 = vrot.slane %v370, %v1682
      %v1684 = vmul.f32 %v1683, %v1674
      %v1685 = vmul.f32 %v1683, %v1675
      %v1686 = vmul.f32 %v1683, %v1676
      %v1687 = vsel %vm1677, %v1674, %v1684
      %v1688 = vsel %vm1678, %v1675, %v1685
      %v1689 = vsel %vm1679, %v1676, %v1686
      %vm1690 = vcmp.gt.f32.partialorder %v351, 0.0
      %vm1691 = vcmp.gt.f32.partialorder %v352, 0.0
      %vm1692 = vcmp.gt.f32.partialorder %v353, 0.0
      %v1693 = vsel %vm1690, 0.0, -1e+30
      %v1694 = vsel %vm1691, 0.0, -1e+30
      %v1695 = vsel %vm1692, 0.0, -1e+30
      %v1696 = vlaneseq
      %v1697 = vshrl.u32 %v1696, 7
      %v1698 = vsub.s32 0, %v1697
      %v1699 = vrot.slane %v1687, %v1698
      %1701 = vset.pattern.permute.xlu0 0
      %1702 = vperm.xlu0 %1701, %v1693
      %v1703 = vpop.permute.xlu0 %1702
      %1706 = vset.pattern.permute.xlu0 0
      %1707 = vperm.xlu0 %1706, %v1694
      %v1708 = vpop.permute.xlu0 %1707
      %1711 = vset.pattern.permute.xlu0 0
      %1712 = vperm.xlu0 %1711, %v1695
      %v1713 = vpop.permute.xlu0 %1712
      %v1715 = vadd.f32 %v1699, %v1703
      %v1716 = vadd.f32 %v1699, %v1708
      %v1717 = vadd.f32 %v1699, %v1713
      %v1718 = vmax.f32 %v1715, -1e+30
      %v1719 = vmax.f32 %v1716, -1e+30
      %v1720 = vmax.f32 %v1717, -1e+30
      %v1721 = vlaneseq
      %v1722 = vshrl.u32 %v1721, 7
      %v1723 = vsub.s32 1, %v1722
      %v1724 = vrot.slane %v1687, %v1723
      %1725 = vset.pattern.permute.xlu0 1
      %1726 = vperm.xlu0 %1725, %v1693
      %v1727 = vpop.permute.xlu0 %1726
      %1729 = vset.pattern.permute.xlu0 1
      %1730 = vperm.xlu0 %1729, %v1694
      %v1731 = vpop.permute.xlu0 %1730
      %1733 = vset.pattern.permute.xlu0 1
      %1734 = vperm.xlu0 %1733, %v1695
      %v1735 = vpop.permute.xlu0 %1734
      %v1737 = vadd.f32 %v1724, %v1727
      %v1738 = vadd.f32 %v1724, %v1731
      %v1739 = vadd.f32 %v1724, %v1735
      %v1740 = vmax.f32 %v1718, %v1737
      %v1741 = vmax.f32 %v1719, %v1738
      %v1742 = vmax.f32 %v1720, %v1739
      %v1743 = vlaneseq
      %v1744 = vshrl.u32 %v1743, 7
      %v1745 = vsub.s32 2, %v1744
      %v1746 = vrot.slane %v1687, %v1745
      %1747 = vset.pattern.permute.xlu0 2
      %1748 = vperm.xlu0 %1747, %v1693
      %v1749 = vpop.permute.xlu0 %1748
      %1751 = vset.pattern.permute.xlu0 2
      %1752 = vperm.xlu0 %1751, %v1694
      %v1753 = vpop.permute.xlu0 %1752
      %1755 = vset.pattern.permute.xlu0 2
      %1756 = vperm.xlu0 %1755, %v1695
      %v1757 = vpop.permute.xlu0 %1756
      %v1759 = vadd.f32 %v1746, %v1749
      %v1760 = vadd.f32 %v1746, %v1753
      %v1761 = vadd.f32 %v1746, %v1757
      %v1762 = vmax.f32 %v1740, %v1759
      %v1763 = vmax.f32 %v1741, %v1760
      %v1764 = vmax.f32 %v1742, %v1761
      %v1765 = vlaneseq
      %v1766 = vshrl.u32 %v1765, 7
      %v1767 = vsub.s32 3, %v1766
      %v1768 = vrot.slane %v1687, %v1767
      %1769 = vset.pattern.permute.xlu0 3
      %1770 = vperm.xlu0 %1769, %v1693
      %v1771 = vpop.permute.xlu0 %1770
      %1773 = vset.pattern.permute.xlu0 3
      %1774 = vperm.xlu0 %1773, %v1694
      %v1775 = vpop.permute.xlu0 %1774
      %1777 = vset.pattern.permute.xlu0 3
      %1778 = vperm.xlu0 %1777, %v1695
      %v1779 = vpop.permute.xlu0 %1778
      %v1781 = vadd.f32 %v1768, %v1771
      %v1782 = vadd.f32 %v1768, %v1775
      %v1783 = vadd.f32 %v1768, %v1779
      %v1784 = vmax.f32 %v1762, %v1781
      %v1785 = vmax.f32 %v1763, %v1782
      %v1786 = vmax.f32 %v1764, %v1783
      %v1787 = vlaneseq
      %v1788 = vshrl.u32 %v1787, 7
      %v1789 = vsub.s32 4, %v1788
      %v1790 = vrot.slane %v1687, %v1789
      %1791 = vset.pattern.permute.xlu0 4
      %1792 = vperm.xlu0 %1791, %v1693
      %v1793 = vpop.permute.xlu0 %1792
      %1795 = vset.pattern.permute.xlu0 4
      %1796 = vperm.xlu0 %1795, %v1694
      %v1797 = vpop.permute.xlu0 %1796
      %1799 = vset.pattern.permute.xlu0 4
      %1800 = vperm.xlu0 %1799, %v1695
      %v1801 = vpop.permute.xlu0 %1800
      %v1803 = vadd.f32 %v1790, %v1793
      %v1804 = vadd.f32 %v1790, %v1797
      %v1805 = vadd.f32 %v1790, %v1801
      %v1806 = vmax.f32 %v1784, %v1803
      %v1807 = vmax.f32 %v1785, %v1804
      %v1808 = vmax.f32 %v1786, %v1805
      %v1809 = vlaneseq
      %v1810 = vshrl.u32 %v1809, 7
      %v1811 = vsub.s32 5, %v1810
      %v1812 = vrot.slane %v1687, %v1811
      %1813 = vset.pattern.permute.xlu0 5
      %1814 = vperm.xlu0 %1813, %v1693
      %v1815 = vpop.permute.xlu0 %1814
      %1817 = vset.pattern.permute.xlu0 5
      %1818 = vperm.xlu0 %1817, %v1694
      %v1819 = vpop.permute.xlu0 %1818
      %1821 = vset.pattern.permute.xlu0 5
      %1822 = vperm.xlu0 %1821, %v1695
      %v1823 = vpop.permute.xlu0 %1822
      %v1825 = vadd.f32 %v1812, %v1815
      %v1826 = vadd.f32 %v1812, %v1819
      %v1827 = vadd.f32 %v1812, %v1823
      %v1828 = vmax.f32 %v1806, %v1825
      %v1829 = vmax.f32 %v1807, %v1826
      %v1830 = vmax.f32 %v1808, %v1827
      %v1831 = vlaneseq
      %v1832 = vshrl.u32 %v1831, 7
      %v1833 = vsub.s32 6, %v1832
      %v1834 = vrot.slane %v1687, %v1833
      %1835 = vset.pattern.permute.xlu0 6
      %1836 = vperm.xlu0 %1835, %v1693
      %v1837 = vpop.permute.xlu0 %1836
      %1839 = vset.pattern.permute.xlu0 6
      %1840 = vperm.xlu0 %1839, %v1694
      %v1841 = vpop.permute.xlu0 %1840
      %1843 = vset.pattern.permute.xlu0 6
      %1844 = vperm.xlu0 %1843, %v1695
      %v1845 = vpop.permute.xlu0 %1844
      %v1847 = vadd.f32 %v1834, %v1837
      %v1848 = vadd.f32 %v1834, %v1841
      %v1849 = vadd.f32 %v1834, %v1845
      %v1850 = vmax.f32 %v1828, %v1847
      %v1851 = vmax.f32 %v1829, %v1848
      %v1852 = vmax.f32 %v1830, %v1849
      %v1853 = vlaneseq
      %v1854 = vshrl.u32 %v1853, 7
      %v1855 = vsub.s32 7, %v1854
      %v1856 = vrot.slane %v1687, %v1855
      %1857 = vset.pattern.permute.xlu0 7
      %1858 = vperm.xlu0 %1857, %v1693
      %v1859 = vpop.permute.xlu0 %1858
      %1861 = vset.pattern.permute.xlu0 7
      %1862 = vperm.xlu0 %1861, %v1694
      %v1863 = vpop.permute.xlu0 %1862
      %1865 = vset.pattern.permute.xlu0 7
      %1866 = vperm.xlu0 %1865, %v1695
      %v1867 = vpop.permute.xlu0 %1866
      %v1869 = vadd.f32 %v1856, %v1859
      %v1870 = vadd.f32 %v1856, %v1863
      %v1871 = vadd.f32 %v1856, %v1867
      %v1872 = vmax.f32 %v1850, %v1869
      %v1873 = vmax.f32 %v1851, %v1870
      %v1874 = vmax.f32 %v1852, %v1871
      %v1875 = vlaneseq
      %v1876 = vshrl.u32 %v1875, 7
      %v1877 = vsub.s32 0, %v1876
      %v1878 = vrot.slane %v1688, %v1877
      %1879 = vset.pattern.permute.xlu0 8
      %1880 = vperm.xlu0 %1879, %v1693
      %v1881 = vpop.permute.xlu0 %1880
      %1883 = vset.pattern.permute.xlu0 8
      %1884 = vperm.xlu0 %1883, %v1694
      %v1885 = vpop.permute.xlu0 %1884
      %1887 = vset.pattern.permute.xlu0 8
      %1888 = vperm.xlu0 %1887, %v1695
      %v1889 = vpop.permute.xlu0 %1888
      %v1891 = vadd.f32 %v1878, %v1881
      %v1892 = vadd.f32 %v1878, %v1885
      %v1893 = vadd.f32 %v1878, %v1889
      %v1894 = vmax.f32 %v1872, %v1891
      %v1895 = vmax.f32 %v1873, %v1892
      %v1896 = vmax.f32 %v1874, %v1893
      %v1897 = vlaneseq
      %v1898 = vshrl.u32 %v1897, 7
      %v1899 = vsub.s32 1, %v1898
      %v1900 = vrot.slane %v1688, %v1899
      %1901 = vset.pattern.permute.xlu0 9
      %1902 = vperm.xlu0 %1901, %v1693
      %v1903 = vpop.permute.xlu0 %1902
      %1905 = vset.pattern.permute.xlu0 9
      %1906 = vperm.xlu0 %1905, %v1694
      %v1907 = vpop.permute.xlu0 %1906
      %1909 = vset.pattern.permute.xlu0 9
      %1910 = vperm.xlu0 %1909, %v1695
      %v1911 = vpop.permute.xlu0 %1910
      %v1913 = vadd.f32 %v1900, %v1903
      %v1914 = vadd.f32 %v1900, %v1907
      %v1915 = vadd.f32 %v1900, %v1911
      %v1916 = vmax.f32 %v1894, %v1913
      %v1917 = vmax.f32 %v1895, %v1914
      %v1918 = vmax.f32 %v1896, %v1915
      %v1919 = vlaneseq
      %v1920 = vshrl.u32 %v1919, 7
      %v1921 = vsub.s32 2, %v1920
      %v1922 = vrot.slane %v1688, %v1921
      %1923 = vset.pattern.permute.xlu0 10
      %1924 = vperm.xlu0 %1923, %v1693
      %v1925 = vpop.permute.xlu0 %1924
      %1927 = vset.pattern.permute.xlu0 10
      %1928 = vperm.xlu0 %1927, %v1694
      %v1929 = vpop.permute.xlu0 %1928
      %1931 = vset.pattern.permute.xlu0 10
      %1932 = vperm.xlu0 %1931, %v1695
      %v1933 = vpop.permute.xlu0 %1932
      %v1935 = vadd.f32 %v1922, %v1925
      %v1936 = vadd.f32 %v1922, %v1929
      %v1937 = vadd.f32 %v1922, %v1933
      %v1938 = vmax.f32 %v1916, %v1935
      %v1939 = vmax.f32 %v1917, %v1936
      %v1940 = vmax.f32 %v1918, %v1937
      %v1941 = vlaneseq
      %v1942 = vshrl.u32 %v1941, 7
      %v1943 = vsub.s32 3, %v1942
      %v1944 = vrot.slane %v1688, %v1943
      %1945 = vset.pattern.permute.xlu0 11
      %1946 = vperm.xlu0 %1945, %v1693
      %v1947 = vpop.permute.xlu0 %1946
      %1949 = vset.pattern.permute.xlu0 11
      %1950 = vperm.xlu0 %1949, %v1694
      %v1951 = vpop.permute.xlu0 %1950
      %1953 = vset.pattern.permute.xlu0 11
      %1954 = vperm.xlu0 %1953, %v1695
      %v1955 = vpop.permute.xlu0 %1954
      %v1957 = vadd.f32 %v1944, %v1947
      %v1958 = vadd.f32 %v1944, %v1951
      %v1959 = vadd.f32 %v1944, %v1955
      %v1960 = vmax.f32 %v1938, %v1957
      %v1961 = vmax.f32 %v1939, %v1958
      %v1962 = vmax.f32 %v1940, %v1959
      %v1963 = vlaneseq
      %v1964 = vshrl.u32 %v1963, 7
      %v1965 = vsub.s32 4, %v1964
      %v1966 = vrot.slane %v1688, %v1965
      %1967 = vset.pattern.permute.xlu0 12
      %1968 = vperm.xlu0 %1967, %v1693
      %v1969 = vpop.permute.xlu0 %1968
      %1971 = vset.pattern.permute.xlu0 12
      %1972 = vperm.xlu0 %1971, %v1694
      %v1973 = vpop.permute.xlu0 %1972
      %1975 = vset.pattern.permute.xlu0 12
      %1976 = vperm.xlu0 %1975, %v1695
      %v1977 = vpop.permute.xlu0 %1976
      %v1979 = vadd.f32 %v1966, %v1969
      %v1980 = vadd.f32 %v1966, %v1973
      %v1981 = vadd.f32 %v1966, %v1977
      %v1982 = vmax.f32 %v1960, %v1979
      %v1983 = vmax.f32 %v1961, %v1980
      %v1984 = vmax.f32 %v1962, %v1981
      %v1985 = vlaneseq
      %v1986 = vshrl.u32 %v1985, 7
      %v1987 = vsub.s32 5, %v1986
      %v1988 = vrot.slane %v1688, %v1987
      %1989 = vset.pattern.permute.xlu0 13
      %1990 = vperm.xlu0 %1989, %v1693
      %v1991 = vpop.permute.xlu0 %1990
      %1993 = vset.pattern.permute.xlu0 13
      %1994 = vperm.xlu0 %1993, %v1694
      %v1995 = vpop.permute.xlu0 %1994
      %1997 = vset.pattern.permute.xlu0 13
      %1998 = vperm.xlu0 %1997, %v1695
      %v1999 = vpop.permute.xlu0 %1998
      %v2001 = vadd.f32 %v1988, %v1991
      %v2002 = vadd.f32 %v1988, %v1995
      %v2003 = vadd.f32 %v1988, %v1999
      %v2004 = vmax.f32 %v1982, %v2001
      %v2005 = vmax.f32 %v1983, %v2002
      %v2006 = vmax.f32 %v1984, %v2003
      %v2007 = vlaneseq
      %v2008 = vshrl.u32 %v2007, 7
      %v2009 = vsub.s32 6, %v2008
      %v2010 = vrot.slane %v1688, %v2009
      %2011 = vset.pattern.permute.xlu0 14
      %2012 = vperm.xlu0 %2011, %v1693
      %v2013 = vpop.permute.xlu0 %2012
      %2015 = vset.pattern.permute.xlu0 14
      %2016 = vperm.xlu0 %2015, %v1694
      %v2017 = vpop.permute.xlu0 %2016
      %2019 = vset.pattern.permute.xlu0 14
      %2020 = vperm.xlu0 %2019, %v1695
      %v2021 = vpop.permute.xlu0 %2020
      %v2023 = vadd.f32 %v2010, %v2013
      %v2024 = vadd.f32 %v2010, %v2017
      %v2025 = vadd.f32 %v2010, %v2021
      %v2026 = vmax.f32 %v2004, %v2023
      %v2027 = vmax.f32 %v2005, %v2024
      %v2028 = vmax.f32 %v2006, %v2025
      %v2029 = vlaneseq
      %v2030 = vshrl.u32 %v2029, 7
      %v2031 = vsub.s32 7, %v2030
      %v2032 = vrot.slane %v1688, %v2031
      %2033 = vset.pattern.permute.xlu0 15
      %2034 = vperm.xlu0 %2033, %v1693
      %v2035 = vpop.permute.xlu0 %2034
      %2037 = vset.pattern.permute.xlu0 15
      %2038 = vperm.xlu0 %2037, %v1694
      %v2039 = vpop.permute.xlu0 %2038
      %2041 = vset.pattern.permute.xlu0 15
      %2042 = vperm.xlu0 %2041, %v1695
      %v2043 = vpop.permute.xlu0 %2042
      %v2045 = vadd.f32 %v2032, %v2035
      %v2046 = vadd.f32 %v2032, %v2039
      %v2047 = vadd.f32 %v2032, %v2043
      %v2048 = vmax.f32 %v2026, %v2045
      %v2049 = vmax.f32 %v2027, %v2046
      %v2050 = vmax.f32 %v2028, %v2047
      %v2051 = vlaneseq
      %v2052 = vshrl.u32 %v2051, 7
      %v2053 = vsub.s32 0, %v2052
      %v2054 = vrot.slane %v1689, %v2053
      %2055 = vset.pattern.permute.xlu0 16
      %2056 = vperm.xlu0 %2055, %v1693
      %v2057 = vpop.permute.xlu0 %2056
      %2059 = vset.pattern.permute.xlu0 16
      %2060 = vperm.xlu0 %2059, %v1694
      %v2061 = vpop.permute.xlu0 %2060
      %2063 = vset.pattern.permute.xlu0 16
      %2064 = vperm.xlu0 %2063, %v1695
      %v2065 = vpop.permute.xlu0 %2064
      %v2067 = vadd.f32 %v2054, %v2057
      %v2068 = vadd.f32 %v2054, %v2061
      %v2069 = vadd.f32 %v2054, %v2065
      %v2070 = vmax.f32 %v2048, %v2067
      %v2071 = vmax.f32 %v2049, %v2068
      %v2072 = vmax.f32 %v2050, %v2069
      %v2073 = vlaneseq
      %v2074 = vshrl.u32 %v2073, 7
      %v2075 = vsub.s32 1, %v2074
      %v2076 = vrot.slane %v1689, %v2075
      %2077 = vset.pattern.permute.xlu0 17
      %2078 = vperm.xlu0 %2077, %v1693
      %v2079 = vpop.permute.xlu0 %2078
      %2081 = vset.pattern.permute.xlu0 17
      %2082 = vperm.xlu0 %2081, %v1694
      %v2083 = vpop.permute.xlu0 %2082
      %2085 = vset.pattern.permute.xlu0 17
      %2086 = vperm.xlu0 %2085, %v1695
      %v2087 = vpop.permute.xlu0 %2086
      %v2089 = vadd.f32 %v2076, %v2079
      %v2090 = vadd.f32 %v2076, %v2083
      %v2091 = vadd.f32 %v2076, %v2087
      %v2092 = vmax.f32 %v2070, %v2089
      %v2093 = vmax.f32 %v2071, %v2090
      %v2094 = vmax.f32 %v2072, %v2091
      %v2095 = vlaneseq
      %v2096 = vshrl.u32 %v2095, 7
      %v2097 = vsub.s32 2, %v2096
      %v2098 = vrot.slane %v1689, %v2097
      %2099 = vset.pattern.permute.xlu0 18
      %2100 = vperm.xlu0 %2099, %v1693
      %v2101 = vpop.permute.xlu0 %2100
      %2103 = vset.pattern.permute.xlu0 18
      %2104 = vperm.xlu0 %2103, %v1694
      %v2105 = vpop.permute.xlu0 %2104
      %2107 = vset.pattern.permute.xlu0 18
      %2108 = vperm.xlu0 %2107, %v1695
      %v2109 = vpop.permute.xlu0 %2108
      %v2111 = vadd.f32 %v2098, %v2101
      %v2112 = vadd.f32 %v2098, %v2105
      %v2113 = vadd.f32 %v2098, %v2109
      %v2114 = vmax.f32 %v2092, %v2111
      %v2115 = vmax.f32 %v2093, %v2112
      %v2116 = vmax.f32 %v2094, %v2113
      %v2117 = vlaneseq
      %v2118 = vshrl.u32 %v2117, 7
      %v2119 = vsub.s32 3, %v2118
      %v2120 = vrot.slane %v1689, %v2119
      %2121 = vset.pattern.permute.xlu0 19
      %2122 = vperm.xlu0 %2121, %v1693
      %v2123 = vpop.permute.xlu0 %2122
      %2125 = vset.pattern.permute.xlu0 19
      %2126 = vperm.xlu0 %2125, %v1694
      %v2127 = vpop.permute.xlu0 %2126
      %2129 = vset.pattern.permute.xlu0 19
      %2130 = vperm.xlu0 %2129, %v1695
      %v2131 = vpop.permute.xlu0 %2130
      %v2133 = vadd.f32 %v2120, %v2123
      %v2134 = vadd.f32 %v2120, %v2127
      %v2135 = vadd.f32 %v2120, %v2131
      %v2136 = vmax.f32 %v2114, %v2133
      %v2137 = vmax.f32 %v2115, %v2134
      %v2138 = vmax.f32 %v2116, %v2135
      %v2139 = vlaneseq
      %v2140 = vshrl.u32 %v2139, 7
      %v2141 = vsub.s32 4, %v2140
      %v2142 = vrot.slane %v1689, %v2141
      %2143 = vset.pattern.permute.xlu0 20
      %2144 = vperm.xlu0 %2143, %v1693
      %v2145 = vpop.permute.xlu0 %2144
      %2147 = vset.pattern.permute.xlu0 20
      %2148 = vperm.xlu0 %2147, %v1694
      %v2149 = vpop.permute.xlu0 %2148
      %2151 = vset.pattern.permute.xlu0 20
      %2152 = vperm.xlu0 %2151, %v1695
      %v2153 = vpop.permute.xlu0 %2152
      %v2155 = vadd.f32 %v2142, %v2145
      %v2156 = vadd.f32 %v2142, %v2149
      %v2157 = vadd.f32 %v2142, %v2153
      %v2158 = vmax.f32 %v2136, %v2155
      %v2159 = vmax.f32 %v2137, %v2156
      %v2160 = vmax.f32 %v2138, %v2157
      %v2161 = vlaneseq
      %v2162 = vshrl.u32 %v2161, 7
      %v2163 = vsub.s32 5, %v2162
      %v2164 = vrot.slane %v1689, %v2163
      %2165 = vset.pattern.permute.xlu0 21
      %2166 = vperm.xlu0 %2165, %v1693
      %v2167 = vpop.permute.xlu0 %2166
      %2169 = vset.pattern.permute.xlu0 21
      %2170 = vperm.xlu0 %2169, %v1694
      %v2171 = vpop.permute.xlu0 %2170
      %2173 = vset.pattern.permute.xlu0 21
      %2174 = vperm.xlu0 %2173, %v1695
      %v2175 = vpop.permute.xlu0 %2174
      %v2177 = vadd.f32 %v2164, %v2167
      %v2178 = vadd.f32 %v2164, %v2171
      %v2179 = vadd.f32 %v2164, %v2175
      %v2180 = vmax.f32 %v2158, %v2177
      %v2181 = vmax.f32 %v2159, %v2178
      %v2182 = vmax.f32 %v2160, %v2179
      %v2183 = vlaneseq
      %v2184 = vshrl.u32 %v2183, 7
      %v2185 = vsub.s32 6, %v2184
      %v2186 = vrot.slane %v1689, %v2185
      %2187 = vset.pattern.permute.xlu0 22
      %2188 = vperm.xlu0 %2187, %v1693
      %v2189 = vpop.permute.xlu0 %2188
      %2191 = vset.pattern.permute.xlu0 22
      %2192 = vperm.xlu0 %2191, %v1694
      %v2193 = vpop.permute.xlu0 %2192
      %2195 = vset.pattern.permute.xlu0 22
      %2196 = vperm.xlu0 %2195, %v1695
      %v2197 = vpop.permute.xlu0 %2196
      %v2199 = vadd.f32 %v2186, %v2189
      %v2200 = vadd.f32 %v2186, %v2193
      %v2201 = vadd.f32 %v2186, %v2197
      %v2202 = vmax.f32 %v2180, %v2199
      %v2203 = vmax.f32 %v2181, %v2200
      %v2204 = vmax.f32 %v2182, %v2201
      %v2205 = vlaneseq
      %v2206 = vshrl.u32 %v2205, 7
      %v2207 = vsub.s32 7, %v2206
      %v2208 = vrot.slane %v1689, %v2207
      %2209 = vset.pattern.permute.xlu0 23
      %2210 = vperm.xlu0 %2209, %v1693
      %v2211 = vpop.permute.xlu0 %2210
      %2213 = vset.pattern.permute.xlu0 23
      %2214 = vperm.xlu0 %2213, %v1694
      %v2215 = vpop.permute.xlu0 %2214
      %2217 = vset.pattern.permute.xlu0 23
      %2218 = vperm.xlu0 %2217, %v1695
      %v2219 = vpop.permute.xlu0 %2218
      %v2221 = vadd.f32 %v2208, %v2211
      %v2222 = vadd.f32 %v2208, %v2215
      %v2223 = vadd.f32 %v2208, %v2219
      %v2224 = vmax.f32 %v2202, %v2221
      %v2225 = vmax.f32 %v2203, %v2222
      %v2226 = vmax.f32 %v2204, %v2223
      %v2227 = vsel %vm617, %v351, 0.0
      %2228 = vadd.xlane.f32.xlu0 %v2227
      %v2229 = vpop.xlane.xlu0 %2228
      %v2230 = vsel %vm617, %v352, 0.0
      %2231 = vadd.xlane.f32.xlu0 %v2230
      %v2232 = vpop.xlane.xlu0 %2231
      %v2233 = vsel %vm617, %v353, 0.0
      %2234 = vadd.xlane.f32.xlu0 %v2233
      %v2235 = vpop.xlane.xlu0 %2234
      %vm2236 = vcmp.gt.f32.partialorder %v2229, 0.0
      %vm2237 = vcmp.gt.f32.partialorder %v2232, 0.0
      %vm2238 = vcmp.gt.f32.partialorder %v2235, 0.0
      %v2239 = vsel %vm2236, 1, 0
      %v2240 = vsel %vm2237, 1, 0
      %v2241 = vsel %vm2238, 1, 0
      %vm2242 = vcmp.eq.s32.totalorder %v2239, 1
      %vm2243 = vcmp.eq.s32.totalorder %v2240, 1
      %vm2244 = vcmp.eq.s32.totalorder %v2241, 1
      %v2245 = vsel %vm2242, %v2224, 0.0
      %v2246 = vsel %vm2243, %v2225, 0.0
      %v2247 = vsel %vm2244, %v2226, 0.0
      %2251 = vrot.lane.b32.xlu0 %v1687, 32
      %v2252 = vpop.permute.xlu0 %2251
      %2253 = vrot.lane.b32.xlu0 %v1688, 32
      %v2254 = vpop.permute.xlu0 %2253
      %2255 = vrot.lane.b32.xlu0 %v1689, 32
      %v2256 = vpop.permute.xlu0 %2255
      %v2260 = vsel %vm503, %v2245, %v2252
      %v2261 = vsel %vm503, %v2246, %v2254
      %v2262 = vsel %vm503, %v2247, %v2256
      %v2263 = vlaneseq
      %v2264 = vshrl.u32 %v2263, 7
      %v2265 = vsub.s32 0, %v2264
      %v2266 = vrot.slane %v371, %v2265
      %vm2267 = vcmask 523264
      %v2269 = vsel %vm2267, %v2260, 0
      %v2272 = vsel %vm2267, %v2261, 0
      %v2275 = vsel %vm2267, %v2262, 0
      %2277 = vmatprep.subr.mxu0 0.0
      %2278 = vmatpush1.msra.mxu0 0.0
      %2279 = vmatprep.subr.mxu0 0.0
      %2280 = vmatpush1.msra.mxu0 0.0
      %2281 = vmatprep.subr.mxu0 0.0
      %2282 = vmatpush1.msra.mxu0 0.0
      %2283 = vmatprep.subr.mxu0 0.0
      %2284 = vmatpush1.msra.mxu0 0.0
      %2285 = vmatprep.subr.mxu0 0.0
      %2286 = vmatpush1.msra.mxu0 0.0
      %2287 = vmatprep.subr.mxu0 0.0
      %2288 = vmatpush1.msra.mxu0 0.0
      %2289 = vmatprep.subr.mxu0 0.0
      %2290 = vmatpush1.msra.mxu0 0.0
      %2291 = vmatprep.subr.mxu0 0.0
      %2292 = vmatpush1.msra.mxu0 0.0
      %2293 = vmatprep.subr.mxu0 0.0
      %2294 = vmatpush1.msra.mxu0 %v365
      %2295 = vmatprep.subr.mxu0 0.0
      %2296 = vmatpush1.msra.mxu0 %v364
      %2297 = vmatprep.subr.mxu0 0.0
      %2298 = vmatpush1.msra.mxu0 %v363
      %2299 = vmatprep.subr.mxu0 0.0
      %2300 = vmatpush1.msra.mxu0 %v362
      %2301 = vmatprep.subr.mxu0 0.0
      %2302 = vmatpush1.msra.mxu0 %v361
      %2303 = vmatprep.subr.mxu0 0.0
      %2304 = vmatpush1.msra.mxu0 %v360
      %2305 = vmatprep.subr.mxu0 0.0
      %2306 = vmatpush1.msra.mxu0 %v359
      %2307 = vmatprep.subr.mxu0 0.0
      %2308 = vmatpush1.msra.mxu0 %v358
      %2309 = vmatprep.subr.mxu0 0.0
      %2310 = vmatpush2.msra.mxu0 0.0
      %2311 = vmatprep.subr.mxu0 0.0
      %2312 = vmatpush2.msra.mxu0 0.0
      %2313 = vmatprep.subr.mxu0 0.0
      %2314 = vmatpush2.msra.mxu0 0.0
      %2315 = vmatprep.subr.mxu0 0.0
      %2316 = vmatpush2.msra.mxu0 0.0
      %2317 = vmatprep.subr.mxu0 0.0
      %2318 = vmatpush2.msra.mxu0 0.0
      %2319 = vmatprep.subr.mxu0 0.0
      %2320 = vmatpush2.msra.mxu0 0.0
      %2321 = vmatprep.subr.mxu0 0.0
      %2322 = vmatpush2.msra.mxu0 0.0
      %2323 = vmatprep.subr.mxu0 0.0
      %2324 = vmatpush2.msra.mxu0 0.0
      %2325 = vmatprep.subr.mxu0 0.0
      %2326 = vmatpush2.msra.mxu0 0.0
      %2327 = vmatprep.subr.mxu0 0.0
      %2328 = vmatpush2.msra.mxu0 0.0
      %2329 = vmatprep.subr.mxu0 0.0
      %2330 = vmatpush2.msra.mxu0 0.0
      %2331 = vmatprep.subr.mxu0 0.0
      %2332 = vmatpush2.msra.mxu0 0.0
      %2333 = vmatprep.subr.mxu0 0.0
      %2334 = vmatpush2.msra.mxu0 0.0
      %2335 = vmatprep.subr.mxu0 0.0
      %2336 = vmatpush2.msra.mxu0 0.0
      %2337 = vmatprep.subr.mxu0 0.0
      %2338 = vmatpush2.msra.mxu0 0.0
      %2339 = vmatprep.subr.mxu0 0.0
      %2340 = vmatpush2.msra.mxu0 0.0
      %2341 = vmatprep.mubr.f32.mxu0 0.0
      %2342 = vmatmul.mubr.f32.gmra.mxu0 %v2269
      %v2343 = vpop.f32.mrf.mxu0
      %v2344 = vadd.f32 %v2266, %v2343
      %v2345 = vpop.f32.mrf.mxu0
      %2346 = vmatprep.mubr.f32.mxu0 0.0
      %2347 = vmatmul.mubr.f32.gmra.mxu0 %v2272
      %v2348 = vpop.f32.mrf.mxu0
      %v2349 = vadd.f32 %v2266, %v2348
      %v2350 = vpop.f32.mrf.mxu0
      %2351 = vmatprep.mubr.f32.mxu0 0.0
      %2352 = vmatmul.mubr.f32.gmra.mxu0 %v2275
      %v2353 = vpop.f32.mrf.mxu0
      %v2354 = vadd.f32 %v2266, %v2353
      %v2355 = vpop.f32.mrf.mxu0
      %2356 = vdwg.mxu0
      %v2357 = vmul.f32 %v2344, %v1605
      %v2358 = vmul.f32 %v2349, %v1610
      %v2359 = vmul.f32 %v2354, %v1615
      %v2360 = vsel %vm503, %v2357, 0.0
      %v2361 = vsel %vm503, %v2358, 0.0
      %v2362 = vadd.f32 %v2360, %v2361
      %v2363 = vsel %vm503, %v2359, 0.0
      %v2364 = vadd.f32 %v2362, %v2363
      %v2365 = vrot.slane %v2364, 4
      %v2366 = vadd.f32 %v2364, %v2365
      %v2367 = vrot.slane %v2366, 2
      %v2368 = vadd.f32 %v2366, %v2367
      %v2369 = vrot.slane %v2368, 1
      %v2370 = vadd.f32 %v2368, %v2369
      %v2371 = vmul.f32 %v2370, %v1634
      %v2372 = vsub.f32 %v2344, %v2371
      %v2373 = vsub.f32 %v2349, %v2371
      %v2374 = vsub.f32 %v2354, %v2371
      %v2375 = vmul.f32 %v2372, %v2372
      %v2376 = vmul.f32 %v2373, %v2373
      %v2377 = vmul.f32 %v2374, %v2374
      %v2378 = vmul.f32 %v2375, %v1605
      %v2379 = vmul.f32 %v2376, %v1610
      %v2380 = vmul.f32 %v2377, %v1615
      %v2381 = vsel %vm503, %v2378, 0.0
      %v2382 = vsel %vm503, %v2379, 0.0
      %v2383 = vadd.f32 %v2381, %v2382
      %v2384 = vsel %vm503, %v2380, 0.0
      %v2385 = vadd.f32 %v2383, %v2384
      %v2386 = vrot.slane %v2385, 4
      %v2387 = vadd.f32 %v2385, %v2386
      %v2388 = vrot.slane %v2387, 2
      %v2389 = vadd.f32 %v2387, %v2388
      %v2390 = vrot.slane %v2389, 1
      %v2391 = vadd.f32 %v2389, %v2390
      %v2392 = vmul.f32 %v2391, %v1634
      %v2393 = vadd.f32 %v2392, 1e-05
      %v2394 = vrsqrt.pop %v2393
      %v2395 = vmul.f32 %v2372, %v2394
      %v2396 = vmul.f32 %v2373, %v2394
      %v2397 = vmul.f32 %v2374, %v2394
      %v2398 = vlaneseq
      %v2399 = vshrl.u32 %v2398, 7
      %v2400 = vsub.s32 0, %v2399
      %v2401 = vrot.slane %v372, %v2400
      %v2402 = vmul.f32 %v2395, %v2401
      %v2403 = vmul.f32 %v2396, %v2401
      %v2404 = vmul.f32 %v2397, %v2401
      %v2405 = vlaneseq
      %v2406 = vshrl.u32 %v2405, 7
      %v2407 = vsub.s32 0, %v2406
      %v2408 = vrot.slane %v373, %v2407
      %v2409 = vadd.f32 %v2402, %v2408
      %v2410 = vadd.f32 %v2403, %v2408
      %v2411 = vadd.f32 %v2404, %v2408
      %vm2412 = vcmp.ge.f32.partialorder %v2409, 0.0
      %vm2413 = vcmp.ge.f32.partialorder %v2410, 0.0
      %vm2414 = vcmp.ge.f32.partialorder %v2411, 0.0
      %v2415 = vlaneseq
      %v2416 = vshrl.u32 %v2415, 7
      %v2417 = vsub.s32 0, %v2416
      %v2418 = vrot.slane %v374, %v2417
      %v2419 = vmul.f32 %v2418, %v2409
      %v2420 = vmul.f32 %v2418, %v2410
      %v2421 = vmul.f32 %v2418, %v2411
      %v2422 = vsel %vm2412, %v2409, %v2419
      %v2423 = vsel %vm2413, %v2410, %v2420
      %v2424 = vsel %vm2414, %v2411, %v2421
      %v2426 = vsel %vm617, %v351, 0
      %v2429 = vsel %vm617, %v352, 0
      %v2432 = vsel %vm617, %v353, 0
      %2434 = vmatprep.subr.mxu0 0.0
      %2435 = vmatpush1.msra.mxu0 0.0
      %2436 = vmatprep.subr.mxu0 0.0
      %2437 = vmatpush1.msra.mxu0 0.0
      %2438 = vmatprep.subr.mxu0 0.0
      %2439 = vmatpush1.msra.mxu0 0.0
      %2440 = vmatprep.subr.mxu0 0.0
      %2441 = vmatpush1.msra.mxu0 0.0
      %2442 = vmatprep.subr.mxu0 0.0
      %2443 = vmatpush1.msra.mxu0 0.0
      %2444 = vmatprep.subr.mxu0 0.0
      %2445 = vmatpush1.msra.mxu0 0.0
      %2446 = vmatprep.subr.mxu0 0.0
      %2447 = vmatpush1.msra.mxu0 0.0
      %2448 = vmatprep.subr.mxu0 0.0
      %2449 = vmatpush1.msra.mxu0 0.0
      %2450 = vmatprep.subr.mxu0 0.0
      %2451 = vmatpush1.msra.mxu0 0.0
      %2452 = vmatprep.subr.mxu0 0.0
      %2453 = vmatpush1.msra.mxu0 0.0
      %2454 = vmatprep.subr.mxu0 0.0
      %2455 = vmatpush1.msra.mxu0 0.0
      %2456 = vmatprep.subr.mxu0 0.0
      %2457 = vmatpush1.msra.mxu0 0.0
      %2458 = vmatprep.subr.mxu0 0.0
      %2459 = vmatpush1.msra.mxu0 0.0
      %2460 = vmatprep.subr.mxu0 0.0
      %2461 = vmatpush1.msra.mxu0 %v2424
      %2462 = vmatprep.subr.mxu0 0.0
      %2463 = vmatpush1.msra.mxu0 %v2423
      %2464 = vmatprep.subr.mxu0 0.0
      %2465 = vmatpush1.msra.mxu0 %v2422
      %2466 = vmatprep.subr.mxu0 0.0
      %2467 = vmatpush2.msra.mxu0 0.0
      %2468 = vmatprep.subr.mxu0 0.0
      %2469 = vmatpush2.msra.mxu0 0.0
      %2470 = vmatprep.subr.mxu0 0.0
      %2471 = vmatpush2.msra.mxu0 0.0
      %2472 = vmatprep.subr.mxu0 0.0
      %2473 = vmatpush2.msra.mxu0 0.0
      %2474 = vmatprep.subr.mxu0 0.0
      %2475 = vmatpush2.msra.mxu0 0.0
      %2476 = vmatprep.subr.mxu0 0.0
      %2477 = vmatpush2.msra.mxu0 0.0
      %2478 = vmatprep.subr.mxu0 0.0
      %2479 = vmatpush2.msra.mxu0 0.0
      %2480 = vmatprep.subr.mxu0 0.0
      %2481 = vmatpush2.msra.mxu0 0.0
      %2482 = vmatprep.subr.mxu0 0.0
      %2483 = vmatpush2.msra.mxu0 0.0
      %2484 = vmatprep.subr.mxu0 0.0
      %2485 = vmatpush2.msra.mxu0 0.0
      %2486 = vmatprep.subr.mxu0 0.0
      %2487 = vmatpush2.msra.mxu0 0.0
      %2488 = vmatprep.subr.mxu0 0.0
      %2489 = vmatpush2.msra.mxu0 0.0
      %2490 = vmatprep.subr.mxu0 0.0
      %2491 = vmatpush2.msra.mxu0 0.0
      %2492 = vmatprep.subr.mxu0 0.0
      %2493 = vmatpush2.msra.mxu0 0.0
      %2494 = vmatprep.subr.mxu0 0.0
      %2495 = vmatpush2.msra.mxu0 0.0
      %2496 = vmatprep.subr.mxu0 0.0
      %2497 = vmatpush2.msra.mxu0 0.0
      %2498 = vmatprep.mubr.f32.mxu0 0.0
      %2499 = vmatmul.mubr.f32.gmra.mxu0 %v2426
      %v2500 = vpop.f32.mrf.mxu0
      %v2501 = vadd.f32 0.0, %v2500
      %v2502 = vpop.f32.mrf.mxu0
      %2503 = vmatprep.mubr.f32.mxu0 0.0
      %2504 = vmatmul.mubr.f32.gmra.mxu0 %v2429
      %v2505 = vpop.f32.mrf.mxu0
      %v2506 = vadd.f32 0.0, %v2505
      %v2507 = vpop.f32.mrf.mxu0
      %2508 = vmatprep.mubr.f32.mxu0 0.0
      %2509 = vmatmul.mubr.f32.gmra.mxu0 %v2432
      %v2510 = vpop.f32.mrf.mxu0
      %v2511 = vadd.f32 0.0, %v2510
      %v2512 = vpop.f32.mrf.mxu0
      %2513 = vdwg.mxu0
      %2517 = vrot.lane.b32.xlu0 %v2422, 32
      %v2518 = vpop.permute.xlu0 %2517
      %2519 = vrot.lane.b32.xlu0 %v2423, 32
      %v2520 = vpop.permute.xlu0 %2519
      %2521 = vrot.lane.b32.xlu0 %v2424, 32
      %v2522 = vpop.permute.xlu0 %2521
      %v2526 = vsel %vm503, %v2501, %v2518
      %v2527 = vsel %vm503, %v2506, %v2520
      %v2528 = vsel %vm503, %v2511, %v2522
      %v2529 = vlaneseq
      %v2530 = vshrl.u32 %v2529, 7
      %v2531 = vsub.s32 0, %v2530
      %v2532 = vrot.slane %v375, %v2531
      %v2534 = vsel %vm2267, %v2526, 0
      %v2537 = vsel %vm2267, %v2527, 0
      %v2540 = vsel %vm2267, %v2528, 0
      %2542 = vmatprep.subr.mxu0 0.0
      %2543 = vmatpush1.msra.mxu0 0.0
      %2544 = vmatprep.subr.mxu0 0.0
      %2545 = vmatpush1.msra.mxu0 0.0
      %2546 = vmatprep.subr.mxu0 0.0
      %2547 = vmatpush1.msra.mxu0 0.0
      %2548 = vmatprep.subr.mxu0 0.0
      %2549 = vmatpush1.msra.mxu0 0.0
      %2550 = vmatprep.subr.mxu0 0.0
      %2551 = vmatpush1.msra.mxu0 0.0
      %2552 = vmatprep.subr.mxu0 0.0
      %2553 = vmatpush1.msra.mxu0 0.0
      %2554 = vmatprep.subr.mxu0 0.0
      %2555 = vmatpush1.msra.mxu0 0.0
      %2556 = vmatprep.subr.mxu0 0.0
      %2557 = vmatpush1.msra.mxu0 0.0
      %2558 = vmatprep.subr.mxu0 0.0
      %2559 = vmatpush1.msra.mxu0 %v383
      %2560 = vmatprep.subr.mxu0 0.0
      %2561 = vmatpush1.msra.mxu0 %v382
      %2562 = vmatprep.subr.mxu0 0.0
      %2563 = vmatpush1.msra.mxu0 %v381
      %2564 = vmatprep.subr.mxu0 0.0
      %2565 = vmatpush1.msra.mxu0 %v380
      %2566 = vmatprep.subr.mxu0 0.0
      %2567 = vmatpush1.msra.mxu0 %v379
      %2568 = vmatprep.subr.mxu0 0.0
      %2569 = vmatpush1.msra.mxu0 %v378
      %2570 = vmatprep.subr.mxu0 0.0
      %2571 = vmatpush1.msra.mxu0 %v377
      %2572 = vmatprep.subr.mxu0 0.0
      %2573 = vmatpush1.msra.mxu0 %v376
      %2574 = vmatprep.subr.mxu0 0.0
      %2575 = vmatpush2.msra.mxu0 0.0
      %2576 = vmatprep.subr.mxu0 0.0
      %2577 = vmatpush2.msra.mxu0 0.0
      %2578 = vmatprep.subr.mxu0 0.0
      %2579 = vmatpush2.msra.mxu0 0.0
      %2580 = vmatprep.subr.mxu0 0.0
      %2581 = vmatpush2.msra.mxu0 0.0
      %2582 = vmatprep.subr.mxu0 0.0
      %2583 = vmatpush2.msra.mxu0 0.0
      %2584 = vmatprep.subr.mxu0 0.0
      %2585 = vmatpush2.msra.mxu0 0.0
      %2586 = vmatprep.subr.mxu0 0.0
      %2587 = vmatpush2.msra.mxu0 0.0
      %2588 = vmatprep.subr.mxu0 0.0
      %2589 = vmatpush2.msra.mxu0 0.0
      %2590 = vmatprep.subr.mxu0 0.0
      %2591 = vmatpush2.msra.mxu0 0.0
      %2592 = vmatprep.subr.mxu0 0.0
      %2593 = vmatpush2.msra.mxu0 0.0
      %2594 = vmatprep.subr.mxu0 0.0
      %2595 = vmatpush2.msra.mxu0 0.0
      %2596 = vmatprep.subr.mxu0 0.0
      %2597 = vmatpush2.msra.mxu0 0.0
      %2598 = vmatprep.subr.mxu0 0.0
      %2599 = vmatpush2.msra.mxu0 0.0
      %2600 = vmatprep.subr.mxu0 0.0
      %2601 = vmatpush2.msra.mxu0 0.0
      %2602 = vmatprep.subr.mxu0 0.0
      %2603 = vmatpush2.msra.mxu0 0.0
      %2604 = vmatprep.subr.mxu0 0.0
      %2605 = vmatpush2.msra.mxu0 0.0
      %2606 = vmatprep.mubr.f32.mxu0 0.0
      %2607 = vmatmul.mubr.f32.gmra.mxu0 %v2534
      %v2608 = vpop.f32.mrf.mxu0
      %v2609 = vadd.f32 %v2532, %v2608
      %v2610 = vpop.f32.mrf.mxu0
      %2611 = vmatprep.mubr.f32.mxu0 0.0
      %2612 = vmatmul.mubr.f32.gmra.mxu0 %v2537
      %v2613 = vpop.f32.mrf.mxu0
      %v2614 = vadd.f32 %v2532, %v2613
      %v2615 = vpop.f32.mrf.mxu0
      %2616 = vmatprep.mubr.f32.mxu0 0.0
      %2617 = vmatmul.mubr.f32.gmra.mxu0 %v2540
      %v2618 = vpop.f32.mrf.mxu0
      %v2619 = vadd.f32 %v2532, %v2618
      %v2620 = vpop.f32.mrf.mxu0
      %2621 = vdwg.mxu0
      %2623 = vset.pattern.permute.xlu0 0
      %2624 = vperm.xlu0 %2623, %v2609
      %v2625 = vpop.permute.xlu0 %2624
      %2628 = vset.pattern.permute.xlu0 0
      %2629 = vperm.xlu0 %2628, %v2614
      %v2630 = vpop.permute.xlu0 %2629
      %2633 = vset.pattern.permute.xlu0 0
      %2634 = vperm.xlu0 %2633, %v2619
      %v2635 = vpop.permute.xlu0 %2634
      %v2637 = vsel %vm596, %v2625, -1e+30
      %v2638 = vsel %vm597, %v2630, -1e+30
      %v2639 = vsel %vm598, %v2635, -1e+30
      %v2640 = vsel %vm617, %v2637, -inf
      %v2641 = vsel %vm617, %v2638, -inf
      %v2642 = vsel %vm617, %v2639, -inf
      %v2643 = vmax.f32 %v2640, %v2641
      %v2644 = vmax.f32 %v2643, %v2642
      %v2645 = vrot.slane %v2644, 4
      %v2646 = vmax.f32 %v2644, %v2645
      %v2647 = vrot.slane %v2646, 2
      %v2648 = vmax.f32 %v2646, %v2647
      %v2649 = vrot.slane %v2648, 1
      %v2650 = vmax.f32 %v2648, %v2649
      %v2651 = vsel %vm596, %v1605, 0.0
      %v2652 = vsel %vm597, %v1610, 0.0
      %v2653 = vsel %vm598, %v1615, 0.0
      %v2654 = vsel %vm617, %v2651, -inf
      %v2655 = vsel %vm617, %v2652, -inf
      %v2656 = vsel %vm617, %v2653, -inf
      %v2657 = vmax.f32 %v2654, %v2655
      %v2658 = vmax.f32 %v2657, %v2656
      %v2659 = vrot.slane %v2658, 4
      %v2660 = vmax.f32 %v2658, %v2659
      %v2661 = vrot.slane %v2660, 2
      %v2662 = vmax.f32 %v2660, %v2661
      %v2663 = vrot.slane %v2662, 1
      %v2664 = vmax.f32 %v2662, %v2663
      %vm2665 = vcmp.gt.f32.partialorder %v2650, %v2625
      %vm2666 = vcmp.gt.f32.partialorder %v2650, %v2630
      %vm2667 = vcmp.gt.f32.partialorder %v2650, %v2635
      %v2668 = vsel %vm2665, 1.0, 0.0
      %v2669 = vsel %vm2666, 1.0, 0.0
      %v2670 = vsel %vm2667, 1.0, 0.0
      %v2671 = vmul.f32 %v2668, %v2664
      %v2672 = vmul.f32 %v2669, %v2664
      %v2673 = vmul.f32 %v2670, %v2664
      %vm2674 = vcmp.eq.f32.partialorder %v2650, %v2625
      %vm2675 = vcmp.eq.f32.partialorder %v2650, %v2630
      %vm2676 = vcmp.eq.f32.partialorder %v2650, %v2635
      %vm2677 = vcmp.lt.s32.totalorder %v389, %v385
      %vm2678 = vcmp.lt.s32.totalorder %v389, %v386
      %vm2679 = vcmp.lt.s32.totalorder %v389, %v387
      %vm2680 = vmand %vm2674, %vm2677
      %vm2681 = vmand %vm2675, %vm2678
      %vm2682 = vmand %vm2676, %vm2679
      %v2683 = vsel %vm2680, 1.0, 0.0
      %v2684 = vsel %vm2681, 1.0, 0.0
      %v2685 = vsel %vm2682, 1.0, 0.0
      %v2686 = vmul.f32 %v2683, %v2664
      %v2687 = vmul.f32 %v2684, %v2664
      %v2688 = vmul.f32 %v2685, %v2664
      %v2689 = vadd.f32 %v2671, %v2686
      %v2690 = vadd.f32 %v2672, %v2687
      %v2691 = vadd.f32 %v2673, %v2688
      %v2692 = vsel %vm617, %v2689, 0.0
      %2693 = vadd.xlane.f32.xlu0 %v2692
      %v2694 = vpop.xlane.xlu0 %2693
      %v2695 = vsel %vm617, %v2690, 0.0
      %2696 = vadd.xlane.f32.xlu0 %v2695
      %v2697 = vpop.xlane.xlu0 %2696
      %v2698 = vsel %vm617, %v2691, 0.0
      %2699 = vadd.xlane.f32.xlu0 %v2698
      %v2700 = vpop.xlane.xlu0 %2699
      %v2701 = vadd.f32 %v410, 1.0
      %v2702 = vmul.f32 %v2701, 0.5
      %v2703 = vfloor.f32 %v2702
      %vm2704 = vcmp.lt.f32.partialorder %v2694, %v2703
      %vm2705 = vcmp.lt.f32.partialorder %v2697, %v2703
      %vm2706 = vcmp.lt.f32.partialorder %v2700, %v2703
      %vm2707 = vcmp.gt.f32.partialorder %v354, 0.5
      %vm2708 = vcmp.gt.f32.partialorder %v355, 0.5
      %vm2709 = vcmp.gt.f32.partialorder %v356, 0.5
      %vm2710 = vmand %vm2704, %vm2707
      %vm2711 = vmand %vm2705, %vm2708
      %vm2712 = vmand %vm2706, %vm2709
      %v2713 = vtanh.pop %v2609
      %v2714 = vtanh.pop %v2614
      %v2715 = vtanh.pop %v2619
      %2717 = vset.pattern.permute.xlu0 0
      %2718 = vperm.xlu0 %2717, %v2713
      %v2719 = vpop.permute.xlu0 %2718
      %2722 = vset.pattern.permute.xlu0 0
      %2723 = vperm.xlu0 %2722, %v2714
      %v2724 = vpop.permute.xlu0 %2723
      %2727 = vset.pattern.permute.xlu0 0
      %2728 = vperm.xlu0 %2727, %v2715
      %v2729 = vpop.permute.xlu0 %2728
      %v2731 = vmul.f32 %v2422, %v2719
      %v2732 = vmul.f32 %v2423, %v2724
      %v2733 = vmul.f32 %v2424, %v2729
      %v2734 = vsel %vm2710, 1, 0
      %v2735 = vsel %vm2711, 1, 0
      %v2736 = vsel %vm2712, 1, 0
      %2737 = vset.pattern.permute.xlu0 0
      %2738 = vperm.xlu0 %2737, %v2734
      %v2739 = vpop.permute.xlu0 %2738
      %2740 = vset.pattern.permute.xlu0 0
      %2741 = vperm.xlu0 %2740, %v2735
      %v2742 = vpop.permute.xlu0 %2741
      %2743 = vset.pattern.permute.xlu0 0
      %2744 = vperm.xlu0 %2743, %v2736
      %v2745 = vpop.permute.xlu0 %2744
      %vm2746 = vcmp.eq.s32.totalorder %v2739, 1
      %vm2747 = vcmp.eq.s32.totalorder %v2742, 1
      %vm2748 = vcmp.eq.s32.totalorder %v2745, 1
      %v2749 = vsel %vm2746, %v2731, -1e+30
      %v2750 = vsel %vm2747, %v2732, -1e+30
      %v2751 = vsel %vm2748, %v2733, -1e+30
      %v2752 = vsel %vm503, %v2749, -inf
      %v2753 = vsel %vm503, %v2750, -inf
      %v2754 = vsel %vm503, %v2751, -inf
      %v2755 = vmax.f32 %v2752, %v2753
      %v2756 = vmax.f32 %v2755, %v2754
      %v2757 = vrot.slane %v2756, 4
      %v2758 = vmax.f32 %v2756, %v2757
      %v2759 = vrot.slane %v2758, 2
      %v2760 = vmax.f32 %v2758, %v2759
      %v2761 = vrot.slane %v2760, 1
      %v2762 = vmax.f32 %v2760, %v2761
      %vm2763 = vcmask 253952
      %2764 = vst.msk [vmem:[%s347] sm:$0x1] %vm2763, %v2762
      %p2765 = scmp.lt.s32.totalorder %s17, 1
      %s2766 = scalar_select %p2765, %s17, 1
      %s2767 = scalar_lea.vmem %s6, %s2766
      // Predicated region
      $region45: #{polymer_gnn_joint_forward.2} parent=43 // pred_check
        %p2768 = pneg %p191
      $region46: #{polymer_gnn_joint_forward.2} parent=43 // pred_check_branch
        %2770 = sbr.rel (%p2768) target = $region48
      $region47: #{polymer_gnn_joint_forward.2} parent=43 // pred_region
        _
      $region48: #{polymer_gnn_joint_forward.2} parent=43 // pred_fallthru
        _
    $region44: #{polymer_gnn_joint_forward.2} parent=5 // pred_fallthru
      _
    %p2771 = scmp.le.s32.totalorder 2, %s12
    // Predicated region
    $region49: #{polymer_gnn_joint_forward.2} parent=5 // pred_check
      %p2772 = pneg %p2771
    $region50: #{polymer_gnn_joint_forward.2} parent=5 // pred_check_branch
      %2774 = sbr.rel (%p2772) target = $region52
    $region51: #{polymer_gnn_joint_forward.2} parent=5 // pred_region
      %s2775 = ssub.s32 %s12, 2
      // Predicated region
      $region53: #{polymer_gnn_joint_forward.2} parent=51 // pred_check
        %p2776 = pneg %p197
      $region54: #{polymer_gnn_joint_forward.2} parent=51 // pred_check_branch
        %2778 = sbr.rel (%p2776) target = $region56
      $region55: #{polymer_gnn_joint_forward.2} parent=51 // pred_region
        %p2779 = scmp.lt.s32.totalorder %s18, 1
        %s2780 = scalar_select %p2779, %s18, 1
        %s2781 = scalar_lea.vmem %s6, %s2780
      $region56: #{polymer_gnn_joint_forward.2} parent=51 // pred_fallthru
        _
    $region52: #{polymer_gnn_joint_forward.2} parent=5 // pred_fallthru
      _
  $region6: #{polymer_gnn_joint_forward.2} parent=0 // loop_footer
    %s16 = sadd.s32 1, %s12
  $region7: #{polymer_gnn_joint_forward.2} parent=0 // loop_footer_branch
    %11 = sbr.rel target = $region3
  $region8: #{polymer_gnn_joint_forward.2} parent=0 // loop_exit
    _

</llo_original>
